<compile_context>
chip_gen: v7x
topology: tpu7x:2x2x1
jax: 0.10.0
libtpu: 0.0.40
codegen_flags: <defaults>
</compile_context>

<pallas_src>
import numpy as np
import jax
import jax.numpy as jnp
from jax.experimental import pallas as pl
from jax.experimental.pallas import tpu as pltpu

# ----- model hyper-parameters (small, synthetic) -----
BATCH, SENT, W = 2, 16, 8             # batch, sentence length, word (char) length
E = 16                                # char_embedding_dim (both char embedders)
H = 32                                # lstm_dim            -> chars output = 2*H = 64
DP = 16                               # pass_through dim
CHAR_COUNT = 40
FILTERS = ((1, 8), (2, 8), (3, 16))   # (kernel_size, out_channels)
C1, C2, C3 = FILTERS[0][1], FILTERS[1][1], FILTERS[2][1]
D_CONV = C1 + C2 + C3                 # 32
D_PROJ = 32                           # projection_dim (use_projections=True, 1 highway)
OUT_DIM = 2 * H + DP + D_PROJ         # 112  (concat order: chars, pass_through, elmo)
OUT_PAD = 128                         # lane-dense padded output width

# derived packing constants
WE = W * E                            # 128 lanes per char-embedding block
GS = 8 * H                            # 256 gate lanes per interleaved LSTM step (both dirs)
NB_LSTM = W * GS                      # 2048 precomputed input-projection lanes
CONV_COLS = W * D_CONV                # 256 fused conv columns (8 positions x 32 channels)
OFF_BC = NB_LSTM                      # conv bias offset inside packed bias row
OFF_BHW = OFF_BC + D_CONV             # highway bias offset
OFF_BPR = OFF_BHW + 2 * D_CONV        # projection bias offset
B_TOTAL = OFF_BPR + D_PROJ            # 2176
SLAB = 2 * WE                         # 256-lane bf16 per-token char slab [xc_lstm | xc_elmo]
AUX = DP + W                          # 24-lane f32 per-token aux slab   [xp | mask]
# packed small-weight operand (everything is 256 lanes wide)
R_WHH, R_WCONV, R_WPOST = 0, 2 * H, 2 * H + WE           # row offsets 0 / 64 / 192
W_SMALL_ROWS = 2 * H + WE + D_CONV                       # 224
W_SMALL_COLS = GS                                        # 256 (== CONV_COLS)


def embedder_stack_kernel(xslab_ref, aux_ref, w_xg_ref, w_small_ref, b_all_ref, out_ref):
    tm = xslab_ref.shape[0]
    xslab = xslab_ref[...]                                   # (TM, 256) bf16
    aux = aux_ref[...]                                       # (TM, 24)  f32
    b_all = b_all_ref[...]                                   # (1, B_TOTAL) f32

    xc = xslab[:, 0:WE]                                      # (TM, 128) bf16 lstm char embeds
    xe = xslab[:, WE:2 * WE]                                 # (TM, 128) bf16 elmo char embeds
    xp = aux[:, 0:DP]                                        # (TM, 16)  f32 pass-through
    mask = aux[:, DP:DP + W]                                 # (TM, 8)   f32 char!=0 mask

    # ---------------- CharacterLevelEmbedder: masked BiLSTM, last hidden ----------------
    # All W per-step input projections for both directions in ONE bf16 MXU matmul (f32 acc).
    xg = jnp.dot(xc, w_xg_ref[...], preferred_element_type=jnp.float32) + b_all[:, :NB_LSTM]
    w_hh = w_small_ref[R_WHH:R_WHH + 2 * H, :]               # (64, 256) bf16 block-diag recurrent
    lane2h = jax.lax.broadcasted_iota(jnp.int32, (tm, 2 * H), 1)
    h = jnp.zeros((tm, 2 * H), jnp.float32)                  # [h_fwd | h_bwd]
    c = jnp.zeros((tm, 2 * H), jnp.float32)
    for s in range(W):                                       # static unrolled; fwd step s, bwd step W-1-s
        gates = xg[:, s * GS:(s + 1) * GS] + jnp.dot(
            h.astype(jnp.bfloat16), w_hh, preferred_element_type=jnp.float32)
        i = jax.nn.sigmoid(gates[:, 0:2 * H])                # gate order i,f,g,o; fwd/bwd interleaved
        f = jax.nn.sigmoid(gates[:, 2 * H:4 * H])
        g = jnp.tanh(gates[:, 4 * H:6 * H])
        o = jax.nn.sigmoid(gates[:, 6 * H:8 * H])
        c_new = f * c + i * g
        h_new = o * jnp.tanh(c_new)
        m = jnp.where(lane2h < H, mask[:, s:s + 1], mask[:, W - 1 - s:W - s])
        h = m * h_new + (1.0 - m) * h                        # padded steps keep prior state
        c = m * c_new + (1.0 - m) * c

    # ------------- UncontextualizedELMoEmbedder: one fused conv matmul + roll-max -------
    # w_conv is (128, 256): column block t holds [k1@t | k2@t | k3@t]; out-of-range positions
    # duplicate the last valid position, so the max over column blocks needs no masking.
    w_conv = w_small_ref[R_WCONV:R_WCONV + WE, :]            # (128, 256) bf16
    y = jnp.dot(xe, w_conv, preferred_element_type=jnp.float32)   # (TM, 256) f32
    y = jnp.maximum(y, pltpu.roll(y, shift=4 * D_CONV, axis=1))   # log-reduce 8 blocks of 32 lanes
    y = jnp.maximum(y, pltpu.roll(y, shift=2 * D_CONV, axis=1))
    y = jnp.maximum(y, pltpu.roll(y, shift=D_CONV, axis=1))
    tok = jnp.maximum(y[:, :D_CONV] + b_all[:, OFF_BC:OFF_BC + D_CONV], 0.0)  # bias after max

    # Highway (1 layer, AllenNLP semantics) + Linear projection
    w_post = w_small_ref[R_WPOST:R_WPOST + D_CONV, :]        # (32, 256) bf16: [w_hw(64) | w_pr(32) | 0]
    hw = (jnp.dot(tok.astype(jnp.bfloat16), w_post[:, 0:2 * D_CONV],
                  preferred_element_type=jnp.float32)
          + b_all[:, OFF_BHW:OFF_BHW + 2 * D_CONV])
    nonlin = jnp.maximum(hw[:, :D_CONV], 0.0)
    gate = jax.nn.sigmoid(hw[:, D_CONV:2 * D_CONV])
    tok = gate * tok + (1.0 - gate) * nonlin
    elmo = (jnp.dot(tok.astype(jnp.bfloat16), w_post[:, 2 * D_CONV:2 * D_CONV + D_PROJ],
                    preferred_element_type=jnp.float32)
            + b_all[:, OFF_BPR:OFF_BPR + D_PROJ])

    # ---------- EmbedderStack: [chars | pass_through | elmo], single lane-dense store ----------
    pad = jnp.zeros((tm, OUT_PAD - OUT_DIM), jnp.float32)
    out_ref[...] = jnp.concatenate([h, xp, elmo, pad], axis=-1)


def pack_kernel_params(params):
    """Host-side packing of the raw weights/biases into 4 lane-dense kernel operands."""
    wih_f = np.asarray(params["wih_f"]); whh_f = np.asarray(params["whh_f"]); b_f = np.asarray(params["b_f"])
    wih_b = np.asarray(params["wih_b"]); whh_b = np.asarray(params["whh_b"]); b_b = np.asarray(params["b_b"])

    # Block-diagonal LSTM input projection: rows = time-major char lanes, columns = W steps x
    # [i_f,i_b,f_f,f_b,g_f,g_b,o_f,o_b]; backward direction time-reversed so step s uses x_{W-1-s}.
    w_xg = np.zeros((W * E, NB_LSTM), np.float32)
    b_xg = np.zeros((1, NB_LSTM), np.float32)
    for s in range(W):
        r = W - 1 - s
        for gi in range(4):                                  # PyTorch gate order i, f, g, o
            cf = s * GS + gi * 2 * H
            cb = cf + H
            w_xg[s * E:(s + 1) * E, cf:cf + H] = wih_f[:, gi * H:(gi + 1) * H]
            w_xg[r * E:(r + 1) * E, cb:cb + H] = wih_b[:, gi * H:(gi + 1) * H]
            b_xg[0, cf:cf + H] = b_f[0, gi * H:(gi + 1) * H]
            b_xg[0, cb:cb + H] = b_b[0, gi * H:(gi + 1) * H]

    # Block-diagonal recurrent weight, same gate-interleaved column layout.
    w_hh = np.zeros((2 * H, GS), np.float32)
    for gi in range(4):
        w_hh[0:H, gi * 2 * H:gi * 2 * H + H] = whh_f[:, gi * H:(gi + 1) * H]
        w_hh[H:2 * H, gi * 2 * H + H:(gi + 1) * 2 * H] = whh_b[:, gi * H:(gi + 1) * H]

    # Fused conv weight: column block t = [k1@t | k2@t | k3@t]; positions past the valid range
    # duplicate the last valid position (same dot product -> max over blocks unaffected).
    wc1 = np.asarray(params["wc1"]); wc2 = np.asarray(params["wc2"]); wc3 = np.asarray(params["wc3"])
    w_conv = np.zeros((W * E, CONV_COLS), np.float32)
    for t in range(W):
        col = t * D_CONV
        w_conv[t * E:(t + 1) * E, col:col + C1] = wc1                       # k=1 valid for all t
        t2 = min(t, W - 2)
        w_conv[t2 * E:(t2 + 2) * E, col + C1:col + C1 + C2] = wc2           # k=2 (dup for t=7)
        t3 = min(t, W - 3)
        w_conv[t3 * E:(t3 + 3) * E, col + C1 + C2:col + D_CONV] = wc3       # k=3 (dup for t=6,7)

    # Highway + projection weights, lane-padded to 256 columns.
    w_post = np.zeros((D_CONV, W_SMALL_COLS), np.float32)
    w_post[:, 0:2 * D_CONV] = np.asarray(params["w_hw"])
    w_post[:, 2 * D_CONV:2 * D_CONV + D_PROJ] = np.asarray(params["w_pr"])

    # Single lane-dense (224, 256) small-weight operand.
    w_small = np.zeros((W_SMALL_ROWS, W_SMALL_COLS), np.float32)
    w_small[R_WHH:R_WHH + 2 * H] = w_hh
    w_small[R_WCONV:R_WCONV + WE] = w_conv
    w_small[R_WPOST:R_WPOST + D_CONV] = w_post

    b_conv = np.concatenate([np.asarray(params["bc1"]), np.asarray(params["bc2"]),
                             np.asarray(params["bc3"])], axis=1)             # (1, 32)
    b_all = np.concatenate([b_xg, b_conv, np.asarray(params["b_hw"]),
                            np.asarray(params["b_pr"])], axis=1)             # (1, B_TOTAL)

    return {
        "w_xg": jnp.asarray(w_xg, dtype=jnp.bfloat16),
        "w_small": jnp.asarray(w_small, dtype=jnp.bfloat16),
        "b_all": jnp.asarray(b_all, dtype=jnp.float32),
        # single fused bf16 gather table for both char embedders
        "emb_all": jnp.concatenate([params["char_emb_lstm"],
                                    params["char_emb_elmo"]], axis=1).astype(jnp.bfloat16),
    }


def embedder_stack_forward(chars, embeddings, packed, *, tm=None):
    batch, sent, word_len = chars.shape
    n = batch * sent
    if tm is None:
        # keep the grid even (>=2 steps) so megacore can split it on v7x; cap at 128 to keep the
        # unrolled recurrence out of vreg-spill territory (per perf review).
        if n % 256 == 0:
            tm = 128
        elif n % 16 == 0 and (n // 2) % 8 == 0:
            tm = n // 2
        else:
            tm = n
    assert n % tm == 0 and tm % 8 == 0
    chars_flat = chars.reshape(n, word_len)

    # glue (plain JAX): single bf16 embedding-table gather + lane-dense per-token slabs
    gath = packed["emb_all"][chars_flat]                    # (n, W, 2E) bf16
    xc_lstm = gath[:, :, :E].reshape(n, word_len * E)
    xc_elmo = gath[:, :, E:].reshape(n, word_len * E)
    xslab = jnp.concatenate([xc_lstm, xc_elmo], axis=-1)    # (n, 256) bf16
    mask = (chars_flat != 0).astype(jnp.float32)
    aux = jnp.concatenate([embeddings.reshape(n, DP), mask], axis=-1)   # (n, 24) f32 (exact)

    out = pl.pallas_call(
        embedder_stack_kernel,
        out_shape=jax.ShapeDtypeStruct((n, OUT_PAD), jnp.float32),
        grid=(n // tm,),
        in_specs=[
            pl.BlockSpec((tm, SLAB), lambda i: (i, 0)),
            pl.BlockSpec((tm, AUX), lambda i: (i, 0)),
            pl.BlockSpec((W * E, NB_LSTM), lambda i: (0, 0)),
            pl.BlockSpec((W_SMALL_ROWS, W_SMALL_COLS), lambda i: (0, 0)),
            pl.BlockSpec((1, B_TOTAL), lambda i: (0, 0)),
        ],
        out_specs=pl.BlockSpec((tm, OUT_PAD), lambda i: (i, 0)),
        compiler_params=pltpu.CompilerParams(
            dimension_semantics=("parallel",),
            vmem_limit_bytes=32 * 1024 * 1024,
        ),
    )(xslab, aux, packed["w_xg"], packed["w_small"], packed["b_all"])
    # TODO(synk): downstream consumers could take the 128-lane padded layout directly to skip this slice.
    return out[:, :OUT_DIM].reshape(batch, sent, OUT_DIM)


def reference_forward(chars, embeddings, params):
    """Pure-JAX f32 reference mirroring the PyTorch forward semantics."""
    batch, sent, word_len = chars.shape
    n = batch * sent
    chars_flat = chars.reshape(n, word_len)
    mask = (chars_flat != 0).astype(jnp.float32)
    x_lstm = params["char_emb_lstm"][chars_flat]            # (N, W, E)
    x_elmo = params["char_emb_elmo"][chars_flat]

    def run_dir(wih, whh, b, reverse):
        h = jnp.zeros((n, H)); c = jnp.zeros((n, H))
        steps = range(word_len - 1, -1, -1) if reverse else range(word_len)
        for t in steps:
            gates = x_lstm[:, t] @ wih + h @ whh + b
            i = jax.nn.sigmoid(gates[:, :H]); f = jax.nn.sigmoid(gates[:, H:2 * H])
            g = jnp.tanh(gates[:, 2 * H:3 * H]); o = jax.nn.sigmoid(gates[:, 3 * H:])
            c_new = f * c + i * g; h_new = o * jnp.tanh(c_new)
            m = mask[:, t:t + 1]
            h = m * h_new + (1.0 - m) * h
            c = m * c_new + (1.0 - m) * c
        return h

    h_f = run_dir(params["wih_f"], params["whh_f"], params["b_f"], False)
    h_b = run_dir(params["wih_b"], params["whh_b"], params["b_b"], True)

    convs = []
    for (k, _), wname, bname in zip(FILTERS, ("wc1", "wc2", "wc3"), ("bc1", "bc2", "bc3")):
        outs = []
        for t in range(word_len - k + 1):
            window = x_elmo[:, t:t + k, :].reshape(n, k * E)
            outs.append(window @ params[wname] + params[bname])
        convs.append(jnp.maximum(jnp.max(jnp.stack(outs, 0), 0), 0.0))
    tok = jnp.concatenate(convs, -1)
    proj = tok @ params["w_hw"] + params["b_hw"]
    nonlin = jnp.maximum(proj[:, :D_CONV], 0.0)
    gate = jax.nn.sigmoid(proj[:, D_CONV:])
    tok = gate * tok + (1.0 - gate) * nonlin
    elmo = tok @ params["w_pr"] + params["b_pr"]
    out = jnp.concatenate([h_f, h_b, embeddings.reshape(n, DP), elmo], -1)
    return out.reshape(batch, sent, OUT_DIM)


def init_params(key):
    ks = jax.random.split(key, 16)
    s = 0.1
    p = {
        "char_emb_lstm": s * jax.random.normal(ks[0], (CHAR_COUNT, E), jnp.float32),
        "char_emb_elmo": s * jax.random.normal(ks[1], (CHAR_COUNT, E), jnp.float32),
        # BiLSTM weights (already transposed to (in, 4H); b = b_ih + b_hh combined)
        "wih_f": s * jax.random.normal(ks[2], (E, 4 * H), jnp.float32),
        "whh_f": s * jax.random.normal(ks[3], (H, 4 * H), jnp.float32),
        "b_f": s * jax.random.normal(ks[4], (1, 4 * H), jnp.float32),
        "wih_b": s * jax.random.normal(ks[5], (E, 4 * H), jnp.float32),
        "whh_b": s * jax.random.normal(ks[6], (H, 4 * H), jnp.float32),
        "b_b": s * jax.random.normal(ks[7], (1, 4 * H), jnp.float32),
        # Conv1d weights flattened to (k*E, C_out) matmul form
        "wc1": s * jax.random.normal(ks[8], (1 * E, C1), jnp.float32),
        "bc1": s * jax.random.normal(ks[9], (1, C1), jnp.float32),
        "wc2": s * jax.random.normal(ks[10], (2 * E, C2), jnp.float32),
        "bc2": s * jax.random.normal(ks[11], (1, C2), jnp.float32),
        "wc3": s * jax.random.normal(ks[12], (3 * E, C3), jnp.float32),
        "bc3": s * jax.random.normal(ks[13], (1, C3), jnp.float32),
        # Highway (1 layer) + projection
        "w_hw": s * jax.random.normal(ks[14], (D_CONV, 2 * D_CONV), jnp.float32),
        "b_hw": jnp.zeros((1, 2 * D_CONV), jnp.float32),
        "w_pr": s * jax.random.normal(ks[15], (D_CONV, D_PROJ), jnp.float32),
        "b_pr": jnp.zeros((1, D_PROJ), jnp.float32),
    }
    return p


if __name__ == "__main__":
    key = jax.random.PRNGKey(0)
    k_char, k_len, k_emb, k_par = jax.random.split(key, 4)

    # inputs dict equivalent: {"chars": int ids with 0-padding, "embeddings": float features}
    lengths = jax.random.randint(k_len, (BATCH, SENT, 1), 1, W + 1)
    raw = jax.random.randint(k_char, (BATCH, SENT, W), 1, CHAR_COUNT)
    pos = jnp.arange(W)[None, None, :]
    chars = jnp.where(pos < lengths, raw, 0).astype(jnp.int32)              # (2, 16, 8)
    embeddings = jax.random.normal(k_emb, (BATCH, SENT, DP), jnp.float32)   # (2, 16, 16)

    params = init_params(k_par)
    packed = pack_kernel_params(params)

    out = embedder_stack_forward(chars, embeddings, packed)
    out = jax.block_until_ready(out)

    ref = reference_forward(chars, embeddings, params)
    assert out.shape == (BATCH, SENT, OUT_DIM)
    # bf16 matmul operands (per perf review) -> loosened tolerance vs the f32 reference
    assert jnp.allclose(out, ref, atol=2e-2, rtol=2e-2), "mismatch vs reference"
    print("KERNEL_OK")
</pallas_src>

<mosaic_0001>
module attributes {stable_mosaic.version = 11 : i64} {
  func.func @embedder_stack_kernel(%arg0: i32, %arg1: memref<16x256xbf16, #tpu.memory_space<vmem>>, %arg2: memref<16x24xf32, #tpu.memory_space<vmem>>, %arg3: memref<128x2048xbf16, #tpu.memory_space<vmem>>, %arg4: memref<224x256xbf16, #tpu.memory_space<vmem>>, %arg5: memref<1x2176xf32, #tpu.memory_space<vmem>>, %arg6: memref<16x128xf32, #tpu.memory_space<vmem>>) attributes {dimension_semantics = [#tpu.dimension_semantics<parallel>], iteration_bounds = array<i64: 2>, scalar_prefetch = 0 : i64, scratch_operands = 0 : i64, tpu.core_type = #tpu.core_type<tc>, window_params = [{transform_indices = @transform_0, window_bounds = array<i64: 16, 256>}, {transform_indices = @transform_1, window_bounds = array<i64: 16, 24>}, {pipeline_mode = #tpu.pipeline_mode<synchronous>, transform_indices = @transform_2, window_bounds = array<i64: 128, 2048>}, {pipeline_mode = #tpu.pipeline_mode<synchronous>, transform_indices = @transform_3, window_bounds = array<i64: 224, 256>}, {pipeline_mode = #tpu.pipeline_mode<synchronous>, transform_indices = @transform_4, window_bounds = array<i64: 1, 2176>}, {transform_indices = @transform_5, window_bounds = array<i64: 16, 128>}]} {
    %c0 = arith.constant 0 : index
    %c0_0 = arith.constant 0 : index
    %0 = vector.load %arg1[%c0, %c0_0] : memref<16x256xbf16, #tpu.memory_space<vmem>>, vector<16x256xbf16>
    %c0_1 = arith.constant 0 : index
    %c0_2 = arith.constant 0 : index
    %1 = vector.load %arg2[%c0_1, %c0_2] : memref<16x24xf32, #tpu.memory_space<vmem>>, vector<16x24xf32>
    %c0_3 = arith.constant 0 : index
    %c0_4 = arith.constant 0 : index
    %2 = vector.load %arg5[%c0_3, %c0_4] : memref<1x2176xf32, #tpu.memory_space<vmem>>, vector<1x2176xf32>
    %3 = vector.extract_strided_slice %0 {offsets = [0, 0], sizes = [16, 128], strides = [1, 1]} : vector<16x256xbf16> to vector<16x128xbf16>
    %4 = vector.extract_strided_slice %0 {offsets = [0, 128], sizes = [16, 128], strides = [1, 1]} : vector<16x256xbf16> to vector<16x128xbf16>
    %5 = vector.extract_strided_slice %1 {offsets = [0, 0], sizes = [16, 16], strides = [1, 1]} : vector<16x24xf32> to vector<16x16xf32>
    %6 = vector.extract_strided_slice %1 {offsets = [0, 16], sizes = [16, 8], strides = [1, 1]} : vector<16x24xf32> to vector<16x8xf32>
    %c0_5 = arith.constant 0 : index
    %c0_6 = arith.constant 0 : index
    %7 = vector.load %arg3[%c0_5, %c0_6] : memref<128x2048xbf16, #tpu.memory_space<vmem>>, vector<128x2048xbf16>
    %cst = arith.constant dense<0.000000e+00> : vector<16x2048xf32>
    %8 = tpu.matmul %3, %7, %cst {dimension_numbers = #tpu.dot_dimension_numbers<[1], [0], [0], [1], [0, 0, 1, 1], [], []>} : vector<16x128xbf16>, vector<128x2048xbf16>, vector<16x2048xf32> -> vector<16x2048xf32>
    %9 = vector.extract_strided_slice %2 {offsets = [0, 0], sizes = [1, 2048], strides = [1, 1]} : vector<1x2176xf32> to vector<1x2048xf32>
    %10 = vector.broadcast %9 : vector<1x2048xf32> to vector<16x2048xf32>
    %11 = arith.addf %8, %10 : vector<16x2048xf32>
    %c0_7 = arith.constant 0 : index
    %c0_8 = arith.constant 0 : index
    %12 = vector.load %arg4[%c0_7, %c0_8] : memref<224x256xbf16, #tpu.memory_space<vmem>>, vector<64x256xbf16>
    %13 = tpu.iota {dimensions = array<i32: 1>} : vector<16x64xi32>
    %cst_9 = arith.constant 0.000000e+00 : f32
    %14 = vector.broadcast %cst_9 : f32 to vector<16x64xf32>
    %cst_10 = arith.constant 0.000000e+00 : f32
    %15 = vector.broadcast %cst_10 : f32 to vector<16x64xf32>
    %16 = vector.extract_strided_slice %11 {offsets = [0, 0], sizes = [16, 256], strides = [1, 1]} : vector<16x2048xf32> to vector<16x256xf32>
    %17 = arith.truncf %14 : vector<16x64xf32> to vector<16x64xbf16>
    %cst_11 = arith.constant dense<0.000000e+00> : vector<16x256xf32>
    %18 = tpu.matmul %17, %12, %cst_11 {dimension_numbers = #tpu.dot_dimension_numbers<[1], [0], [0], [1], [0, 0, 1, 1], [], []>} : vector<16x64xbf16>, vector<64x256xbf16>, vector<16x256xf32> -> vector<16x256xf32>
    %19 = arith.addf %16, %18 : vector<16x256xf32>
    %20 = vector.extract_strided_slice %19 {offsets = [0, 0], sizes = [16, 64], strides = [1, 1]} : vector<16x256xf32> to vector<16x64xf32>
    %21 = arith.negf %20 : vector<16x64xf32>
    %22 = math.exp %21 : vector<16x64xf32>
    %cst_12 = arith.constant 1.000000e+00 : f32
    %23 = vector.broadcast %cst_12 : f32 to vector<16x64xf32>
    %24 = arith.addf %23, %22 : vector<16x64xf32>
    %25 = arith.divf %23, %24 : vector<16x64xf32>
    %26 = vector.extract_strided_slice %19 {offsets = [0, 64], sizes = [16, 64], strides = [1, 1]} : vector<16x256xf32> to vector<16x64xf32>
    %27 = arith.negf %26 : vector<16x64xf32>
    %28 = math.exp %27 : vector<16x64xf32>
    %cst_13 = arith.constant 1.000000e+00 : f32
    %29 = vector.broadcast %cst_13 : f32 to vector<16x64xf32>
    %30 = arith.addf %29, %28 : vector<16x64xf32>
    %31 = arith.divf %29, %30 : vector<16x64xf32>
    %32 = vector.extract_strided_slice %19 {offsets = [0, 128], sizes = [16, 64], strides = [1, 1]} : vector<16x256xf32> to vector<16x64xf32>
    %33 = math.tanh %32 : vector<16x64xf32>
    %34 = vector.extract_strided_slice %19 {offsets = [0, 192], sizes = [16, 64], strides = [1, 1]} : vector<16x256xf32> to vector<16x64xf32>
    %35 = arith.negf %34 : vector<16x64xf32>
    %36 = math.exp %35 : vector<16x64xf32>
    %cst_14 = arith.constant 1.000000e+00 : f32
    %37 = vector.broadcast %cst_14 : f32 to vector<16x64xf32>
    %38 = arith.addf %37, %36 : vector<16x64xf32>
    %39 = arith.divf %37, %38 : vector<16x64xf32>
    %40 = arith.mulf %31, %15 : vector<16x64xf32>
    %41 = arith.mulf %25, %33 : vector<16x64xf32>
    %42 = arith.addf %40, %41 : vector<16x64xf32>
    %43 = math.tanh %42 : vector<16x64xf32>
    %44 = arith.mulf %39, %43 : vector<16x64xf32>
    %c32_i32 = arith.constant 32 : i32
    %45 = vector.broadcast %c32_i32 : i32 to vector<16x64xi32>
    %46 = arith.cmpi slt, %13, %45 : vector<16x64xi32>
    %47 = vector.extract_strided_slice %6 {offsets = [0, 0], sizes = [16, 1], strides = [1, 1]} : vector<16x8xf32> to vector<16x1xf32>
    %48 = vector.extract_strided_slice %6 {offsets = [0, 7], sizes = [16, 1], strides = [1, 1]} : vector<16x8xf32> to vector<16x1xf32>
    %49 = vector.shape_cast %47 : vector<16x1xf32> to vector<16x1xf32>
    %50 = vector.broadcast %49 : vector<16x1xf32> to vector<16x64xf32>
    %51 = vector.shape_cast %48 : vector<16x1xf32> to vector<16x1xf32>
    %52 = vector.broadcast %51 : vector<16x1xf32> to vector<16x64xf32>
    %53 = arith.select %46, %50, %52 : vector<16x64xi1>, vector<16x64xf32>
    %54 = arith.mulf %53, %44 : vector<16x64xf32>
    %cst_15 = arith.constant 1.000000e+00 : f32
    %55 = vector.broadcast %cst_15 : f32 to vector<16x64xf32>
    %56 = arith.subf %55, %53 : vector<16x64xf32>
    %57 = arith.mulf %56, %14 : vector<16x64xf32>
    %58 = arith.addf %54, %57 : vector<16x64xf32>
    %59 = arith.mulf %53, %42 : vector<16x64xf32>
    %cst_16 = arith.constant 1.000000e+00 : f32
    %60 = vector.broadcast %cst_16 : f32 to vector<16x64xf32>
    %61 = arith.subf %60, %53 : vector<16x64xf32>
    %62 = arith.mulf %61, %15 : vector<16x64xf32>
    %63 = arith.addf %59, %62 : vector<16x64xf32>
    %64 = vector.extract_strided_slice %11 {offsets = [0, 256], sizes = [16, 256], strides = [1, 1]} : vector<16x2048xf32> to vector<16x256xf32>
    %65 = arith.truncf %58 : vector<16x64xf32> to vector<16x64xbf16>
    %cst_17 = arith.constant dense<0.000000e+00> : vector<16x256xf32>
    %66 = tpu.matmul %65, %12, %cst_17 {dimension_numbers = #tpu.dot_dimension_numbers<[1], [0], [0], [1], [0, 0, 1, 1], [], []>} : vector<16x64xbf16>, vector<64x256xbf16>, vector<16x256xf32> -> vector<16x256xf32>
    %67 = arith.addf %64, %66 : vector<16x256xf32>
    %68 = vector.extract_strided_slice %67 {offsets = [0, 0], sizes = [16, 64], strides = [1, 1]} : vector<16x256xf32> to vector<16x64xf32>
    %69 = arith.negf %68 : vector<16x64xf32>
    %70 = math.exp %69 : vector<16x64xf32>
    %cst_18 = arith.constant 1.000000e+00 : f32
    %71 = vector.broadcast %cst_18 : f32 to vector<16x64xf32>
    %72 = arith.addf %71, %70 : vector<16x64xf32>
    %73 = arith.divf %71, %72 : vector<16x64xf32>
    %74 = vector.extract_strided_slice %67 {offsets = [0, 64], sizes = [16, 64], strides = [1, 1]} : vector<16x256xf32> to vector<16x64xf32>
    %75 = arith.negf %74 : vector<16x64xf32>
    %76 = math.exp %75 : vector<16x64xf32>
    %cst_19 = arith.constant 1.000000e+00 : f32
    %77 = vector.broadcast %cst_19 : f32 to vector<16x64xf32>
    %78 = arith.addf %77, %76 : vector<16x64xf32>
    %79 = arith.divf %77, %78 : vector<16x64xf32>
    %80 = vector.extract_strided_slice %67 {offsets = [0, 128], sizes = [16, 64], strides = [1, 1]} : vector<16x256xf32> to vector<16x64xf32>
    %81 = math.tanh %80 : vector<16x64xf32>
    %82 = vector.extract_strided_slice %67 {offsets = [0, 192], sizes = [16, 64], strides = [1, 1]} : vector<16x256xf32> to vector<16x64xf32>
    %83 = arith.negf %82 : vector<16x64xf32>
    %84 = math.exp %83 : vector<16x64xf32>
    %cst_20 = arith.constant 1.000000e+00 : f32
    %85 = vector.broadcast %cst_20 : f32 to vector<16x64xf32>
    %86 = arith.addf %85, %84 : vector<16x64xf32>
    %87 = arith.divf %85, %86 : vector<16x64xf32>
    %88 = arith.mulf %79, %63 : vector<16x64xf32>
    %89 = arith.mulf %73, %81 : vector<16x64xf32>
    %90 = arith.addf %88, %89 : vector<16x64xf32>
    %91 = math.tanh %90 : vector<16x64xf32>
    %92 = arith.mulf %87, %91 : vector<16x64xf32>
    %c32_i32_21 = arith.constant 32 : i32
    %93 = vector.broadcast %c32_i32_21 : i32 to vector<16x64xi32>
    %94 = arith.cmpi slt, %13, %93 : vector<16x64xi32>
    %95 = vector.extract_strided_slice %6 {offsets = [0, 1], sizes = [16, 1], strides = [1, 1]} : vector<16x8xf32> to vector<16x1xf32>
    %96 = vector.extract_strided_slice %6 {offsets = [0, 6], sizes = [16, 1], strides = [1, 1]} : vector<16x8xf32> to vector<16x1xf32>
    %97 = vector.shape_cast %95 : vector<16x1xf32> to vector<16x1xf32>
    %98 = vector.broadcast %97 : vector<16x1xf32> to vector<16x64xf32>
    %99 = vector.shape_cast %96 : vector<16x1xf32> to vector<16x1xf32>
    %100 = vector.broadcast %99 : vector<16x1xf32> to vector<16x64xf32>
    %101 = arith.select %94, %98, %100 : vector<16x64xi1>, vector<16x64xf32>
    %102 = arith.mulf %101, %92 : vector<16x64xf32>
    %cst_22 = arith.constant 1.000000e+00 : f32
    %103 = vector.broadcast %cst_22 : f32 to vector<16x64xf32>
    %104 = arith.subf %103, %101 : vector<16x64xf32>
    %105 = arith.mulf %104, %58 : vector<16x64xf32>
    %106 = arith.addf %102, %105 : vector<16x64xf32>
    %107 = arith.mulf %101, %90 : vector<16x64xf32>
    %cst_23 = arith.constant 1.000000e+00 : f32
    %108 = vector.broadcast %cst_23 : f32 to vector<16x64xf32>
    %109 = arith.subf %108, %101 : vector<16x64xf32>
    %110 = arith.mulf %109, %63 : vector<16x64xf32>
    %111 = arith.addf %107, %110 : vector<16x64xf32>
    %112 = vector.extract_strided_slice %11 {offsets = [0, 512], sizes = [16, 256], strides = [1, 1]} : vector<16x2048xf32> to vector<16x256xf32>
    %113 = arith.truncf %106 : vector<16x64xf32> to vector<16x64xbf16>
    %cst_24 = arith.constant dense<0.000000e+00> : vector<16x256xf32>
    %114 = tpu.matmul %113, %12, %cst_24 {dimension_numbers = #tpu.dot_dimension_numbers<[1], [0], [0], [1], [0, 0, 1, 1], [], []>} : vector<16x64xbf16>, vector<64x256xbf16>, vector<16x256xf32> -> vector<16x256xf32>
    %115 = arith.addf %112, %114 : vector<16x256xf32>
    %116 = vector.extract_strided_slice %115 {offsets = [0, 0], sizes = [16, 64], strides = [1, 1]} : vector<16x256xf32> to vector<16x64xf32>
    %117 = arith.negf %116 : vector<16x64xf32>
    %118 = math.exp %117 : vector<16x64xf32>
    %cst_25 = arith.constant 1.000000e+00 : f32
    %119 = vector.broadcast %cst_25 : f32 to vector<16x64xf32>
    %120 = arith.addf %119, %118 : vector<16x64xf32>
    %121 = arith.divf %119, %120 : vector<16x64xf32>
    %122 = vector.extract_strided_slice %115 {offsets = [0, 64], sizes = [16, 64], strides = [1, 1]} : vector<16x256xf32> to vector<16x64xf32>
    %123 = arith.negf %122 : vector<16x64xf32>
    %124 = math.exp %123 : vector<16x64xf32>
    %cst_26 = arith.constant 1.000000e+00 : f32
    %125 = vector.broadcast %cst_26 : f32 to vector<16x64xf32>
    %126 = arith.addf %125, %124 : vector<16x64xf32>
    %127 = arith.divf %125, %126 : vector<16x64xf32>
    %128 = vector.extract_strided_slice %115 {offsets = [0, 128], sizes = [16, 64], strides = [1, 1]} : vector<16x256xf32> to vector<16x64xf32>
    %129 = math.tanh %128 : vector<16x64xf32>
    %130 = vector.extract_strided_slice %115 {offsets = [0, 192], sizes = [16, 64], strides = [1, 1]} : vector<16x256xf32> to vector<16x64xf32>
    %131 = arith.negf %130 : vector<16x64xf32>
    %132 = math.exp %131 : vector<16x64xf32>
    %cst_27 = arith.constant 1.000000e+00 : f32
    %133 = vector.broadcast %cst_27 : f32 to vector<16x64xf32>
    %134 = arith.addf %133, %132 : vector<16x64xf32>
    %135 = arith.divf %133, %134 : vector<16x64xf32>
    %136 = arith.mulf %127, %111 : vector<16x64xf32>
    %137 = arith.mulf %121, %129 : vector<16x64xf32>
    %138 = arith.addf %136, %137 : vector<16x64xf32>
    %139 = math.tanh %138 : vector<16x64xf32>
    %140 = arith.mulf %135, %139 : vector<16x64xf32>
    %c32_i32_28 = arith.constant 32 : i32
    %141 = vector.broadcast %c32_i32_28 : i32 to vector<16x64xi32>
    %142 = arith.cmpi slt, %13, %141 : vector<16x64xi32>
    %143 = vector.extract_strided_slice %6 {offsets = [0, 2], sizes = [16, 1], strides = [1, 1]} : vector<16x8xf32> to vector<16x1xf32>
    %144 = vector.extract_strided_slice %6 {offsets = [0, 5], sizes = [16, 1], strides = [1, 1]} : vector<16x8xf32> to vector<16x1xf32>
    %145 = vector.shape_cast %143 : vector<16x1xf32> to vector<16x1xf32>
    %146 = vector.broadcast %145 : vector<16x1xf32> to vector<16x64xf32>
    %147 = vector.shape_cast %144 : vector<16x1xf32> to vector<16x1xf32>
    %148 = vector.broadcast %147 : vector<16x1xf32> to vector<16x64xf32>
    %149 = arith.select %142, %146, %148 : vector<16x64xi1>, vector<16x64xf32>
    %150 = arith.mulf %149, %140 : vector<16x64xf32>
    %cst_29 = arith.constant 1.000000e+00 : f32
    %151 = vector.broadcast %cst_29 : f32 to vector<16x64xf32>
    %152 = arith.subf %151, %149 : vector<16x64xf32>
    %153 = arith.mulf %152, %106 : vector<16x64xf32>
    %154 = arith.addf %150, %153 : vector<16x64xf32>
    %155 = arith.mulf %149, %138 : vector<16x64xf32>
    %cst_30 = arith.constant 1.000000e+00 : f32
    %156 = vector.broadcast %cst_30 : f32 to vector<16x64xf32>
    %157 = arith.subf %156, %149 : vector<16x64xf32>
    %158 = arith.mulf %157, %111 : vector<16x64xf32>
    %159 = arith.addf %155, %158 : vector<16x64xf32>
    %160 = vector.extract_strided_slice %11 {offsets = [0, 768], sizes = [16, 256], strides = [1, 1]} : vector<16x2048xf32> to vector<16x256xf32>
    %161 = arith.truncf %154 : vector<16x64xf32> to vector<16x64xbf16>
    %cst_31 = arith.constant dense<0.000000e+00> : vector<16x256xf32>
    %162 = tpu.matmul %161, %12, %cst_31 {dimension_numbers = #tpu.dot_dimension_numbers<[1], [0], [0], [1], [0, 0, 1, 1], [], []>} : vector<16x64xbf16>, vector<64x256xbf16>, vector<16x256xf32> -> vector<16x256xf32>
    %163 = arith.addf %160, %162 : vector<16x256xf32>
    %164 = vector.extract_strided_slice %163 {offsets = [0, 0], sizes = [16, 64], strides = [1, 1]} : vector<16x256xf32> to vector<16x64xf32>
    %165 = arith.negf %164 : vector<16x64xf32>
    %166 = math.exp %165 : vector<16x64xf32>
    %cst_32 = arith.constant 1.000000e+00 : f32
    %167 = vector.broadcast %cst_32 : f32 to vector<16x64xf32>
    %168 = arith.addf %167, %166 : vector<16x64xf32>
    %169 = arith.divf %167, %168 : vector<16x64xf32>
    %170 = vector.extract_strided_slice %163 {offsets = [0, 64], sizes = [16, 64], strides = [1, 1]} : vector<16x256xf32> to vector<16x64xf32>
    %171 = arith.negf %170 : vector<16x64xf32>
    %172 = math.exp %171 : vector<16x64xf32>
    %cst_33 = arith.constant 1.000000e+00 : f32
    %173 = vector.broadcast %cst_33 : f32 to vector<16x64xf32>
    %174 = arith.addf %173, %172 : vector<16x64xf32>
    %175 = arith.divf %173, %174 : vector<16x64xf32>
    %176 = vector.extract_strided_slice %163 {offsets = [0, 128], sizes = [16, 64], strides = [1, 1]} : vector<16x256xf32> to vector<16x64xf32>
    %177 = math.tanh %176 : vector<16x64xf32>
    %178 = vector.extract_strided_slice %163 {offsets = [0, 192], sizes = [16, 64], strides = [1, 1]} : vector<16x256xf32> to vector<16x64xf32>
    %179 = arith.negf %178 : vector<16x64xf32>
    %180 = math.exp %179 : vector<16x64xf32>
    %cst_34 = arith.constant 1.000000e+00 : f32
    %181 = vector.broadcast %cst_34 : f32 to vector<16x64xf32>
    %182 = arith.addf %181, %180 : vector<16x64xf32>
    %183 = arith.divf %181, %182 : vector<16x64xf32>
    %184 = arith.mulf %175, %159 : vector<16x64xf32>
    %185 = arith.mulf %169, %177 : vector<16x64xf32>
    %186 = arith.addf %184, %185 : vector<16x64xf32>
    %187 = math.tanh %186 : vector<16x64xf32>
    %188 = arith.mulf %183, %187 : vector<16x64xf32>
    %c32_i32_35 = arith.constant 32 : i32
    %189 = vector.broadcast %c32_i32_35 : i32 to vector<16x64xi32>
    %190 = arith.cmpi slt, %13, %189 : vector<16x64xi32>
    %191 = vector.extract_strided_slice %6 {offsets = [0, 3], sizes = [16, 1], strides = [1, 1]} : vector<16x8xf32> to vector<16x1xf32>
    %192 = vector.extract_strided_slice %6 {offsets = [0, 4], sizes = [16, 1], strides = [1, 1]} : vector<16x8xf32> to vector<16x1xf32>
    %193 = vector.shape_cast %191 : vector<16x1xf32> to vector<16x1xf32>
    %194 = vector.broadcast %193 : vector<16x1xf32> to vector<16x64xf32>
    %195 = vector.shape_cast %192 : vector<16x1xf32> to vector<16x1xf32>
    %196 = vector.broadcast %195 : vector<16x1xf32> to vector<16x64xf32>
    %197 = arith.select %190, %194, %196 : vector<16x64xi1>, vector<16x64xf32>
    %198 = arith.mulf %197, %188 : vector<16x64xf32>
    %cst_36 = arith.constant 1.000000e+00 : f32
    %199 = vector.broadcast %cst_36 : f32 to vector<16x64xf32>
    %200 = arith.subf %199, %197 : vector<16x64xf32>
    %201 = arith.mulf %200, %154 : vector<16x64xf32>
    %202 = arith.addf %198, %201 : vector<16x64xf32>
    %203 = arith.mulf %197, %186 : vector<16x64xf32>
    %cst_37 = arith.constant 1.000000e+00 : f32
    %204 = vector.broadcast %cst_37 : f32 to vector<16x64xf32>
    %205 = arith.subf %204, %197 : vector<16x64xf32>
    %206 = arith.mulf %205, %159 : vector<16x64xf32>
    %207 = arith.addf %203, %206 : vector<16x64xf32>
    %208 = vector.extract_strided_slice %11 {offsets = [0, 1024], sizes = [16, 256], strides = [1, 1]} : vector<16x2048xf32> to vector<16x256xf32>
    %209 = arith.truncf %202 : vector<16x64xf32> to vector<16x64xbf16>
    %cst_38 = arith.constant dense<0.000000e+00> : vector<16x256xf32>
    %210 = tpu.matmul %209, %12, %cst_38 {dimension_numbers = #tpu.dot_dimension_numbers<[1], [0], [0], [1], [0, 0, 1, 1], [], []>} : vector<16x64xbf16>, vector<64x256xbf16>, vector<16x256xf32> -> vector<16x256xf32>
    %211 = arith.addf %208, %210 : vector<16x256xf32>
    %212 = vector.extract_strided_slice %211 {offsets = [0, 0], sizes = [16, 64], strides = [1, 1]} : vector<16x256xf32> to vector<16x64xf32>
    %213 = arith.negf %212 : vector<16x64xf32>
    %214 = math.exp %213 : vector<16x64xf32>
    %cst_39 = arith.constant 1.000000e+00 : f32
    %215 = vector.broadcast %cst_39 : f32 to vector<16x64xf32>
    %216 = arith.addf %215, %214 : vector<16x64xf32>
    %217 = arith.divf %215, %216 : vector<16x64xf32>
    %218 = vector.extract_strided_slice %211 {offsets = [0, 64], sizes = [16, 64], strides = [1, 1]} : vector<16x256xf32> to vector<16x64xf32>
    %219 = arith.negf %218 : vector<16x64xf32>
    %220 = math.exp %219 : vector<16x64xf32>
    %cst_40 = arith.constant 1.000000e+00 : f32
    %221 = vector.broadcast %cst_40 : f32 to vector<16x64xf32>
    %222 = arith.addf %221, %220 : vector<16x64xf32>
    %223 = arith.divf %221, %222 : vector<16x64xf32>
    %224 = vector.extract_strided_slice %211 {offsets = [0, 128], sizes = [16, 64], strides = [1, 1]} : vector<16x256xf32> to vector<16x64xf32>
    %225 = math.tanh %224 : vector<16x64xf32>
    %226 = vector.extract_strided_slice %211 {offsets = [0, 192], sizes = [16, 64], strides = [1, 1]} : vector<16x256xf32> to vector<16x64xf32>
    %227 = arith.negf %226 : vector<16x64xf32>
    %228 = math.exp %227 : vector<16x64xf32>
    %cst_41 = arith.constant 1.000000e+00 : f32
    %229 = vector.broadcast %cst_41 : f32 to vector<16x64xf32>
    %230 = arith.addf %229, %228 : vector<16x64xf32>
    %231 = arith.divf %229, %230 : vector<16x64xf32>
    %232 = arith.mulf %223, %207 : vector<16x64xf32>
    %233 = arith.mulf %217, %225 : vector<16x64xf32>
    %234 = arith.addf %232, %233 : vector<16x64xf32>
    %235 = math.tanh %234 : vector<16x64xf32>
    %236 = arith.mulf %231, %235 : vector<16x64xf32>
    %c32_i32_42 = arith.constant 32 : i32
    %237 = vector.broadcast %c32_i32_42 : i32 to vector<16x64xi32>
    %238 = arith.cmpi slt, %13, %237 : vector<16x64xi32>
    %239 = vector.extract_strided_slice %6 {offsets = [0, 4], sizes = [16, 1], strides = [1, 1]} : vector<16x8xf32> to vector<16x1xf32>
    %240 = vector.extract_strided_slice %6 {offsets = [0, 3], sizes = [16, 1], strides = [1, 1]} : vector<16x8xf32> to vector<16x1xf32>
    %241 = vector.shape_cast %239 : vector<16x1xf32> to vector<16x1xf32>
    %242 = vector.broadcast %241 : vector<16x1xf32> to vector<16x64xf32>
    %243 = vector.shape_cast %240 : vector<16x1xf32> to vector<16x1xf32>
    %244 = vector.broadcast %243 : vector<16x1xf32> to vector<16x64xf32>
    %245 = arith.select %238, %242, %244 : vector<16x64xi1>, vector<16x64xf32>
    %246 = arith.mulf %245, %236 : vector<16x64xf32>
    %cst_43 = arith.constant 1.000000e+00 : f32
    %247 = vector.broadcast %cst_43 : f32 to vector<16x64xf32>
    %248 = arith.subf %247, %245 : vector<16x64xf32>
    %249 = arith.mulf %248, %202 : vector<16x64xf32>
    %250 = arith.addf %246, %249 : vector<16x64xf32>
    %251 = arith.mulf %245, %234 : vector<16x64xf32>
    %cst_44 = arith.constant 1.000000e+00 : f32
    %252 = vector.broadcast %cst_44 : f32 to vector<16x64xf32>
    %253 = arith.subf %252, %245 : vector<16x64xf32>
    %254 = arith.mulf %253, %207 : vector<16x64xf32>
    %255 = arith.addf %251, %254 : vector<16x64xf32>
    %256 = vector.extract_strided_slice %11 {offsets = [0, 1280], sizes = [16, 256], strides = [1, 1]} : vector<16x2048xf32> to vector<16x256xf32>
    %257 = arith.truncf %250 : vector<16x64xf32> to vector<16x64xbf16>
    %cst_45 = arith.constant dense<0.000000e+00> : vector<16x256xf32>
    %258 = tpu.matmul %257, %12, %cst_45 {dimension_numbers = #tpu.dot_dimension_numbers<[1], [0], [0], [1], [0, 0, 1, 1], [], []>} : vector<16x64xbf16>, vector<64x256xbf16>, vector<16x256xf32> -> vector<16x256xf32>
    %259 = arith.addf %256, %258 : vector<16x256xf32>
    %260 = vector.extract_strided_slice %259 {offsets = [0, 0], sizes = [16, 64], strides = [1, 1]} : vector<16x256xf32> to vector<16x64xf32>
    %261 = arith.negf %260 : vector<16x64xf32>
    %262 = math.exp %261 : vector<16x64xf32>
    %cst_46 = arith.constant 1.000000e+00 : f32
    %263 = vector.broadcast %cst_46 : f32 to vector<16x64xf32>
    %264 = arith.addf %263, %262 : vector<16x64xf32>
    %265 = arith.divf %263, %264 : vector<16x64xf32>
    %266 = vector.extract_strided_slice %259 {offsets = [0, 64], sizes = [16, 64], strides = [1, 1]} : vector<16x256xf32> to vector<16x64xf32>
    %267 = arith.negf %266 : vector<16x64xf32>
    %268 = math.exp %267 : vector<16x64xf32>
    %cst_47 = arith.constant 1.000000e+00 : f32
    %269 = vector.broadcast %cst_47 : f32 to vector<16x64xf32>
    %270 = arith.addf %269, %268 : vector<16x64xf32>
    %271 = arith.divf %269, %270 : vector<16x64xf32>
    %272 = vector.extract_strided_slice %259 {offsets = [0, 128], sizes = [16, 64], strides = [1, 1]} : vector<16x256xf32> to vector<16x64xf32>
    %273 = math.tanh %272 : vector<16x64xf32>
    %274 = vector.extract_strided_slice %259 {offsets = [0, 192], sizes = [16, 64], strides = [1, 1]} : vector<16x256xf32> to vector<16x64xf32>
    %275 = arith.negf %274 : vector<16x64xf32>
    %276 = math.exp %275 : vector<16x64xf32>
    %cst_48 = arith.constant 1.000000e+00 : f32
    %277 = vector.broadcast %cst_48 : f32 to vector<16x64xf32>
    %278 = arith.addf %277, %276 : vector<16x64xf32>
    %279 = arith.divf %277, %278 : vector<16x64xf32>
    %280 = arith.mulf %271, %255 : vector<16x64xf32>
    %281 = arith.mulf %265, %273 : vector<16x64xf32>
    %282 = arith.addf %280, %281 : vector<16x64xf32>
    %283 = math.tanh %282 : vector<16x64xf32>
    %284 = arith.mulf %279, %283 : vector<16x64xf32>
    %c32_i32_49 = arith.constant 32 : i32
    %285 = vector.broadcast %c32_i32_49 : i32 to vector<16x64xi32>
    %286 = arith.cmpi slt, %13, %285 : vector<16x64xi32>
    %287 = vector.extract_strided_slice %6 {offsets = [0, 5], sizes = [16, 1], strides = [1, 1]} : vector<16x8xf32> to vector<16x1xf32>
    %288 = vector.extract_strided_slice %6 {offsets = [0, 2], sizes = [16, 1], strides = [1, 1]} : vector<16x8xf32> to vector<16x1xf32>
    %289 = vector.shape_cast %287 : vector<16x1xf32> to vector<16x1xf32>
    %290 = vector.broadcast %289 : vector<16x1xf32> to vector<16x64xf32>
    %291 = vector.shape_cast %288 : vector<16x1xf32> to vector<16x1xf32>
    %292 = vector.broadcast %291 : vector<16x1xf32> to vector<16x64xf32>
    %293 = arith.select %286, %290, %292 : vector<16x64xi1>, vector<16x64xf32>
    %294 = arith.mulf %293, %284 : vector<16x64xf32>
    %cst_50 = arith.constant 1.000000e+00 : f32
    %295 = vector.broadcast %cst_50 : f32 to vector<16x64xf32>
    %296 = arith.subf %295, %293 : vector<16x64xf32>
    %297 = arith.mulf %296, %250 : vector<16x64xf32>
    %298 = arith.addf %294, %297 : vector<16x64xf32>
    %299 = arith.mulf %293, %282 : vector<16x64xf32>
    %cst_51 = arith.constant 1.000000e+00 : f32
    %300 = vector.broadcast %cst_51 : f32 to vector<16x64xf32>
    %301 = arith.subf %300, %293 : vector<16x64xf32>
    %302 = arith.mulf %301, %255 : vector<16x64xf32>
    %303 = arith.addf %299, %302 : vector<16x64xf32>
    %304 = vector.extract_strided_slice %11 {offsets = [0, 1536], sizes = [16, 256], strides = [1, 1]} : vector<16x2048xf32> to vector<16x256xf32>
    %305 = arith.truncf %298 : vector<16x64xf32> to vector<16x64xbf16>
    %cst_52 = arith.constant dense<0.000000e+00> : vector<16x256xf32>
    %306 = tpu.matmul %305, %12, %cst_52 {dimension_numbers = #tpu.dot_dimension_numbers<[1], [0], [0], [1], [0, 0, 1, 1], [], []>} : vector<16x64xbf16>, vector<64x256xbf16>, vector<16x256xf32> -> vector<16x256xf32>
    %307 = arith.addf %304, %306 : vector<16x256xf32>
    %308 = vector.extract_strided_slice %307 {offsets = [0, 0], sizes = [16, 64], strides = [1, 1]} : vector<16x256xf32> to vector<16x64xf32>
    %309 = arith.negf %308 : vector<16x64xf32>
    %310 = math.exp %309 : vector<16x64xf32>
    %cst_53 = arith.constant 1.000000e+00 : f32
    %311 = vector.broadcast %cst_53 : f32 to vector<16x64xf32>
    %312 = arith.addf %311, %310 : vector<16x64xf32>
    %313 = arith.divf %311, %312 : vector<16x64xf32>
    %314 = vector.extract_strided_slice %307 {offsets = [0, 64], sizes = [16, 64], strides = [1, 1]} : vector<16x256xf32> to vector<16x64xf32>
    %315 = arith.negf %314 : vector<16x64xf32>
    %316 = math.exp %315 : vector<16x64xf32>
    %cst_54 = arith.constant 1.000000e+00 : f32
    %317 = vector.broadcast %cst_54 : f32 to vector<16x64xf32>
    %318 = arith.addf %317, %316 : vector<16x64xf32>
    %319 = arith.divf %317, %318 : vector<16x64xf32>
    %320 = vector.extract_strided_slice %307 {offsets = [0, 128], sizes = [16, 64], strides = [1, 1]} : vector<16x256xf32> to vector<16x64xf32>
    %321 = math.tanh %320 : vector<16x64xf32>
    %322 = vector.extract_strided_slice %307 {offsets = [0, 192], sizes = [16, 64], strides = [1, 1]} : vector<16x256xf32> to vector<16x64xf32>
    %323 = arith.negf %322 : vector<16x64xf32>
    %324 = math.exp %323 : vector<16x64xf32>
    %cst_55 = arith.constant 1.000000e+00 : f32
    %325 = vector.broadcast %cst_55 : f32 to vector<16x64xf32>
    %326 = arith.addf %325, %324 : vector<16x64xf32>
    %327 = arith.divf %325, %326 : vector<16x64xf32>
    %328 = arith.mulf %319, %303 : vector<16x64xf32>
    %329 = arith.mulf %313, %321 : vector<16x64xf32>
    %330 = arith.addf %328, %329 : vector<16x64xf32>
    %331 = math.tanh %330 : vector<16x64xf32>
    %332 = arith.mulf %327, %331 : vector<16x64xf32>
    %c32_i32_56 = arith.constant 32 : i32
    %333 = vector.broadcast %c32_i32_56 : i32 to vector<16x64xi32>
    %334 = arith.cmpi slt, %13, %333 : vector<16x64xi32>
    %335 = vector.extract_strided_slice %6 {offsets = [0, 6], sizes = [16, 1], strides = [1, 1]} : vector<16x8xf32> to vector<16x1xf32>
    %336 = vector.extract_strided_slice %6 {offsets = [0, 1], sizes = [16, 1], strides = [1, 1]} : vector<16x8xf32> to vector<16x1xf32>
    %337 = vector.shape_cast %335 : vector<16x1xf32> to vector<16x1xf32>
    %338 = vector.broadcast %337 : vector<16x1xf32> to vector<16x64xf32>
    %339 = vector.shape_cast %336 : vector<16x1xf32> to vector<16x1xf32>
    %340 = vector.broadcast %339 : vector<16x1xf32> to vector<16x64xf32>
    %341 = arith.select %334, %338, %340 : vector<16x64xi1>, vector<16x64xf32>
    %342 = arith.mulf %341, %332 : vector<16x64xf32>
    %cst_57 = arith.constant 1.000000e+00 : f32
    %343 = vector.broadcast %cst_57 : f32 to vector<16x64xf32>
    %344 = arith.subf %343, %341 : vector<16x64xf32>
    %345 = arith.mulf %344, %298 : vector<16x64xf32>
    %346 = arith.addf %342, %345 : vector<16x64xf32>
    %347 = arith.mulf %341, %330 : vector<16x64xf32>
    %cst_58 = arith.constant 1.000000e+00 : f32
    %348 = vector.broadcast %cst_58 : f32 to vector<16x64xf32>
    %349 = arith.subf %348, %341 : vector<16x64xf32>
    %350 = arith.mulf %349, %303 : vector<16x64xf32>
    %351 = arith.addf %347, %350 : vector<16x64xf32>
    %352 = vector.extract_strided_slice %11 {offsets = [0, 1792], sizes = [16, 256], strides = [1, 1]} : vector<16x2048xf32> to vector<16x256xf32>
    %353 = arith.truncf %346 : vector<16x64xf32> to vector<16x64xbf16>
    %cst_59 = arith.constant dense<0.000000e+00> : vector<16x256xf32>
    %354 = tpu.matmul %353, %12, %cst_59 {dimension_numbers = #tpu.dot_dimension_numbers<[1], [0], [0], [1], [0, 0, 1, 1], [], []>} : vector<16x64xbf16>, vector<64x256xbf16>, vector<16x256xf32> -> vector<16x256xf32>
    %355 = arith.addf %352, %354 : vector<16x256xf32>
    %356 = vector.extract_strided_slice %355 {offsets = [0, 0], sizes = [16, 64], strides = [1, 1]} : vector<16x256xf32> to vector<16x64xf32>
    %357 = arith.negf %356 : vector<16x64xf32>
    %358 = math.exp %357 : vector<16x64xf32>
    %cst_60 = arith.constant 1.000000e+00 : f32
    %359 = vector.broadcast %cst_60 : f32 to vector<16x64xf32>
    %360 = arith.addf %359, %358 : vector<16x64xf32>
    %361 = arith.divf %359, %360 : vector<16x64xf32>
    %362 = vector.extract_strided_slice %355 {offsets = [0, 64], sizes = [16, 64], strides = [1, 1]} : vector<16x256xf32> to vector<16x64xf32>
    %363 = arith.negf %362 : vector<16x64xf32>
    %364 = math.exp %363 : vector<16x64xf32>
    %cst_61 = arith.constant 1.000000e+00 : f32
    %365 = vector.broadcast %cst_61 : f32 to vector<16x64xf32>
    %366 = arith.addf %365, %364 : vector<16x64xf32>
    %367 = arith.divf %365, %366 : vector<16x64xf32>
    %368 = vector.extract_strided_slice %355 {offsets = [0, 128], sizes = [16, 64], strides = [1, 1]} : vector<16x256xf32> to vector<16x64xf32>
    %369 = math.tanh %368 : vector<16x64xf32>
    %370 = vector.extract_strided_slice %355 {offsets = [0, 192], sizes = [16, 64], strides = [1, 1]} : vector<16x256xf32> to vector<16x64xf32>
    %371 = arith.negf %370 : vector<16x64xf32>
    %372 = math.exp %371 : vector<16x64xf32>
    %cst_62 = arith.constant 1.000000e+00 : f32
    %373 = vector.broadcast %cst_62 : f32 to vector<16x64xf32>
    %374 = arith.addf %373, %372 : vector<16x64xf32>
    %375 = arith.divf %373, %374 : vector<16x64xf32>
    %376 = arith.mulf %367, %351 : vector<16x64xf32>
    %377 = arith.mulf %361, %369 : vector<16x64xf32>
    %378 = arith.addf %376, %377 : vector<16x64xf32>
    %379 = math.tanh %378 : vector<16x64xf32>
    %380 = arith.mulf %375, %379 : vector<16x64xf32>
    %c32_i32_63 = arith.constant 32 : i32
    %381 = vector.broadcast %c32_i32_63 : i32 to vector<16x64xi32>
    %382 = arith.cmpi slt, %13, %381 : vector<16x64xi32>
    %383 = vector.extract_strided_slice %6 {offsets = [0, 7], sizes = [16, 1], strides = [1, 1]} : vector<16x8xf32> to vector<16x1xf32>
    %384 = vector.extract_strided_slice %6 {offsets = [0, 0], sizes = [16, 1], strides = [1, 1]} : vector<16x8xf32> to vector<16x1xf32>
    %385 = vector.shape_cast %383 : vector<16x1xf32> to vector<16x1xf32>
    %386 = vector.broadcast %385 : vector<16x1xf32> to vector<16x64xf32>
    %387 = vector.shape_cast %384 : vector<16x1xf32> to vector<16x1xf32>
    %388 = vector.broadcast %387 : vector<16x1xf32> to vector<16x64xf32>
    %389 = arith.select %382, %386, %388 : vector<16x64xi1>, vector<16x64xf32>
    %390 = arith.mulf %389, %380 : vector<16x64xf32>
    %cst_64 = arith.constant 1.000000e+00 : f32
    %391 = vector.broadcast %cst_64 : f32 to vector<16x64xf32>
    %392 = arith.subf %391, %389 : vector<16x64xf32>
    %393 = arith.mulf %392, %346 : vector<16x64xf32>
    %394 = arith.addf %390, %393 : vector<16x64xf32>
    %c64 = arith.constant 64 : index
    %c0_65 = arith.constant 0 : index
    %395 = vector.load %arg4[%c64, %c0_65] : memref<224x256xbf16, #tpu.memory_space<vmem>>, vector<128x256xbf16>
    %cst_66 = arith.constant dense<0.000000e+00> : vector<16x256xf32>
    %396 = tpu.matmul %4, %395, %cst_66 {dimension_numbers = #tpu.dot_dimension_numbers<[1], [0], [0], [1], [0, 0, 1, 1], [], []>} : vector<16x128xbf16>, vector<128x256xbf16>, vector<16x256xf32> -> vector<16x256xf32>
    %c128_i32 = arith.constant 128 : i32
    %397 = tpu.dynamic_rotate %396 by %c128_i32 dim 1 : vector<16x256xf32>, i32 -> vector<16x256xf32>
    %398 = arith.maximumf %396, %397 : vector<16x256xf32>
    %c64_i32 = arith.constant 64 : i32
    %399 = tpu.dynamic_rotate %398 by %c64_i32 dim 1 : vector<16x256xf32>, i32 -> vector<16x256xf32>
    %400 = arith.maximumf %398, %399 : vector<16x256xf32>
    %c32_i32_67 = arith.constant 32 : i32
    %401 = tpu.dynamic_rotate %400 by %c32_i32_67 dim 1 : vector<16x256xf32>, i32 -> vector<16x256xf32>
    %402 = arith.maximumf %400, %401 : vector<16x256xf32>
    %403 = vector.extract_strided_slice %402 {offsets = [0, 0], sizes = [16, 32], strides = [1, 1]} : vector<16x256xf32> to vector<16x32xf32>
    %404 = vector.extract_strided_slice %2 {offsets = [0, 2048], sizes = [1, 32], strides = [1, 1]} : vector<1x2176xf32> to vector<1x32xf32>
    %405 = vector.broadcast %404 : vector<1x32xf32> to vector<16x32xf32>
    %406 = arith.addf %403, %405 : vector<16x32xf32>
    %cst_68 = arith.constant 0.000000e+00 : f32
    %407 = vector.broadcast %cst_68 : f32 to vector<16x32xf32>
    %408 = arith.maximumf %406, %407 : vector<16x32xf32>
    %c192 = arith.constant 192 : index
    %c0_69 = arith.constant 0 : index
    %409 = vector.load %arg4[%c192, %c0_69] : memref<224x256xbf16, #tpu.memory_space<vmem>>, vector<32x256xbf16>
    %410 = arith.truncf %408 : vector<16x32xf32> to vector<16x32xbf16>
    %411 = vector.extract_strided_slice %409 {offsets = [0, 0], sizes = [32, 64], strides = [1, 1]} : vector<32x256xbf16> to vector<32x64xbf16>
    %cst_70 = arith.constant dense<0.000000e+00> : vector<16x64xf32>
    %412 = tpu.matmul %410, %411, %cst_70 {dimension_numbers = #tpu.dot_dimension_numbers<[1], [0], [0], [1], [0, 0, 1, 1], [], []>} : vector<16x32xbf16>, vector<32x64xbf16>, vector<16x64xf32> -> vector<16x64xf32>
    %413 = vector.extract_strided_slice %2 {offsets = [0, 2080], sizes = [1, 64], strides = [1, 1]} : vector<1x2176xf32> to vector<1x64xf32>
    %414 = vector.broadcast %413 : vector<1x64xf32> to vector<16x64xf32>
    %415 = arith.addf %412, %414 : vector<16x64xf32>
    %416 = vector.extract_strided_slice %415 {offsets = [0, 0], sizes = [16, 32], strides = [1, 1]} : vector<16x64xf32> to vector<16x32xf32>
    %cst_71 = arith.constant 0.000000e+00 : f32
    %417 = vector.broadcast %cst_71 : f32 to vector<16x32xf32>
    %418 = arith.maximumf %416, %417 : vector<16x32xf32>
    %419 = vector.extract_strided_slice %415 {offsets = [0, 32], sizes = [16, 32], strides = [1, 1]} : vector<16x64xf32> to vector<16x32xf32>
    %420 = arith.negf %419 : vector<16x32xf32>
    %421 = math.exp %420 : vector<16x32xf32>
    %cst_72 = arith.constant 1.000000e+00 : f32
    %422 = vector.broadcast %cst_72 : f32 to vector<16x32xf32>
    %423 = arith.addf %422, %421 : vector<16x32xf32>
    %424 = arith.divf %422, %423 : vector<16x32xf32>
    %425 = arith.mulf %424, %408 : vector<16x32xf32>
    %cst_73 = arith.constant 1.000000e+00 : f32
    %426 = vector.broadcast %cst_73 : f32 to vector<16x32xf32>
    %427 = arith.subf %426, %424 : vector<16x32xf32>
    %428 = arith.mulf %427, %418 : vector<16x32xf32>
    %429 = arith.addf %425, %428 : vector<16x32xf32>
    %430 = arith.truncf %429 : vector<16x32xf32> to vector<16x32xbf16>
    %431 = vector.extract_strided_slice %409 {offsets = [0, 64], sizes = [32, 32], strides = [1, 1]} : vector<32x256xbf16> to vector<32x32xbf16>
    %cst_74 = arith.constant dense<0.000000e+00> : vector<16x32xf32>
    %432 = tpu.matmul %430, %431, %cst_74 {dimension_numbers = #tpu.dot_dimension_numbers<[1], [0], [0], [1], [0, 0, 1, 1], [], []>} : vector<16x32xbf16>, vector<32x32xbf16>, vector<16x32xf32> -> vector<16x32xf32>
    %433 = vector.extract_strided_slice %2 {offsets = [0, 2144], sizes = [1, 32], strides = [1, 1]} : vector<1x2176xf32> to vector<1x32xf32>
    %434 = vector.broadcast %433 : vector<1x32xf32> to vector<16x32xf32>
    %435 = arith.addf %432, %434 : vector<16x32xf32>
    %cst_75 = arith.constant 0.000000e+00 : f32
    %436 = vector.broadcast %cst_75 : f32 to vector<16x16xf32>
    %437 = tpu.concatenate %394, %5, %435, %436 in 1 : vector<16x64xf32>, vector<16x16xf32>, vector<16x32xf32>, vector<16x16xf32> -> vector<16x128xf32>
    %c0_76 = arith.constant 0 : index
    %c0_77 = arith.constant 0 : index
    %438 = vector.load %arg6[%c0_76, %c0_77] : memref<16x128xf32, #tpu.memory_space<vmem>>, vector<16x128xf32>
    tpu.vector_store %arg6[%c0_76, %c0_77], %437 {strides = array<i32>} : memref<16x128xf32, #tpu.memory_space<vmem>>, vector<16x128xf32>,
    return
  }
  func.func @transform_0(%arg0: i32) -> (i32, i32) {
    %c0_i32 = arith.constant 0 : i32
    %c0_i32_0 = arith.constant 0 : i32
    return %arg0, %c0_i32 : i32, i32
  }
  func.func @transform_1(%arg0: i32) -> (i32, i32) {
    %c0_i32 = arith.constant 0 : i32
    %c0_i32_0 = arith.constant 0 : i32
    return %arg0, %c0_i32 : i32, i32
  }
  func.func @transform_2(%arg0: i32) -> (i32, i32) {
    %c0_i32 = arith.constant 0 : i32
    %c0_i32_0 = arith.constant 0 : i32
    %c0_i32_1 = arith.constant 0 : i32
    return %c0_i32, %c0_i32_0 : i32, i32
  }
  func.func @transform_3(%arg0: i32) -> (i32, i32) {
    %c0_i32 = arith.constant 0 : i32
    %c0_i32_0 = arith.constant 0 : i32
    %c0_i32_1 = arith.constant 0 : i32
    return %c0_i32, %c0_i32_0 : i32, i32
  }
  func.func @transform_4(%arg0: i32) -> (i32, i32) {
    %c0_i32 = arith.constant 0 : i32
    %c0_i32_0 = arith.constant 0 : i32
    %c0_i32_1 = arith.constant 0 : i32
    return %c0_i32, %c0_i32_0 : i32, i32
  }
  func.func @transform_5(%arg0: i32) -> (i32, i32) {
    %c0_i32 = arith.constant 0 : i32
    %c0_i32_0 = arith.constant 0 : i32
    return %arg0, %c0_i32 : i32, i32
  }
}

</mosaic_0001>

<llo_original>
// kernel: tpu_custom_call.1
$region0: #{tpu_custom_call.1}
  #allocation0 [shape = 'u32[]', space=smem, size = 0x4, offset = 0x4, fixed_abs, tag = 'smem constant byte address 0x4 - core index']
  #allocation1 [shape = 'u32[144,128]{1,0:T(1,128)}', space=vmem, size = 0x12000, scoped, tag = 'internal scratch']
  %s0 = inlined_call_operand.vmem [shape: bf16[32,256], index: 0, kind: input, shape index: {}]
  %s1 = inlined_call_operand.vmem [shape: f32[32,24], index: 1, kind: input, shape index: {}]
  %s2 = inlined_call_operand.hbm [shape: bf16[128,2048], index: 2, kind: input, shape index: {}]
  %s3 = inlined_call_operand.hbm [shape: bf16[224,256], index: 3, kind: input, shape index: {}]
  %s4 = inlined_call_operand.vmem [shape: f32[1,2176], index: 4, kind: input, shape index: {}]
  %s5 = inlined_call_operand.hbm [shape: f32[32,128], index: 5, kind: output, shape index: {}]
  %s6 = sld [smem:[#allocation0]]
  $region61: #{tpu_custom_call.1} parent=0
    _
  %s8 = ssub.s32 1, %s6
  %s9 = scalar_select 0, %s8, %s6
  $region1: #{tpu_custom_call.1} parent=0
    #allocation2 [shape = 'u8[524288]{0}', space=vmem, size = 0x80000, scoped, tag = 'input window, operand 2, single buffered']
    #allocation3 [shape = 's32[2]{0}', space=sflag, size = 0x8, scoped, tag = 'scoped memory for tpu_custom_call.1']
    #allocation4 [shape = 's32[2]{0}', space=sflag, size = 0x8, scoped, tag = 'scoped memory for tpu_custom_call.1']
    #allocation5 [shape = 'u8[114688]{0}', space=vmem, size = 0x1c000, scoped, tag = 'input window, operand 3, single buffered']
    #allocation6 [shape = 's32[1]{0}', space=sflag, size = 0x4, scoped, tag = 'scoped memory for tpu_custom_call.1']
    #allocation7 [shape = 'u8[16384]{0}', space=vmem, size = 0x4000, scoped, tag = 'output window, operand 0']
    %10 = vsyncpa [#allocation3], 0
    %11 = vsyncpa [#allocation6], 0
    %12 = vsyncpa [#allocation4], 0
    %s13 = scalar_lea.sflag [#allocation4], 1
    %14 = vsyncpa %s13, 0
    loop: start=0, step=1, limit=4
    $region2: #{tpu_custom_call.1} parent=1 // loop_pre_header
      _
    $region3: #{tpu_custom_call.1} parent=1 // loop_header
      %s16 = sphi 0, %s20
      %p17 = scmp.ge.s32.totalorder %s16, 4
      %s26 = sphi 0, %s28
      %s29 = sphi 0, %s26
      %s30 = sphi 0, %s29
      %s46 = sphi 0, %s30
      %s52 = sphi 0, %s54
      %s55 = sphi 0, %s52
      %s56 = sphi 0, %s55
      %s72 = sphi 0, %s56
      %s76 = sphi 0, %s76
      %s78 = sphi 0, %s76
      %s79 = sphi 0, %s78
      %s93 = sphi 0, %s79
      %s97 = sphi 0, %s97
      %s99 = sphi 0, %s97
      %s100 = sphi 0, %s99
      %s114 = sphi 0, %s100
      %s118 = sphi 0, %s118
      %s120 = sphi 0, %s118
      %s121 = sphi 0, %s120
      %s135 = sphi 0, %s121
      %s141 = sphi 0, %s143
      %s144 = sphi 0, %s141
      %s145 = sphi 0, %s144
      %s161 = sphi 0, %s145
    $region4: #{tpu_custom_call.1} parent=1 // loop_header_branch
      %19 = sbr.rel (%p17) target = $region8
    $region5: #{tpu_custom_call.1} parent=1 // loop_body
      %s21 = ssub.s32 %s16, 1
      %s22 = ssub.s32 %s16, 2
      %s23 = sadd.s32 %s16, 1
      %s24 = ssub.s32 %s16, %s23
      %p25 = scmp.eq.s32.totalorder %s24, 0
      %s27 = sadd.s32 %s26, 1
      %s28 = scalar_select %p25, %s26, %s27
      %p31 = pneg %p25
      %p32 = scmp.eq.s32.totalorder %s16, 1
      %p33 = por %p31, %p32
      %p34 = scmp.ne.s32.totalorder %s26, %s29
      %p35 = scmp.eq.s32.totalorder %s16, 0
      %p36 = por %p34, %p35
      %p37 = scmp.ne.s32.totalorder %s26, %s29
      %p38 = scmp.eq.s32.totalorder %s21, 1
      %p39 = por %p37, %p38
      %p40 = scmp.ne.s32.totalorder %s29, %s30
      %p41 = scmp.eq.s32.totalorder %s21, 0
      %p42 = por %p40, %p41
      %p43 = scmp.ne.s32.totalorder %s29, %s30
      %p44 = scmp.eq.s32.totalorder %s22, 1
      %p45 = por %p43, %p44
      %p47 = scmp.ne.s32.totalorder %s30, %s46
      %p48 = scmp.eq.s32.totalorder %s22, 0
      %p49 = por %p47, %p48
      %s50 = ssub.s32 %s16, %s23
      %p51 = scmp.eq.s32.totalorder %s50, 0
      %s53 = sadd.s32 %s52, 1
      %s54 = scalar_select %p51, %s52, %s53
      %p57 = pneg %p51
      %p58 = scmp.eq.s32.totalorder %s16, 1
      %p59 = por %p57, %p58
      %p60 = scmp.ne.s32.totalorder %s52, %s55
      %p61 = scmp.eq.s32.totalorder %s16, 0
      %p62 = por %p60, %p61
      %p63 = scmp.ne.s32.totalorder %s52, %s55
      %p64 = scmp.eq.s32.totalorder %s21, 1
      %p65 = por %p63, %p64
      %p66 = scmp.ne.s32.totalorder %s55, %s56
      %p67 = scmp.eq.s32.totalorder %s21, 0
      %p68 = por %p66, %p67
      %p69 = scmp.ne.s32.totalorder %s55, %s56
      %p70 = scmp.eq.s32.totalorder %s22, 1
      %p71 = por %p69, %p70
      %p73 = scmp.ne.s32.totalorder %s56, %s72
      %p74 = scmp.eq.s32.totalorder %s22, 0
      %p75 = por %p73, %p74
      %s77 = sadd.s32 %s76, 1
      %p80 = scmp.eq.s32.totalorder %s16, 1
      %p81 = scmp.ne.s32.totalorder %s76, %s78
      %p82 = scmp.eq.s32.totalorder %s16, 0
      %p83 = por %p81, %p82
      %p84 = scmp.ne.s32.totalorder %s76, %s78
      %p85 = scmp.eq.s32.totalorder %s21, 1
      %p86 = por %p84, %p85
      %p87 = scmp.ne.s32.totalorder %s78, %s79
      %p88 = scmp.eq.s32.totalorder %s21, 0
      %p89 = por %p87, %p88
      %p90 = scmp.ne.s32.totalorder %s78, %s79
      %p91 = scmp.eq.s32.totalorder %s22, 1
      %p92 = por %p90, %p91
      %p94 = scmp.ne.s32.totalorder %s79, %s93
      %p95 = scmp.eq.s32.totalorder %s22, 0
      %p96 = por %p94, %p95
      %s98 = sadd.s32 %s97, 1
      %p101 = scmp.eq.s32.totalorder %s16, 1
      %p102 = scmp.ne.s32.totalorder %s97, %s99
      %p103 = scmp.eq.s32.totalorder %s16, 0
      %p104 = por %p102, %p103
      %p105 = scmp.ne.s32.totalorder %s97, %s99
      %p106 = scmp.eq.s32.totalorder %s21, 1
      %p107 = por %p105, %p106
      %p108 = scmp.ne.s32.totalorder %s99, %s100
      %p109 = scmp.eq.s32.totalorder %s21, 0
      %p110 = por %p108, %p109
      %p111 = scmp.ne.s32.totalorder %s99, %s100
      %p112 = scmp.eq.s32.totalorder %s22, 1
      %p113 = por %p111, %p112
      %p115 = scmp.ne.s32.totalorder %s100, %s114
      %p116 = scmp.eq.s32.totalorder %s22, 0
      %p117 = por %p115, %p116
      %s119 = sadd.s32 %s118, 1
      %p122 = scmp.eq.s32.totalorder %s16, 1
      %p123 = scmp.ne.s32.totalorder %s118, %s120
      %p124 = scmp.eq.s32.totalorder %s16, 0
      %p125 = por %p123, %p124
      %p126 = scmp.ne.s32.totalorder %s118, %s120
      %p127 = scmp.eq.s32.totalorder %s21, 1
      %p128 = por %p126, %p127
      %p129 = scmp.ne.s32.totalorder %s120, %s121
      %p130 = scmp.eq.s32.totalorder %s21, 0
      %p131 = por %p129, %p130
      %p132 = scmp.ne.s32.totalorder %s120, %s121
      %p133 = scmp.eq.s32.totalorder %s22, 1
      %p134 = por %p132, %p133
      %p136 = scmp.ne.s32.totalorder %s121, %s135
      %p137 = scmp.eq.s32.totalorder %s22, 0
      %p138 = por %p136, %p137
      %s139 = ssub.s32 %s16, %s23
      %p140 = scmp.eq.s32.totalorder %s139, 0
      %s142 = sadd.s32 %s141, 1
      %s143 = scalar_select %p140, %s141, %s142
      %p146 = pneg %p140
      %p147 = scmp.eq.s32.totalorder %s16, 1
      %p148 = por %p146, %p147
      %p149 = scmp.ne.s32.totalorder %s141, %s144
      %p150 = scmp.eq.s32.totalorder %s16, 0
      %p151 = por %p149, %p150
      %p152 = scmp.ne.s32.totalorder %s141, %s144
      %p153 = scmp.eq.s32.totalorder %s21, 1
      %p154 = por %p152, %p153
      %p155 = scmp.ne.s32.totalorder %s144, %s145
      %p156 = scmp.eq.s32.totalorder %s21, 0
      %p157 = por %p155, %p156
      %p158 = scmp.ne.s32.totalorder %s144, %s145
      %p159 = scmp.eq.s32.totalorder %s22, 1
      %p160 = por %p158, %p159
      %p162 = scmp.ne.s32.totalorder %s145, %s161
      %p163 = scmp.eq.s32.totalorder %s22, 0
      %p164 = por %p162, %p163
      %p165 = scmp.le.s32.totalorder 1, %s16
      %p166 = scmp.lt.s32.totalorder %s16, 3
      %p167 = pnand %p165, %p166
      %p168 = pneg %p167
      // Predicated region
      $region9: #{tpu_custom_call.1} parent=5 // pred_check
        _
      $region10: #{tpu_custom_call.1} parent=5 // pred_check_branch
        %170 = sbr.rel (%p167) target = $region12
      $region11: #{tpu_custom_call.1} parent=5 // pred_region
        %s171 = ssub.s32 %s16, 1
        // Predicated region
        $region13: #{tpu_custom_call.1} parent=11 // pred_check
          %p172 = pneg %p89
        $region14: #{tpu_custom_call.1} parent=11 // pred_check_branch
          %174 = sbr.rel (%p172) target = $region16
        $region15: #{tpu_custom_call.1} parent=11 // pred_region
          %s176 = ssub.s32 16384, 16384
          %177 = vsyncadd [#allocation3], %s176
          %s178 = sshll.u32 [#allocation2], 4
          %s179 = int_to_ptr.vmem [resolvable:$true] %s178
          %184 = dma.hbm_to_vmem [thread:$0]  %s2, 16384, %s179, [#allocation3], 1024, 1024, 64
        $region16: #{tpu_custom_call.1} parent=11 // pred_fallthru
          _
        // Predicated region
        $region17: #{tpu_custom_call.1} parent=11 // pred_check
          %p185 = pneg %p110
        $region18: #{tpu_custom_call.1} parent=11 // pred_check_branch
          %187 = sbr.rel (%p185) target = $region20
        $region19: #{tpu_custom_call.1} parent=11 // pred_region
          %s189 = ssub.s32 3584, 3584
          %190 = vsyncadd [#allocation6], %s189
          %s191 = sshll.u32 [#allocation5], 4
          %s192 = int_to_ptr.vmem [resolvable:$true] %s191
          %197 = dma.hbm_to_vmem [thread:$0]  %s3, 3584, %s192, [#allocation6], 128, 128, 8
        $region20: #{tpu_custom_call.1} parent=11 // pred_fallthru
          _
        // Predicated region
        $region21: #{tpu_custom_call.1} parent=11 // pred_check
          %p198 = pneg %p131
        $region22: #{tpu_custom_call.1} parent=11 // pred_check_branch
          %200 = sbr.rel (%p198) target = $region24
        $region23: #{tpu_custom_call.1} parent=11 // pred_region
          _
        $region24: #{tpu_custom_call.1} parent=11 // pred_fallthru
          _
      $region12: #{tpu_custom_call.1} parent=5 // pred_fallthru
        _
      %p201 = scmp.lt.s32.totalorder %s16, 2
      // Predicated region
      $region25: #{tpu_custom_call.1} parent=5 // pred_check
        %p202 = pneg %p201
      $region26: #{tpu_custom_call.1} parent=5 // pred_check_branch
        %204 = sbr.rel (%p202) target = $region28
      $region27: #{tpu_custom_call.1} parent=5 // pred_region
        // Predicated region
        $region29: #{tpu_custom_call.1} parent=27 // pred_check
          %p205 = pneg %p36
        $region30: #{tpu_custom_call.1} parent=27 // pred_check_branch
          %207 = sbr.rel (%p205) target = $region32
        $region31: #{tpu_custom_call.1} parent=27 // pred_region
          %s208 = smul.u32 2, %s16
          %p209 = scmp.lt.s32.totalorder %s208, 3
          %s210 = scalar_select %p209, %s208, 3
          %s211 = smul.addr %s210, 2
          %s212 = smul.addr %s211, 4
          %s213 = scalar_lea.vmem %s0, %s212
          %s214 = smul.u32 2, %s16
        $region32: #{tpu_custom_call.1} parent=27 // pred_fallthru
          _
        // Predicated region
        $region33: #{tpu_custom_call.1} parent=27 // pred_check
          %p215 = pneg %p62
        $region34: #{tpu_custom_call.1} parent=27 // pred_check_branch
          %217 = sbr.rel (%p215) target = $region36
        $region35: #{tpu_custom_call.1} parent=27 // pred_region
          %s218 = smul.u32 2, %s16
          %p219 = scmp.lt.s32.totalorder %s218, 3
          %s220 = scalar_select %p219, %s218, 3
          %s221 = smul.addr %s220, 8
          %s222 = scalar_lea.vmem %s1, %s221
          %s223 = smul.u32 2, %s16
        $region36: #{tpu_custom_call.1} parent=27 // pred_fallthru
          _
      $region28: #{tpu_custom_call.1} parent=5 // pred_fallthru
        _
      %p224 = scmp.le.s32.totalorder 1, %s16
      %p225 = scmp.lt.s32.totalorder %s16, 3
      %p226 = pnand %p224, %p225
      %p227 = pneg %p226
      // Predicated region
      $region37: #{tpu_custom_call.1} parent=5 // pred_check
        _
      $region38: #{tpu_custom_call.1} parent=5 // pred_check_branch
        %229 = sbr.rel (%p226) target = $region40
      $region39: #{tpu_custom_call.1} parent=5 // pred_region
        %s230 = ssub.s32 %s16, 1
        // Predicated region
        $region41: #{tpu_custom_call.1} parent=39 // pred_check
          %p231 = pneg %p89
        $region42: #{tpu_custom_call.1} parent=39 // pred_check_branch
          %233 = sbr.rel (%p231) target = $region44
        $region43: #{tpu_custom_call.1} parent=39 // pred_region
          %234 = dma.done [#allocation3], 16384
        $region44: #{tpu_custom_call.1} parent=39 // pred_fallthru
          _
        // Predicated region
        $region45: #{tpu_custom_call.1} parent=39 // pred_check
          %p235 = pneg %p110
        $region46: #{tpu_custom_call.1} parent=39 // pred_check_branch
          %237 = sbr.rel (%p235) target = $region48
        $region47: #{tpu_custom_call.1} parent=39 // pred_region
          %238 = dma.done [#allocation6], 3584
        $region48: #{tpu_custom_call.1} parent=39 // pred_fallthru
          _
        %s239 = smul.u32 2, %s21
        %p240 = scmp.lt.s32.totalorder %s239, 3
        %s241 = scalar_select %p240, %s239, 3
        %s242 = smul.addr %s241, 2
        %s243 = smul.addr %s242, 4
        %s244 = scalar_lea.vmem %s0, %s243
        %p245 = pneg %p42
        %p246 = pneg %p39
        %s247 = smul.u32 2, %s21
        %p248 = scmp.lt.s32.totalorder %s247, 3
        %s249 = scalar_select %p248, %s247, 3
        %s250 = smul.addr %s249, 8
        %s251 = scalar_lea.vmem %s1, %s250
        %p252 = pneg %p68
        %p253 = pneg %p65
        %p254 = pneg %p89
        %p255 = pneg %p86
        %p256 = pneg %p110
        %p257 = pneg %p107
        %p258 = pneg %p131
        %p259 = pneg %p128
        %p260 = pneg %p157
        %p261 = pneg %p154
        %s262 = sand.u32 %s144, 1
        %s263 = scalar_lea.sflag [#allocation4], %s262
        %s264 = sand.u32 %s144, 1
        %s265 = smul.addr %s264, 16
        %s266 = scalar_lea.vmem [#allocation7], %s265
        %s267 = smul.u32 2, %s21
        %p268 = scmp.lt.s32.totalorder %s267, 3
        %s269 = scalar_select %p268, %s267, 3
        %s270 = smul.addr %s269, 2
        %s271 = smul.addr %s270, 4
        %s272 = scalar_lea.vmem %s0, %s271
        %s273 = smul.u32 2, %s21
        %s274 = smul.u32 2, %s21
        %p275 = scmp.lt.s32.totalorder %s274, 3
        %s276 = scalar_select %p275, %s274, 3
        %s277 = smul.addr %s276, 8
        %s278 = scalar_lea.vmem %s1, %s277
        %s279 = smul.u32 2, %s21
        %s280 = smul.u32 2, %s21
        %v282 = vld [vmem:[%s272] sm:$0xff]
        %v283 = vld [vmem:[%s272 + $0x8] sm:$0xff]
        %v284 = vld [vmem:[%s278] sm:$0xff]
        %v285 = vld [vmem:[%s278 + $0x8] sm:$0xff]
        %v286 = vld [vmem:[%s4] sm:$0xff]
        %v287 = vld [vmem:[%s4 + $0x8] sm:$0xff]
        %v288 = vld [vmem:[%s4 + $0x10] sm:$0x1]
        %v289 = vld [vmem:[#allocation2] sm:$0xff]
        %v290 = vld [vmem:[#allocation2 + $0x8] sm:$0xff]
        %v291 = vld [vmem:[#allocation2 + $0x10] sm:$0xff]
        %v292 = vld [vmem:[#allocation2 + $0x18] sm:$0xff]
        %v293 = vld [vmem:[#allocation2 + $0x20] sm:$0xff]
        %v294 = vld [vmem:[#allocation2 + $0x28] sm:$0xff]
        %v295 = vld [vmem:[#allocation2 + $0x30] sm:$0xff]
        %v296 = vld [vmem:[#allocation2 + $0x38] sm:$0xff]
        %v297 = vld [vmem:[#allocation2 + $0x40] sm:$0xff]
        %v298 = vld [vmem:[#allocation2 + $0x48] sm:$0xff]
        %v299 = vld [vmem:[#allocation2 + $0x50] sm:$0xff]
        %v300 = vld [vmem:[#allocation2 + $0x58] sm:$0xff]
        %v301 = vld [vmem:[#allocation2 + $0x60] sm:$0xff]
        %v302 = vld [vmem:[#allocation2 + $0x68] sm:$0xff]
        %v303 = vld [vmem:[#allocation2 + $0x70] sm:$0xff]
        %v304 = vld [vmem:[#allocation2 + $0x78] sm:$0xff]
        %v305 = vld [vmem:[#allocation2 + $0x80] sm:$0xff]
        %v306 = vld [vmem:[#allocation2 + $0x88] sm:$0xff]
        %v307 = vld [vmem:[#allocation2 + $0x90] sm:$0xff]
        %v308 = vld [vmem:[#allocation2 + $0x98] sm:$0xff]
        %v309 = vld [vmem:[#allocation2 + $0xa0] sm:$0xff]
        %v310 = vld [vmem:[#allocation2 + $0xa8] sm:$0xff]
        %v311 = vld [vmem:[#allocation2 + $0xb0] sm:$0xff]
        %v312 = vld [vmem:[#allocation2 + $0xb8] sm:$0xff]
        %v313 = vld [vmem:[#allocation2 + $0xc0] sm:$0xff]
        %v314 = vld [vmem:[#allocation2 + $0xc8] sm:$0xff]
        %v315 = vld [vmem:[#allocation2 + $0xd0] sm:$0xff]
        %v316 = vld [vmem:[#allocation2 + $0xd8] sm:$0xff]
        %v317 = vld [vmem:[#allocation2 + $0xe0] sm:$0xff]
        %v318 = vld [vmem:[#allocation2 + $0xe8] sm:$0xff]
        %v319 = vld [vmem:[#allocation2 + $0xf0] sm:$0xff]
        %v320 = vld [vmem:[#allocation2 + $0xf8] sm:$0xff]
        %v321 = vld [vmem:[#allocation2 + $0x100] sm:$0xff]
        %v322 = vld [vmem:[#allocation2 + $0x108] sm:$0xff]
        %v323 = vld [vmem:[#allocation2 + $0x110] sm:$0xff]
        %v324 = vld [vmem:[#allocation2 + $0x118] sm:$0xff]
        %v325 = vld [vmem:[#allocation2 + $0x120] sm:$0xff]
        %v326 = vld [vmem:[#allocation2 + $0x128] sm:$0xff]
        %v327 = vld [vmem:[#allocation2 + $0x130] sm:$0xff]
        %v328 = vld [vmem:[#allocation2 + $0x138] sm:$0xff]
        %v329 = vld [vmem:[#allocation2 + $0x140] sm:$0xff]
        %v330 = vld [vmem:[#allocation2 + $0x148] sm:$0xff]
        %v331 = vld [vmem:[#allocation2 + $0x150] sm:$0xff]
        %v332 = vld [vmem:[#allocation2 + $0x158] sm:$0xff]
        %v333 = vld [vmem:[#allocation2 + $0x160] sm:$0xff]
        %v334 = vld [vmem:[#allocation2 + $0x168] sm:$0xff]
        %v335 = vld [vmem:[#allocation2 + $0x170] sm:$0xff]
        %v336 = vld [vmem:[#allocation2 + $0x178] sm:$0xff]
        %v337 = vld [vmem:[#allocation2 + $0x180] sm:$0xff]
        %v338 = vld [vmem:[#allocation2 + $0x188] sm:$0xff]
        %v339 = vld [vmem:[#allocation2 + $0x190] sm:$0xff]
        %v340 = vld [vmem:[#allocation2 + $0x198] sm:$0xff]
        %v341 = vld [vmem:[#allocation2 + $0x1a0] sm:$0xff]
        %v342 = vld [vmem:[#allocation2 + $0x1a8] sm:$0xff]
        %v343 = vld [vmem:[#allocation2 + $0x1b0] sm:$0xff]
        %v344 = vld [vmem:[#allocation2 + $0x1b8] sm:$0xff]
        %v345 = vld [vmem:[#allocation2 + $0x1c0] sm:$0xff]
        %v346 = vld [vmem:[#allocation2 + $0x1c8] sm:$0xff]
        %v347 = vld [vmem:[#allocation2 + $0x1d0] sm:$0xff]
        %v348 = vld [vmem:[#allocation2 + $0x1d8] sm:$0xff]
        %v349 = vld [vmem:[#allocation2 + $0x1e0] sm:$0xff]
        %v350 = vld [vmem:[#allocation2 + $0x1e8] sm:$0xff]
        %v351 = vld [vmem:[#allocation2 + $0x1f0] sm:$0xff]
        %v352 = vld [vmem:[#allocation2 + $0x1f8] sm:$0xff]
        %v353 = vld [vmem:[#allocation2 + $0x200] sm:$0xff]
        %v354 = vld [vmem:[#allocation2 + $0x208] sm:$0xff]
        %v355 = vld [vmem:[#allocation2 + $0x210] sm:$0xff]
        %v356 = vld [vmem:[#allocation2 + $0x218] sm:$0xff]
        %v357 = vld [vmem:[#allocation2 + $0x220] sm:$0xff]
        %v358 = vld [vmem:[#allocation2 + $0x228] sm:$0xff]
        %v359 = vld [vmem:[#allocation2 + $0x230] sm:$0xff]
        %v360 = vld [vmem:[#allocation2 + $0x238] sm:$0xff]
        %v361 = vld [vmem:[#allocation2 + $0x240] sm:$0xff]
        %v362 = vld [vmem:[#allocation2 + $0x248] sm:$0xff]
        %v363 = vld [vmem:[#allocation2 + $0x250] sm:$0xff]
        %v364 = vld [vmem:[#allocation2 + $0x258] sm:$0xff]
        %v365 = vld [vmem:[#allocation2 + $0x260] sm:$0xff]
        %v366 = vld [vmem:[#allocation2 + $0x268] sm:$0xff]
        %v367 = vld [vmem:[#allocation2 + $0x270] sm:$0xff]
        %v368 = vld [vmem:[#allocation2 + $0x278] sm:$0xff]
        %v369 = vld [vmem:[#allocation2 + $0x280] sm:$0xff]
        %v370 = vld [vmem:[#allocation2 + $0x288] sm:$0xff]
        %v371 = vld [vmem:[#allocation2 + $0x290] sm:$0xff]
        %v372 = vld [vmem:[#allocation2 + $0x298] sm:$0xff]
        %v373 = vld [vmem:[#allocation2 + $0x2a0] sm:$0xff]
        %v374 = vld [vmem:[#allocation2 + $0x2a8] sm:$0xff]
        %v375 = vld [vmem:[#allocation2 + $0x2b0] sm:$0xff]
        %v376 = vld [vmem:[#allocation2 + $0x2b8] sm:$0xff]
        %v377 = vld [vmem:[#allocation2 + $0x2c0] sm:$0xff]
        %v378 = vld [vmem:[#allocation2 + $0x2c8] sm:$0xff]
        %v379 = vld [vmem:[#allocation2 + $0x2d0] sm:$0xff]
        %v380 = vld [vmem:[#allocation2 + $0x2d8] sm:$0xff]
        %v381 = vld [vmem:[#allocation2 + $0x2e0] sm:$0xff]
        %v382 = vld [vmem:[#allocation2 + $0x2e8] sm:$0xff]
        %v383 = vld [vmem:[#allocation2 + $0x2f0] sm:$0xff]
        %v384 = vld [vmem:[#allocation2 + $0x2f8] sm:$0xff]
        %v385 = vld [vmem:[#allocation2 + $0x300] sm:$0xff]
        %v386 = vld [vmem:[#allocation2 + $0x308] sm:$0xff]
        %v387 = vld [vmem:[#allocation2 + $0x310] sm:$0xff]
        %v388 = vld [vmem:[#allocation2 + $0x318] sm:$0xff]
        %v389 = vld [vmem:[#allocation2 + $0x320] sm:$0xff]
        %v390 = vld [vmem:[#allocation2 + $0x328] sm:$0xff]
        %v391 = vld [vmem:[#allocation2 + $0x330] sm:$0xff]
        %v392 = vld [vmem:[#allocation2 + $0x338] sm:$0xff]
        %v393 = vld [vmem:[#allocation2 + $0x340] sm:$0xff]
        %v394 = vld [vmem:[#allocation2 + $0x348] sm:$0xff]
        %v395 = vld [vmem:[#allocation2 + $0x350] sm:$0xff]
        %v396 = vld [vmem:[#allocation2 + $0x358] sm:$0xff]
        %v397 = vld [vmem:[#allocation2 + $0x360] sm:$0xff]
        %v398 = vld [vmem:[#allocation2 + $0x368] sm:$0xff]
        %v399 = vld [vmem:[#allocation2 + $0x370] sm:$0xff]
        %v400 = vld [vmem:[#allocation2 + $0x378] sm:$0xff]
        %v401 = vld [vmem:[#allocation2 + $0x380] sm:$0xff]
        %v402 = vld [vmem:[#allocation2 + $0x388] sm:$0xff]
        %v403 = vld [vmem:[#allocation2 + $0x390] sm:$0xff]
        %v404 = vld [vmem:[#allocation2 + $0x398] sm:$0xff]
        %v405 = vld [vmem:[#allocation2 + $0x3a0] sm:$0xff]
        %v406 = vld [vmem:[#allocation2 + $0x3a8] sm:$0xff]
        %v407 = vld [vmem:[#allocation2 + $0x3b0] sm:$0xff]
        %v408 = vld [vmem:[#allocation2 + $0x3b8] sm:$0xff]
        %v409 = vld [vmem:[#allocation2 + $0x3c0] sm:$0xff]
        %v410 = vld [vmem:[#allocation2 + $0x3c8] sm:$0xff]
        %v411 = vld [vmem:[#allocation2 + $0x3d0] sm:$0xff]
        %v412 = vld [vmem:[#allocation2 + $0x3d8] sm:$0xff]
        %v413 = vld [vmem:[#allocation2 + $0x3e0] sm:$0xff]
        %v414 = vld [vmem:[#allocation2 + $0x3e8] sm:$0xff]
        %v415 = vld [vmem:[#allocation2 + $0x3f0] sm:$0xff]
        %v416 = vld [vmem:[#allocation2 + $0x3f8] sm:$0xff]
        %v419 = vlaneseq
        %v420 = vshrl.u32 %v419, 7
        %v421 = vsub.s32 0, %v420
        %v422 = vrot.slane %v286, %v421
        %v423 = vlaneseq
        %v424 = vshrl.u32 %v423, 7
        %v425 = vsub.s32 1, %v424
        %v426 = vrot.slane %v286, %v425
        %v427 = vlaneseq
        %v428 = vshrl.u32 %v427, 7
        %v429 = vsub.s32 2, %v428
        %v430 = vrot.slane %v286, %v429
        %v431 = vlaneseq
        %v432 = vshrl.u32 %v431, 7
        %v433 = vsub.s32 3, %v432
        %v434 = vrot.slane %v286, %v433
        %v435 = vlaneseq
        %v436 = vshrl.u32 %v435, 7
        %v437 = vsub.s32 4, %v436
        %v438 = vrot.slane %v286, %v437
        %v439 = vlaneseq
        %v440 = vshrl.u32 %v439, 7
        %v441 = vsub.s32 5, %v440
        %v442 = vrot.slane %v286, %v441
        %v443 = vlaneseq
        %v444 = vshrl.u32 %v443, 7
        %v445 = vsub.s32 6, %v444
        %v446 = vrot.slane %v286, %v445
        %v447 = vlaneseq
        %v448 = vshrl.u32 %v447, 7
        %v449 = vsub.s32 7, %v448
        %v450 = vrot.slane %v286, %v449
        %v451 = vlaneseq
        %v452 = vshrl.u32 %v451, 7
        %v453 = vsub.s32 0, %v452
        %v454 = vrot.slane %v287, %v453
        %v455 = vlaneseq
        %v456 = vshrl.u32 %v455, 7
        %v457 = vsub.s32 1, %v456
        %v458 = vrot.slane %v287, %v457
        %v459 = vlaneseq
        %v460 = vshrl.u32 %v459, 7
        %v461 = vsub.s32 2, %v460
        %v462 = vrot.slane %v287, %v461
        %v463 = vlaneseq
        %v464 = vshrl.u32 %v463, 7
        %v465 = vsub.s32 3, %v464
        %v466 = vrot.slane %v287, %v465
        %v467 = vlaneseq
        %v468 = vshrl.u32 %v467, 7
        %v469 = vsub.s32 4, %v468
        %v470 = vrot.slane %v287, %v469
        %v471 = vlaneseq
        %v472 = vshrl.u32 %v471, 7
        %v473 = vsub.s32 5, %v472
        %v474 = vrot.slane %v287, %v473
        %v475 = vlaneseq
        %v476 = vshrl.u32 %v475, 7
        %v477 = vsub.s32 6, %v476
        %v478 = vrot.slane %v287, %v477
        %v479 = vlaneseq
        %v480 = vshrl.u32 %v479, 7
        %v481 = vsub.s32 7, %v480
        %v482 = vrot.slane %v287, %v481
        %v501 = vunpack.c.l.b16 %v282
        %v502 = vunpack.c.l.b16 %v283
        %v503 = vpack.c.b16 %v502, %v501
        %v633 = vunpack.c.l.b16 %v289
        %v634 = vunpack.c.h.b16 %v289
        %v635 = vunpack.c.l.b16 %v290
        %v636 = vunpack.c.h.b16 %v290
        %v637 = vunpack.c.l.b16 %v291
        %v638 = vunpack.c.h.b16 %v291
        %v639 = vunpack.c.l.b16 %v292
        %v640 = vunpack.c.h.b16 %v292
        %v641 = vunpack.c.l.b16 %v293
        %v642 = vunpack.c.h.b16 %v293
        %v643 = vunpack.c.l.b16 %v294
        %v644 = vunpack.c.h.b16 %v294
        %v645 = vunpack.c.l.b16 %v295
        %v646 = vunpack.c.h.b16 %v295
        %v647 = vunpack.c.l.b16 %v296
        %v648 = vunpack.c.h.b16 %v296
        %v649 = vunpack.c.l.b16 %v297
        %v650 = vunpack.c.h.b16 %v297
        %v651 = vunpack.c.l.b16 %v298
        %v652 = vunpack.c.h.b16 %v298
        %v653 = vunpack.c.l.b16 %v299
        %v654 = vunpack.c.h.b16 %v299
        %v655 = vunpack.c.l.b16 %v300
        %v656 = vunpack.c.h.b16 %v300
        %v657 = vunpack.c.l.b16 %v301
        %v658 = vunpack.c.h.b16 %v301
        %v659 = vunpack.c.l.b16 %v302
        %v660 = vunpack.c.h.b16 %v302
        %v661 = vunpack.c.l.b16 %v303
        %v662 = vunpack.c.h.b16 %v303
        %v663 = vunpack.c.l.b16 %v304
        %v664 = vunpack.c.h.b16 %v304
        %v665 = vunpack.c.l.b16 %v305
        %v666 = vunpack.c.h.b16 %v305
        %v667 = vunpack.c.l.b16 %v306
        %v668 = vunpack.c.h.b16 %v306
        %v669 = vunpack.c.l.b16 %v307
        %v670 = vunpack.c.h.b16 %v307
        %v671 = vunpack.c.l.b16 %v308
        %v672 = vunpack.c.h.b16 %v308
        %v673 = vunpack.c.l.b16 %v309
        %v674 = vunpack.c.h.b16 %v309
        %v675 = vunpack.c.l.b16 %v310
        %v676 = vunpack.c.h.b16 %v310
        %v677 = vunpack.c.l.b16 %v311
        %v678 = vunpack.c.h.b16 %v311
        %v679 = vunpack.c.l.b16 %v312
        %v680 = vunpack.c.h.b16 %v312
        %v681 = vunpack.c.l.b16 %v313
        %v682 = vunpack.c.h.b16 %v313
        %v683 = vunpack.c.l.b16 %v314
        %v684 = vunpack.c.h.b16 %v314
        %v685 = vunpack.c.l.b16 %v315
        %v686 = vunpack.c.h.b16 %v315
        %v687 = vunpack.c.l.b16 %v316
        %v688 = vunpack.c.h.b16 %v316
        %v689 = vunpack.c.l.b16 %v317
        %v690 = vunpack.c.h.b16 %v317
        %v691 = vunpack.c.l.b16 %v318
        %v692 = vunpack.c.h.b16 %v318
        %v693 = vunpack.c.l.b16 %v319
        %v694 = vunpack.c.h.b16 %v319
        %v695 = vunpack.c.l.b16 %v320
        %v696 = vunpack.c.h.b16 %v320
        %v697 = vunpack.c.l.b16 %v321
        %v698 = vunpack.c.h.b16 %v321
        %v699 = vunpack.c.l.b16 %v322
        %v700 = vunpack.c.h.b16 %v322
        %v701 = vunpack.c.l.b16 %v323
        %v702 = vunpack.c.h.b16 %v323
        %v703 = vunpack.c.l.b16 %v324
        %v704 = vunpack.c.h.b16 %v324
        %v705 = vunpack.c.l.b16 %v325
        %v706 = vunpack.c.h.b16 %v325
        %v707 = vunpack.c.l.b16 %v326
        %v708 = vunpack.c.h.b16 %v326
        %v709 = vunpack.c.l.b16 %v327
        %v710 = vunpack.c.h.b16 %v327
        %v711 = vunpack.c.l.b16 %v328
        %v712 = vunpack.c.h.b16 %v328
        %v713 = vunpack.c.l.b16 %v329
        %v714 = vunpack.c.h.b16 %v329
        %v715 = vunpack.c.l.b16 %v330
        %v716 = vunpack.c.h.b16 %v330
        %v717 = vunpack.c.l.b16 %v331
        %v718 = vunpack.c.h.b16 %v331
        %v719 = vunpack.c.l.b16 %v332
        %v720 = vunpack.c.h.b16 %v332
        %v721 = vunpack.c.l.b16 %v333
        %v722 = vunpack.c.h.b16 %v333
        %v723 = vunpack.c.l.b16 %v334
        %v724 = vunpack.c.h.b16 %v334
        %v725 = vunpack.c.l.b16 %v335
        %v726 = vunpack.c.h.b16 %v335
        %v727 = vunpack.c.l.b16 %v336
        %v728 = vunpack.c.h.b16 %v336
        %v729 = vunpack.c.l.b16 %v337
        %v730 = vunpack.c.h.b16 %v337
        %v731 = vunpack.c.l.b16 %v338
        %v732 = vunpack.c.h.b16 %v338
        %v733 = vunpack.c.l.b16 %v339
        %v734 = vunpack.c.h.b16 %v339
        %v735 = vunpack.c.l.b16 %v340
        %v736 = vunpack.c.h.b16 %v340
        %v737 = vunpack.c.l.b16 %v341
        %v738 = vunpack.c.h.b16 %v341
        %v739 = vunpack.c.l.b16 %v342
        %v740 = vunpack.c.h.b16 %v342
        %v741 = vunpack.c.l.b16 %v343
        %v742 = vunpack.c.h.b16 %v343
        %v743 = vunpack.c.l.b16 %v344
        %v744 = vunpack.c.h.b16 %v344
        %v745 = vunpack.c.l.b16 %v345
        %v746 = vunpack.c.h.b16 %v345
        %v747 = vunpack.c.l.b16 %v346
        %v748 = vunpack.c.h.b16 %v346
        %v749 = vunpack.c.l.b16 %v347
        %v750 = vunpack.c.h.b16 %v347
        %v751 = vunpack.c.l.b16 %v348
        %v752 = vunpack.c.h.b16 %v348
        %v753 = vunpack.c.l.b16 %v349
        %v754 = vunpack.c.h.b16 %v349
        %v755 = vunpack.c.l.b16 %v350
        %v756 = vunpack.c.h.b16 %v350
        %v757 = vunpack.c.l.b16 %v351
        %v758 = vunpack.c.h.b16 %v351
        %v759 = vunpack.c.l.b16 %v352
        %v760 = vunpack.c.h.b16 %v352
        %v761 = vunpack.c.l.b16 %v353
        %v762 = vunpack.c.h.b16 %v353
        %v763 = vunpack.c.l.b16 %v354
        %v764 = vunpack.c.h.b16 %v354
        %v765 = vunpack.c.l.b16 %v355
        %v766 = vunpack.c.h.b16 %v355
        %v767 = vunpack.c.l.b16 %v356
        %v768 = vunpack.c.h.b16 %v356
        %v769 = vunpack.c.l.b16 %v357
        %v770 = vunpack.c.h.b16 %v357
        %v771 = vunpack.c.l.b16 %v358
        %v772 = vunpack.c.h.b16 %v358
        %v773 = vunpack.c.l.b16 %v359
        %v774 = vunpack.c.h.b16 %v359
        %v775 = vunpack.c.l.b16 %v360
        %v776 = vunpack.c.h.b16 %v360
        %v777 = vunpack.c.l.b16 %v361
        %v778 = vunpack.c.h.b16 %v361
        %v779 = vunpack.c.l.b16 %v362
        %v780 = vunpack.c.h.b16 %v362
        %v781 = vunpack.c.l.b16 %v363
        %v782 = vunpack.c.h.b16 %v363
        %v783 = vunpack.c.l.b16 %v364
        %v784 = vunpack.c.h.b16 %v364
        %v785 = vunpack.c.l.b16 %v365
        %v786 = vunpack.c.h.b16 %v365
        %v787 = vunpack.c.l.b16 %v366
        %v788 = vunpack.c.h.b16 %v366
        %v789 = vunpack.c.l.b16 %v367
        %v790 = vunpack.c.h.b16 %v367
        %v791 = vunpack.c.l.b16 %v368
        %v792 = vunpack.c.h.b16 %v368
        %v793 = vunpack.c.l.b16 %v369
        %v794 = vunpack.c.h.b16 %v369
        %v795 = vunpack.c.l.b16 %v370
        %v796 = vunpack.c.h.b16 %v370
        %v797 = vunpack.c.l.b16 %v371
        %v798 = vunpack.c.h.b16 %v371
        %v799 = vunpack.c.l.b16 %v372
        %v800 = vunpack.c.h.b16 %v372
        %v801 = vunpack.c.l.b16 %v373
        %v802 = vunpack.c.h.b16 %v373
        %v803 = vunpack.c.l.b16 %v374
        %v804 = vunpack.c.h.b16 %v374
        %v805 = vunpack.c.l.b16 %v375
        %v806 = vunpack.c.h.b16 %v375
        %v807 = vunpack.c.l.b16 %v376
        %v808 = vunpack.c.h.b16 %v376
        %v809 = vunpack.c.l.b16 %v377
        %v810 = vunpack.c.h.b16 %v377
        %v811 = vunpack.c.l.b16 %v378
        %v812 = vunpack.c.h.b16 %v378
        %v813 = vunpack.c.l.b16 %v379
        %v814 = vunpack.c.h.b16 %v379
        %v815 = vunpack.c.l.b16 %v380
        %v816 = vunpack.c.h.b16 %v380
        %v817 = vunpack.c.l.b16 %v381
        %v818 = vunpack.c.h.b16 %v381
        %v819 = vunpack.c.l.b16 %v382
        %v820 = vunpack.c.h.b16 %v382
        %v821 = vunpack.c.l.b16 %v383
        %v822 = vunpack.c.h.b16 %v383
        %v823 = vunpack.c.l.b16 %v384
        %v824 = vunpack.c.h.b16 %v384
        %v825 = vunpack.c.l.b16 %v385
        %v826 = vunpack.c.h.b16 %v385
        %v827 = vunpack.c.l.b16 %v386
        %v828 = vunpack.c.h.b16 %v386
        %v829 = vunpack.c.l.b16 %v387
        %v830 = vunpack.c.h.b16 %v387
        %v831 = vunpack.c.l.b16 %v388
        %v832 = vunpack.c.h.b16 %v388
        %v833 = vunpack.c.l.b16 %v389
        %v834 = vunpack.c.h.b16 %v389
        %v835 = vunpack.c.l.b16 %v390
        %v836 = vunpack.c.h.b16 %v390
        %v837 = vunpack.c.l.b16 %v391
        %v838 = vunpack.c.h.b16 %v391
        %v839 = vunpack.c.l.b16 %v392
        %v840 = vunpack.c.h.b16 %v392
        %v841 = vunpack.c.l.b16 %v393
        %v842 = vunpack.c.h.b16 %v393
        %v843 = vunpack.c.l.b16 %v394
        %v844 = vunpack.c.h.b16 %v394
        %v845 = vunpack.c.l.b16 %v395
        %v846 = vunpack.c.h.b16 %v395
        %v847 = vunpack.c.l.b16 %v396
        %v848 = vunpack.c.h.b16 %v396
        %v849 = vunpack.c.l.b16 %v397
        %v850 = vunpack.c.h.b16 %v397
        %v851 = vunpack.c.l.b16 %v398
        %v852 = vunpack.c.h.b16 %v398
        %v853 = vunpack.c.l.b16 %v399
        %v854 = vunpack.c.h.b16 %v399
        %v855 = vunpack.c.l.b16 %v400
        %v856 = vunpack.c.h.b16 %v400
        %v857 = vunpack.c.l.b16 %v401
        %v858 = vunpack.c.h.b16 %v401
        %v859 = vunpack.c.l.b16 %v402
        %v860 = vunpack.c.h.b16 %v402
        %v861 = vunpack.c.l.b16 %v403
        %v862 = vunpack.c.h.b16 %v403
        %v863 = vunpack.c.l.b16 %v404
        %v864 = vunpack.c.h.b16 %v404
        %v865 = vunpack.c.l.b16 %v405
        %v866 = vunpack.c.h.b16 %v405
        %v867 = vunpack.c.l.b16 %v406
        %v868 = vunpack.c.h.b16 %v406
        %v869 = vunpack.c.l.b16 %v407
        %v870 = vunpack.c.h.b16 %v407
        %v871 = vunpack.c.l.b16 %v408
        %v872 = vunpack.c.h.b16 %v408
        %v873 = vunpack.c.l.b16 %v409
        %v874 = vunpack.c.h.b16 %v409
        %v875 = vunpack.c.l.b16 %v410
        %v876 = vunpack.c.h.b16 %v410
        %v877 = vunpack.c.l.b16 %v411
        %v878 = vunpack.c.h.b16 %v411
        %v879 = vunpack.c.l.b16 %v412
        %v880 = vunpack.c.h.b16 %v412
        %v881 = vunpack.c.l.b16 %v413
        %v882 = vunpack.c.h.b16 %v413
        %v883 = vunpack.c.l.b16 %v414
        %v884 = vunpack.c.h.b16 %v414
        %v885 = vunpack.c.l.b16 %v415
        %v886 = vunpack.c.h.b16 %v415
        %v887 = vunpack.c.l.b16 %v416
        %v888 = vunpack.c.h.b16 %v416
        %v889 = vpack.c.b16 %v649, %v633
        %v890 = vpack.c.b16 %v650, %v634
        %v891 = vpack.c.b16 %v651, %v635
        %v892 = vpack.c.b16 %v652, %v636
        %v893 = vpack.c.b16 %v653, %v637
        %v894 = vpack.c.b16 %v654, %v638
        %v895 = vpack.c.b16 %v655, %v639
        %v896 = vpack.c.b16 %v656, %v640
        %v897 = vpack.c.b16 %v657, %v641
        %v898 = vpack.c.b16 %v658, %v642
        %v899 = vpack.c.b16 %v659, %v643
        %v900 = vpack.c.b16 %v660, %v644
        %v901 = vpack.c.b16 %v661, %v645
        %v902 = vpack.c.b16 %v662, %v646
        %v903 = vpack.c.b16 %v663, %v647
        %v904 = vpack.c.b16 %v664, %v648
        %v905 = vpack.c.b16 %v681, %v665
        %v906 = vpack.c.b16 %v682, %v666
        %v907 = vpack.c.b16 %v683, %v667
        %v908 = vpack.c.b16 %v684, %v668
        %v909 = vpack.c.b16 %v685, %v669
        %v910 = vpack.c.b16 %v686, %v670
        %v911 = vpack.c.b16 %v687, %v671
        %v912 = vpack.c.b16 %v688, %v672
        %v913 = vpack.c.b16 %v689, %v673
        %v914 = vpack.c.b16 %v690, %v674
        %v915 = vpack.c.b16 %v691, %v675
        %v916 = vpack.c.b16 %v692, %v676
        %v917 = vpack.c.b16 %v693, %v677
        %v918 = vpack.c.b16 %v694, %v678
        %v919 = vpack.c.b16 %v695, %v679
        %v920 = vpack.c.b16 %v696, %v680
        %v921 = vpack.c.b16 %v713, %v697
        %v922 = vpack.c.b16 %v714, %v698
        %v923 = vpack.c.b16 %v715, %v699
        %v924 = vpack.c.b16 %v716, %v700
        %v925 = vpack.c.b16 %v717, %v701
        %v926 = vpack.c.b16 %v718, %v702
        %v927 = vpack.c.b16 %v719, %v703
        %v928 = vpack.c.b16 %v720, %v704
        %v929 = vpack.c.b16 %v721, %v705
        %v930 = vpack.c.b16 %v722, %v706
        %v931 = vpack.c.b16 %v723, %v707
        %v932 = vpack.c.b16 %v724, %v708
        %v933 = vpack.c.b16 %v725, %v709
        %v934 = vpack.c.b16 %v726, %v710
        %v935 = vpack.c.b16 %v727, %v711
        %v936 = vpack.c.b16 %v728, %v712
        %v937 = vpack.c.b16 %v745, %v729
        %v938 = vpack.c.b16 %v746, %v730
        %v939 = vpack.c.b16 %v747, %v731
        %v940 = vpack.c.b16 %v748, %v732
        %v941 = vpack.c.b16 %v749, %v733
        %v942 = vpack.c.b16 %v750, %v734
        %v943 = vpack.c.b16 %v751, %v735
        %v944 = vpack.c.b16 %v752, %v736
        %v945 = vpack.c.b16 %v753, %v737
        %v946 = vpack.c.b16 %v754, %v738
        %v947 = vpack.c.b16 %v755, %v739
        %v948 = vpack.c.b16 %v756, %v740
        %v949 = vpack.c.b16 %v757, %v741
        %v950 = vpack.c.b16 %v758, %v742
        %v951 = vpack.c.b16 %v759, %v743
        %v952 = vpack.c.b16 %v760, %v744
        %v953 = vpack.c.b16 %v777, %v761
        %v954 = vpack.c.b16 %v778, %v762
        %v955 = vpack.c.b16 %v779, %v763
        %v956 = vpack.c.b16 %v780, %v764
        %v957 = vpack.c.b16 %v781, %v765
        %v958 = vpack.c.b16 %v782, %v766
        %v959 = vpack.c.b16 %v783, %v767
        %v960 = vpack.c.b16 %v784, %v768
        %v961 = vpack.c.b16 %v785, %v769
        %v962 = vpack.c.b16 %v786, %v770
        %v963 = vpack.c.b16 %v787, %v771
        %v964 = vpack.c.b16 %v788, %v772
        %v965 = vpack.c.b16 %v789, %v773
        %v966 = vpack.c.b16 %v790, %v774
        %v967 = vpack.c.b16 %v791, %v775
        %v968 = vpack.c.b16 %v792, %v776
        %v969 = vpack.c.b16 %v809, %v793
        %v970 = vpack.c.b16 %v810, %v794
        %v971 = vpack.c.b16 %v811, %v795
        %v972 = vpack.c.b16 %v812, %v796
        %v973 = vpack.c.b16 %v813, %v797
        %v974 = vpack.c.b16 %v814, %v798
        %v975 = vpack.c.b16 %v815, %v799
        %v976 = vpack.c.b16 %v816, %v800
        %v977 = vpack.c.b16 %v817, %v801
        %v978 = vpack.c.b16 %v818, %v802
        %v979 = vpack.c.b16 %v819, %v803
        %v980 = vpack.c.b16 %v820, %v804
        %v981 = vpack.c.b16 %v821, %v805
        %v982 = vpack.c.b16 %v822, %v806
        %v983 = vpack.c.b16 %v823, %v807
        %v984 = vpack.c.b16 %v824, %v808
        %v985 = vpack.c.b16 %v841, %v825
        %v986 = vpack.c.b16 %v842, %v826
        %v987 = vpack.c.b16 %v843, %v827
        %v988 = vpack.c.b16 %v844, %v828
        %v989 = vpack.c.b16 %v845, %v829
        %v990 = vpack.c.b16 %v846, %v830
        %v991 = vpack.c.b16 %v847, %v831
        %v992 = vpack.c.b16 %v848, %v832
        %v993 = vpack.c.b16 %v849, %v833
        %v994 = vpack.c.b16 %v850, %v834
        %v995 = vpack.c.b16 %v851, %v835
        %v996 = vpack.c.b16 %v852, %v836
        %v997 = vpack.c.b16 %v853, %v837
        %v998 = vpack.c.b16 %v854, %v838
        %v999 = vpack.c.b16 %v855, %v839
        %v1000 = vpack.c.b16 %v856, %v840
        %v1001 = vpack.c.b16 %v873, %v857
        %v1002 = vpack.c.b16 %v874, %v858
        %v1003 = vpack.c.b16 %v875, %v859
        %v1004 = vpack.c.b16 %v876, %v860
        %v1005 = vpack.c.b16 %v877, %v861
        %v1006 = vpack.c.b16 %v878, %v862
        %v1007 = vpack.c.b16 %v879, %v863
        %v1008 = vpack.c.b16 %v880, %v864
        %v1009 = vpack.c.b16 %v881, %v865
        %v1010 = vpack.c.b16 %v882, %v866
        %v1011 = vpack.c.b16 %v883, %v867
        %v1012 = vpack.c.b16 %v884, %v868
        %v1013 = vpack.c.b16 %v885, %v869
        %v1014 = vpack.c.b16 %v886, %v870
        %v1015 = vpack.c.b16 %v887, %v871
        %v1016 = vpack.c.b16 %v888, %v872
        %1145 = vmatprep.subr.bf16.mxu0 %v890
        %1146 = vmatpush1.bf16.msra.mxu0 %v889
        %1147 = vmatprep.subr.bf16.mxu0 %v906
        %1148 = vmatpush1.bf16.msra.mxu0 %v905
        %1149 = vmatprep.subr.bf16.mxu0 %v922
        %1150 = vmatpush1.bf16.msra.mxu0 %v921
        %1151 = vmatprep.subr.bf16.mxu0 %v938
        %1152 = vmatpush1.bf16.msra.mxu0 %v937
        %1153 = vmatprep.subr.bf16.mxu0 %v954
        %1154 = vmatpush1.bf16.msra.mxu0 %v953
        %1155 = vmatprep.subr.bf16.mxu0 %v970
        %1156 = vmatpush1.bf16.msra.mxu0 %v969
        %1157 = vmatprep.subr.bf16.mxu0 %v986
        %1158 = vmatpush1.bf16.msra.mxu0 %v985
        %1159 = vmatprep.subr.bf16.mxu0 %v1002
        %1160 = vmatpush1.bf16.msra.mxu0 %v1001
        %1161 = vmatprep.subr.bf16.mxu0 0
        %1162 = vmatpush1.bf16.msra.mxu0 0
        %1163 = vmatprep.subr.bf16.mxu0 0
        %1164 = vmatpush1.bf16.msra.mxu0 0
        %1165 = vmatprep.subr.bf16.mxu0 0
        %1166 = vmatpush1.bf16.msra.mxu0 0
        %1167 = vmatprep.subr.bf16.mxu0 0
        %1168 = vmatpush1.bf16.msra.mxu0 0
        %1169 = vmatprep.subr.bf16.mxu0 0
        %1170 = vmatpush1.bf16.msra.mxu0 0
        %1171 = vmatprep.subr.bf16.mxu0 0
        %1172 = vmatpush1.bf16.msra.mxu0 0
        %1173 = vmatprep.subr.bf16.mxu0 0
        %1174 = vmatpush1.bf16.msra.mxu0 0
        %1175 = vmatprep.subr.bf16.mxu0 0
        %1176 = vmatpush1.bf16.msra.mxu0 0
        %1177 = vmatprep.mubr.bf16.mxu0 0
        %1178 = vmatmul.mubr.bf16.gmra.mrb[0].mxu0 %v503
        %v1179 = vpop.f32.mrb[0].mxu0
        %v1180 = vadd.f32 %v422, %v1179
        %v1181 = vpop.f32.mrb[0].mxu0
        %v1182 = vadd.f32 %v426, %v1181
        %v1183 = vpop.f32.mrb[0].mxu0
        %v1184 = vadd.f32 %v422, %v1183
        %v1185 = vpop.f32.mrb[0].mxu0
        %v1186 = vadd.f32 %v426, %v1185
        %1187 = vdwg.mxu0
        %1188 = vmatprep.subr.bf16.mxu0 %v892
        %1189 = vmatpush1.bf16.msra.mxu0 %v891
        %1190 = vmatprep.subr.bf16.mxu0 %v908
        %1191 = vmatpush1.bf16.msra.mxu0 %v907
        %1192 = vmatprep.subr.bf16.mxu0 %v924
        %1193 = vmatpush1.bf16.msra.mxu0 %v923
        %1194 = vmatprep.subr.bf16.mxu0 %v940
        %1195 = vmatpush1.bf16.msra.mxu0 %v939
        %1196 = vmatprep.subr.bf16.mxu0 %v956
        %1197 = vmatpush1.bf16.msra.mxu0 %v955
        %1198 = vmatprep.subr.bf16.mxu0 %v972
        %1199 = vmatpush1.bf16.msra.mxu0 %v971
        %1200 = vmatprep.subr.bf16.mxu0 %v988
        %1201 = vmatpush1.bf16.msra.mxu0 %v987
        %1202 = vmatprep.subr.bf16.mxu0 %v1004
        %1203 = vmatpush1.bf16.msra.mxu0 %v1003
        %1204 = vmatprep.subr.bf16.mxu0 0
        %1205 = vmatpush1.bf16.msra.mxu0 0
        %1206 = vmatprep.subr.bf16.mxu0 0
        %1207 = vmatpush1.bf16.msra.mxu0 0
        %1208 = vmatprep.subr.bf16.mxu0 0
        %1209 = vmatpush1.bf16.msra.mxu0 0
        %1210 = vmatprep.subr.bf16.mxu0 0
        %1211 = vmatpush1.bf16.msra.mxu0 0
        %1212 = vmatprep.subr.bf16.mxu0 0
        %1213 = vmatpush1.bf16.msra.mxu0 0
        %1214 = vmatprep.subr.bf16.mxu0 0
        %1215 = vmatpush1.bf16.msra.mxu0 0
        %1216 = vmatprep.subr.bf16.mxu0 0
        %1217 = vmatpush1.bf16.msra.mxu0 0
        %1218 = vmatprep.subr.bf16.mxu0 0
        %1219 = vmatpush1.bf16.msra.mxu0 0
        %1220 = vmatprep.mubr.bf16.mxu0 0
        %1221 = vmatmul.mubr.bf16.gmra.mrb[0].mxu0 %v503
        %v1222 = vpop.f32.mrb[0].mxu0
        %v1223 = vadd.f32 %v430, %v1222
        %v1224 = vpop.f32.mrb[0].mxu0
        %v1225 = vadd.f32 %v434, %v1224
        %v1226 = vpop.f32.mrb[0].mxu0
        %v1227 = vadd.f32 %v430, %v1226
        %v1228 = vpop.f32.mrb[0].mxu0
        %v1229 = vadd.f32 %v434, %v1228
        %1230 = vdwg.mxu0
        %1231 = vmatprep.subr.bf16.mxu0 %v894
        %1232 = vmatpush1.bf16.msra.mxu0 %v893
        %1233 = vmatprep.subr.bf16.mxu0 %v910
        %1234 = vmatpush1.bf16.msra.mxu0 %v909
        %1235 = vmatprep.subr.bf16.mxu0 %v926
        %1236 = vmatpush1.bf16.msra.mxu0 %v925
        %1237 = vmatprep.subr.bf16.mxu0 %v942
        %1238 = vmatpush1.bf16.msra.mxu0 %v941
        %1239 = vmatprep.subr.bf16.mxu0 %v958
        %1240 = vmatpush1.bf16.msra.mxu0 %v957
        %1241 = vmatprep.subr.bf16.mxu0 %v974
        %1242 = vmatpush1.bf16.msra.mxu0 %v973
        %1243 = vmatprep.subr.bf16.mxu0 %v990
        %1244 = vmatpush1.bf16.msra.mxu0 %v989
        %1245 = vmatprep.subr.bf16.mxu0 %v1006
        %1246 = vmatpush1.bf16.msra.mxu0 %v1005
        %1247 = vmatprep.subr.bf16.mxu0 0
        %1248 = vmatpush1.bf16.msra.mxu0 0
        %1249 = vmatprep.subr.bf16.mxu0 0
        %1250 = vmatpush1.bf16.msra.mxu0 0
        %1251 = vmatprep.subr.bf16.mxu0 0
        %1252 = vmatpush1.bf16.msra.mxu0 0
        %1253 = vmatprep.subr.bf16.mxu0 0
        %1254 = vmatpush1.bf16.msra.mxu0 0
        %1255 = vmatprep.subr.bf16.mxu0 0
        %1256 = vmatpush1.bf16.msra.mxu0 0
        %1257 = vmatprep.subr.bf16.mxu0 0
        %1258 = vmatpush1.bf16.msra.mxu0 0
        %1259 = vmatprep.subr.bf16.mxu0 0
        %1260 = vmatpush1.bf16.msra.mxu0 0
        %1261 = vmatprep.subr.bf16.mxu0 0
        %1262 = vmatpush1.bf16.msra.mxu0 0
        %1263 = vmatprep.mubr.bf16.mxu0 0
        %1264 = vmatmul.mubr.bf16.gmra.mrb[0].mxu0 %v503
        %v1265 = vpop.f32.mrb[0].mxu0
        %v1266 = vadd.f32 %v438, %v1265
        %v1267 = vpop.f32.mrb[0].mxu0
        %v1268 = vadd.f32 %v442, %v1267
        %v1269 = vpop.f32.mrb[0].mxu0
        %v1270 = vadd.f32 %v438, %v1269
        %v1271 = vpop.f32.mrb[0].mxu0
        %v1272 = vadd.f32 %v442, %v1271
        %1273 = vdwg.mxu0
        %1274 = vmatprep.subr.bf16.mxu0 %v896
        %1275 = vmatpush1.bf16.msra.mxu0 %v895
        %1276 = vmatprep.subr.bf16.mxu0 %v912
        %1277 = vmatpush1.bf16.msra.mxu0 %v911
        %1278 = vmatprep.subr.bf16.mxu0 %v928
        %1279 = vmatpush1.bf16.msra.mxu0 %v927
        %1280 = vmatprep.subr.bf16.mxu0 %v944
        %1281 = vmatpush1.bf16.msra.mxu0 %v943
        %1282 = vmatprep.subr.bf16.mxu0 %v960
        %1283 = vmatpush1.bf16.msra.mxu0 %v959
        %1284 = vmatprep.subr.bf16.mxu0 %v976
        %1285 = vmatpush1.bf16.msra.mxu0 %v975
        %1286 = vmatprep.subr.bf16.mxu0 %v992
        %1287 = vmatpush1.bf16.msra.mxu0 %v991
        %1288 = vmatprep.subr.bf16.mxu0 %v1008
        %1289 = vmatpush1.bf16.msra.mxu0 %v1007
        %1290 = vmatprep.subr.bf16.mxu0 0
        %1291 = vmatpush1.bf16.msra.mxu0 0
        %1292 = vmatprep.subr.bf16.mxu0 0
        %1293 = vmatpush1.bf16.msra.mxu0 0
        %1294 = vmatprep.subr.bf16.mxu0 0
        %1295 = vmatpush1.bf16.msra.mxu0 0
        %1296 = vmatprep.subr.bf16.mxu0 0
        %1297 = vmatpush1.bf16.msra.mxu0 0
        %1298 = vmatprep.subr.bf16.mxu0 0
        %1299 = vmatpush1.bf16.msra.mxu0 0
        %1300 = vmatprep.subr.bf16.mxu0 0
        %1301 = vmatpush1.bf16.msra.mxu0 0
        %1302 = vmatprep.subr.bf16.mxu0 0
        %1303 = vmatpush1.bf16.msra.mxu0 0
        %1304 = vmatprep.subr.bf16.mxu0 0
        %1305 = vmatpush1.bf16.msra.mxu0 0
        %1306 = vmatprep.mubr.bf16.mxu0 0
        %1307 = vmatmul.mubr.bf16.gmra.mrb[0].mxu0 %v503
        %v1308 = vpop.f32.mrb[0].mxu0
        %v1309 = vadd.f32 %v446, %v1308
        %v1310 = vpop.f32.mrb[0].mxu0
        %v1311 = vadd.f32 %v450, %v1310
        %v1312 = vpop.f32.mrb[0].mxu0
        %v1313 = vadd.f32 %v446, %v1312
        %v1314 = vpop.f32.mrb[0].mxu0
        %v1315 = vadd.f32 %v450, %v1314
        %1316 = vdwg.mxu0
        %1317 = vmatprep.subr.bf16.mxu0 %v898
        %1318 = vmatpush1.bf16.msra.mxu0 %v897
        %1319 = vmatprep.subr.bf16.mxu0 %v914
        %1320 = vmatpush1.bf16.msra.mxu0 %v913
        %1321 = vmatprep.subr.bf16.mxu0 %v930
        %1322 = vmatpush1.bf16.msra.mxu0 %v929
        %1323 = vmatprep.subr.bf16.mxu0 %v946
        %1324 = vmatpush1.bf16.msra.mxu0 %v945
        %1325 = vmatprep.subr.bf16.mxu0 %v962
        %1326 = vmatpush1.bf16.msra.mxu0 %v961
        %1327 = vmatprep.subr.bf16.mxu0 %v978
        %1328 = vmatpush1.bf16.msra.mxu0 %v977
        %1329 = vmatprep.subr.bf16.mxu0 %v994
        %1330 = vmatpush1.bf16.msra.mxu0 %v993
        %1331 = vmatprep.subr.bf16.mxu0 %v1010
        %1332 = vmatpush1.bf16.msra.mxu0 %v1009
        %1333 = vmatprep.subr.bf16.mxu0 0
        %1334 = vmatpush1.bf16.msra.mxu0 0
        %1335 = vmatprep.subr.bf16.mxu0 0
        %1336 = vmatpush1.bf16.msra.mxu0 0
        %1337 = vmatprep.subr.bf16.mxu0 0
        %1338 = vmatpush1.bf16.msra.mxu0 0
        %1339 = vmatprep.subr.bf16.mxu0 0
        %1340 = vmatpush1.bf16.msra.mxu0 0
        %1341 = vmatprep.subr.bf16.mxu0 0
        %1342 = vmatpush1.bf16.msra.mxu0 0
        %1343 = vmatprep.subr.bf16.mxu0 0
        %1344 = vmatpush1.bf16.msra.mxu0 0
        %1345 = vmatprep.subr.bf16.mxu0 0
        %1346 = vmatpush1.bf16.msra.mxu0 0
        %1347 = vmatprep.subr.bf16.mxu0 0
        %1348 = vmatpush1.bf16.msra.mxu0 0
        %1349 = vmatprep.mubr.bf16.mxu0 0
        %1350 = vmatmul.mubr.bf16.gmra.mrb[0].mxu0 %v503
        %v1351 = vpop.f32.mrb[0].mxu0
        %v1352 = vadd.f32 %v454, %v1351
        %v1353 = vpop.f32.mrb[0].mxu0
        %v1354 = vadd.f32 %v458, %v1353
        %v1355 = vpop.f32.mrb[0].mxu0
        %v1356 = vadd.f32 %v454, %v1355
        %v1357 = vpop.f32.mrb[0].mxu0
        %v1358 = vadd.f32 %v458, %v1357
        %1359 = vdwg.mxu0
        %1360 = vmatprep.subr.bf16.mxu0 %v900
        %1361 = vmatpush1.bf16.msra.mxu0 %v899
        %1362 = vmatprep.subr.bf16.mxu0 %v916
        %1363 = vmatpush1.bf16.msra.mxu0 %v915
        %1364 = vmatprep.subr.bf16.mxu0 %v932
        %1365 = vmatpush1.bf16.msra.mxu0 %v931
        %1366 = vmatprep.subr.bf16.mxu0 %v948
        %1367 = vmatpush1.bf16.msra.mxu0 %v947
        %1368 = vmatprep.subr.bf16.mxu0 %v964
        %1369 = vmatpush1.bf16.msra.mxu0 %v963
        %1370 = vmatprep.subr.bf16.mxu0 %v980
        %1371 = vmatpush1.bf16.msra.mxu0 %v979
        %1372 = vmatprep.subr.bf16.mxu0 %v996
        %1373 = vmatpush1.bf16.msra.mxu0 %v995
        %1374 = vmatprep.subr.bf16.mxu0 %v1012
        %1375 = vmatpush1.bf16.msra.mxu0 %v1011
        %1376 = vmatprep.subr.bf16.mxu0 0
        %1377 = vmatpush1.bf16.msra.mxu0 0
        %1378 = vmatprep.subr.bf16.mxu0 0
        %1379 = vmatpush1.bf16.msra.mxu0 0
        %1380 = vmatprep.subr.bf16.mxu0 0
        %1381 = vmatpush1.bf16.msra.mxu0 0
        %1382 = vmatprep.subr.bf16.mxu0 0
        %1383 = vmatpush1.bf16.msra.mxu0 0
        %1384 = vmatprep.subr.bf16.mxu0 0
        %1385 = vmatpush1.bf16.msra.mxu0 0
        %1386 = vmatprep.subr.bf16.mxu0 0
        %1387 = vmatpush1.bf16.msra.mxu0 0
        %1388 = vmatprep.subr.bf16.mxu0 0
        %1389 = vmatpush1.bf16.msra.mxu0 0
        %1390 = vmatprep.subr.bf16.mxu0 0
        %1391 = vmatpush1.bf16.msra.mxu0 0
        %1392 = vmatprep.mubr.bf16.mxu0 0
        %1393 = vmatmul.mubr.bf16.gmra.mrb[0].mxu0 %v503
        %v1394 = vpop.f32.mrb[0].mxu0
        %v1395 = vadd.f32 %v462, %v1394
        %v1396 = vpop.f32.mrb[0].mxu0
        %v1397 = vadd.f32 %v466, %v1396
        %v1398 = vpop.f32.mrb[0].mxu0
        %v1399 = vadd.f32 %v462, %v1398
        %v1400 = vpop.f32.mrb[0].mxu0
        %v1401 = vadd.f32 %v466, %v1400
        %1402 = vdwg.mxu0
        %1403 = vmatprep.subr.bf16.mxu0 %v902
        %1404 = vmatpush1.bf16.msra.mxu0 %v901
        %1405 = vmatprep.subr.bf16.mxu0 %v918
        %1406 = vmatpush1.bf16.msra.mxu0 %v917
        %1407 = vmatprep.subr.bf16.mxu0 %v934
        %1408 = vmatpush1.bf16.msra.mxu0 %v933
        %1409 = vmatprep.subr.bf16.mxu0 %v950
        %1410 = vmatpush1.bf16.msra.mxu0 %v949
        %1411 = vmatprep.subr.bf16.mxu0 %v966
        %1412 = vmatpush1.bf16.msra.mxu0 %v965
        %1413 = vmatprep.subr.bf16.mxu0 %v982
        %1414 = vmatpush1.bf16.msra.mxu0 %v981
        %1415 = vmatprep.subr.bf16.mxu0 %v998
        %1416 = vmatpush1.bf16.msra.mxu0 %v997
        %1417 = vmatprep.subr.bf16.mxu0 %v1014
        %1418 = vmatpush1.bf16.msra.mxu0 %v1013
        %1419 = vmatprep.subr.bf16.mxu0 0
        %1420 = vmatpush1.bf16.msra.mxu0 0
        %1421 = vmatprep.subr.bf16.mxu0 0
        %1422 = vmatpush1.bf16.msra.mxu0 0
        %1423 = vmatprep.subr.bf16.mxu0 0
        %1424 = vmatpush1.bf16.msra.mxu0 0
        %1425 = vmatprep.subr.bf16.mxu0 0
        %1426 = vmatpush1.bf16.msra.mxu0 0
        %1427 = vmatprep.subr.bf16.mxu0 0
        %1428 = vmatpush1.bf16.msra.mxu0 0
        %1429 = vmatprep.subr.bf16.mxu0 0
        %1430 = vmatpush1.bf16.msra.mxu0 0
        %1431 = vmatprep.subr.bf16.mxu0 0
        %1432 = vmatpush1.bf16.msra.mxu0 0
        %1433 = vmatprep.subr.bf16.mxu0 0
        %1434 = vmatpush1.bf16.msra.mxu0 0
        %1435 = vmatprep.mubr.bf16.mxu0 0
        %1436 = vmatmul.mubr.bf16.gmra.mrb[0].mxu0 %v503
        %v1437 = vpop.f32.mrb[0].mxu0
        %v1438 = vadd.f32 %v470, %v1437
        %v1439 = vpop.f32.mrb[0].mxu0
        %v1440 = vadd.f32 %v474, %v1439
        %v1441 = vpop.f32.mrb[0].mxu0
        %v1442 = vadd.f32 %v470, %v1441
        %v1443 = vpop.f32.mrb[0].mxu0
        %v1444 = vadd.f32 %v474, %v1443
        %1445 = vdwg.mxu0
        %1446 = vmatprep.subr.bf16.mxu0 %v904
        %1447 = vmatpush1.bf16.msra.mxu0 %v903
        %1448 = vmatprep.subr.bf16.mxu0 %v920
        %1449 = vmatpush1.bf16.msra.mxu0 %v919
        %1450 = vmatprep.subr.bf16.mxu0 %v936
        %1451 = vmatpush1.bf16.msra.mxu0 %v935
        %1452 = vmatprep.subr.bf16.mxu0 %v952
        %1453 = vmatpush1.bf16.msra.mxu0 %v951
        %1454 = vmatprep.subr.bf16.mxu0 %v968
        %1455 = vmatpush1.bf16.msra.mxu0 %v967
        %1456 = vmatprep.subr.bf16.mxu0 %v984
        %1457 = vmatpush1.bf16.msra.mxu0 %v983
        %1458 = vmatprep.subr.bf16.mxu0 %v1000
        %1459 = vmatpush1.bf16.msra.mxu0 %v999
        %1460 = vmatprep.subr.bf16.mxu0 %v1016
        %1461 = vmatpush1.bf16.msra.mxu0 %v1015
        %1462 = vmatprep.subr.bf16.mxu0 0
        %1463 = vmatpush1.bf16.msra.mxu0 0
        %1464 = vmatprep.subr.bf16.mxu0 0
        %1465 = vmatpush1.bf16.msra.mxu0 0
        %1466 = vmatprep.subr.bf16.mxu0 0
        %1467 = vmatpush1.bf16.msra.mxu0 0
        %1468 = vmatprep.subr.bf16.mxu0 0
        %1469 = vmatpush1.bf16.msra.mxu0 0
        %1470 = vmatprep.subr.bf16.mxu0 0
        %1471 = vmatpush1.bf16.msra.mxu0 0
        %1472 = vmatprep.subr.bf16.mxu0 0
        %1473 = vmatpush1.bf16.msra.mxu0 0
        %1474 = vmatprep.subr.bf16.mxu0 0
        %1475 = vmatpush1.bf16.msra.mxu0 0
        %1476 = vmatprep.subr.bf16.mxu0 0
        %1477 = vmatpush1.bf16.msra.mxu0 0
        %1478 = vmatprep.mubr.bf16.mxu0 0
        %1479 = vmatmul.mubr.bf16.gmra.mrb[0].mxu0 %v503
        %v1480 = vpop.f32.mrb[0].mxu0
        %v1481 = vadd.f32 %v478, %v1480
        %v1482 = vpop.f32.mrb[0].mxu0
        %v1483 = vadd.f32 %v482, %v1482
        %v1484 = vpop.f32.mrb[0].mxu0
        %v1485 = vadd.f32 %v478, %v1484
        %v1486 = vpop.f32.mrb[0].mxu0
        %v1487 = vadd.f32 %v482, %v1486
        %1488 = vdwg.mxu0
        %v1489 = vld [vmem:[#allocation5] sm:$0xff]
        %v1490 = vld [vmem:[#allocation5 + $0x8] sm:$0xff]
        %v1491 = vld [vmem:[#allocation5 + $0x10] sm:$0xff]
        %v1492 = vld [vmem:[#allocation5 + $0x18] sm:$0xff]
        %v1493 = vld [vmem:[#allocation5 + $0x20] sm:$0xff]
        %v1494 = vld [vmem:[#allocation5 + $0x28] sm:$0xff]
        %v1495 = vld [vmem:[#allocation5 + $0x30] sm:$0xff]
        %v1496 = vld [vmem:[#allocation5 + $0x38] sm:$0xff]
        %v1497 = vlaneseq
        %v1498 = vand.u32 %v1497, 127
        %v1507 = vunpack.c.l.b16 %v1489
        %v1508 = vunpack.c.h.b16 %v1489
        %v1509 = vunpack.c.l.b16 %v1490
        %v1510 = vunpack.c.h.b16 %v1490
        %v1511 = vunpack.c.l.b16 %v1491
        %v1512 = vunpack.c.h.b16 %v1491
        %v1513 = vunpack.c.l.b16 %v1492
        %v1514 = vunpack.c.h.b16 %v1492
        %v1515 = vunpack.c.l.b16 %v1493
        %v1516 = vunpack.c.h.b16 %v1493
        %v1517 = vunpack.c.l.b16 %v1494
        %v1518 = vunpack.c.h.b16 %v1494
        %v1519 = vunpack.c.l.b16 %v1495
        %v1520 = vunpack.c.h.b16 %v1495
        %v1521 = vunpack.c.l.b16 %v1496
        %v1522 = vunpack.c.h.b16 %v1496
        %v1523 = vpack.c.b16 %v1509, %v1507
        %v1524 = vpack.c.b16 %v1510, %v1508
        %v1525 = vpack.c.b16 %v1513, %v1511
        %v1526 = vpack.c.b16 %v1514, %v1512
        %v1527 = vpack.c.b16 %v1517, %v1515
        %v1528 = vpack.c.b16 %v1518, %v1516
        %v1529 = vpack.c.b16 %v1521, %v1519
        %v1530 = vpack.c.b16 %v1522, %v1520
        %vm1539 = vcmask 523264
        %v1541 = vsel %vm1539, 0, 0
        %1543 = vmatprep.subr.bf16.mxu0 %v1524
        %1544 = vmatpush1.bf16.msra.mxu0 %v1523
        %1545 = vmatprep.subr.bf16.mxu0 %v1526
        %1546 = vmatpush1.bf16.msra.mxu0 %v1525
        %1547 = vmatprep.subr.bf16.mxu0 %v1528
        %1548 = vmatpush1.bf16.msra.mxu0 %v1527
        %1549 = vmatprep.subr.bf16.mxu0 %v1530
        %1550 = vmatpush1.bf16.msra.mxu0 %v1529
        %1551 = vmatprep.subr.bf16.mxu0 0
        %1552 = vmatpush1.bf16.msra.mxu0 0
        %1553 = vmatprep.subr.bf16.mxu0 0
        %1554 = vmatpush1.bf16.msra.mxu0 0
        %1555 = vmatprep.subr.bf16.mxu0 0
        %1556 = vmatpush1.bf16.msra.mxu0 0
        %1557 = vmatprep.subr.bf16.mxu0 0
        %1558 = vmatpush1.bf16.msra.mxu0 0
        %1559 = vmatprep.subr.bf16.mxu0 0
        %1560 = vmatpush1.bf16.msra.mxu0 0
        %1561 = vmatprep.subr.bf16.mxu0 0
        %1562 = vmatpush1.bf16.msra.mxu0 0
        %1563 = vmatprep.subr.bf16.mxu0 0
        %1564 = vmatpush1.bf16.msra.mxu0 0
        %1565 = vmatprep.subr.bf16.mxu0 0
        %1566 = vmatpush1.bf16.msra.mxu0 0
        %1567 = vmatprep.subr.bf16.mxu0 0
        %1568 = vmatpush1.bf16.msra.mxu0 0
        %1569 = vmatprep.subr.bf16.mxu0 0
        %1570 = vmatpush1.bf16.msra.mxu0 0
        %1571 = vmatprep.subr.bf16.mxu0 0
        %1572 = vmatpush1.bf16.msra.mxu0 0
        %1573 = vmatprep.subr.bf16.mxu0 0
        %1574 = vmatpush1.bf16.msra.mxu0 0
        %1575 = vmatprep.mubr.bf16.mxu0 0
        %1576 = vmatmul.mubr.bf16.gmra.mrb[0].mxu0 %v1541
        %v1577 = vpop.f32.mrb[0].mxu0
        %v1578 = vadd.f32 0.0, %v1577
        %v1579 = vpop.f32.mrb[0].mxu0
        %v1580 = vadd.f32 0.0, %v1579
        %v1581 = vpop.f32.mrb[0].mxu0
        %v1582 = vadd.f32 0.0, %v1581
        %v1583 = vpop.f32.mrb[0].mxu0
        %v1584 = vadd.f32 0.0, %v1583
        %1585 = vdwg.mxu0
        %v1586 = vadd.f32 %v1180, %v1578
        %v1587 = vadd.f32 %v1182, %v1580
        %v1588 = vadd.f32 %v1184, %v1582
        %v1589 = vadd.f32 %v1186, %v1584
        %v1590 = vxor.u32 %v1586, 2147483648
        %v1591 = vxor.u32 %v1588, 2147483648
        %v1592 = vmul.f32 %v1590, 1.442695
        %v1593 = vpow.pop %v1592
        %v1594 = vmul.f32 %v1591, 1.442695
        %v1595 = vpow.pop %v1594
        %v1596 = vadd.f32 %v1593, 1.0
        %v1597 = vadd.f32 %v1595, 1.0
        %v1598 = vrcp.pop %v1596
        %v1599 = vmul.f32 1.0, %v1598
        %v1600 = vrcp.pop %v1597
        %v1601 = vmul.f32 1.0, %v1600
        %v1602 = vtanh.pop %v1587
        %v1603 = vtanh.pop %v1589
        %v1604 = vxor.u32 %v1587, 2147483648
        %v1605 = vxor.u32 %v1589, 2147483648
        %v1606 = vmul.f32 %v1604, 1.442695
        %v1607 = vpow.pop %v1606
        %v1608 = vmul.f32 %v1605, 1.442695
        %v1609 = vpow.pop %v1608
        %v1610 = vadd.f32 %v1607, 1.0
        %v1611 = vadd.f32 %v1609, 1.0
        %v1612 = vrcp.pop %v1610
        %v1613 = vmul.f32 1.0, %v1612
        %v1614 = vrcp.pop %v1611
        %v1615 = vmul.f32 1.0, %v1614
        %v1616 = vmul.f32 %v1599, 0.0
        %v1617 = vmul.f32 %v1601, 0.0
        %v1618 = vmul.f32 %v1599, %v1602
        %v1619 = vmul.f32 %v1601, %v1603
        %1622 = vrot.lane.b32.xlu0 %v1618, 64
        %v1623 = vpop.permute.xlu0 %1622
        %1624 = vrot.lane.b32.xlu0 %v1619, 64
        %v1625 = vpop.permute.xlu0 %1624
        %v1628 = vadd.f32 %v1616, %v1623
        %v1629 = vadd.f32 %v1617, %v1625
        %v1630 = vtanh.pop %v1628
        %v1631 = vtanh.pop %v1629
        %v1632 = vmul.f32 %v1613, %v1630
        %v1633 = vmul.f32 %v1615, %v1631
        %vm1634 = vcmp.lt.s32.totalorder %v1498, 32
        %1636 = vset.pattern.permute.xlu0 16
        %1637 = vperm.xlu0 %1636, %v284
        %v1638 = vpop.permute.xlu0 %1637
        %1641 = vset.pattern.permute.xlu0 16
        %1642 = vperm.xlu0 %1641, %v285
        %v1643 = vpop.permute.xlu0 %1642
        %1645 = vset.pattern.permute.xlu0 23
        %1646 = vperm.xlu0 %1645, %v284
        %v1647 = vpop.permute.xlu0 %1646
        %1649 = vset.pattern.permute.xlu0 23
        %1650 = vperm.xlu0 %1649, %v285
        %v1651 = vpop.permute.xlu0 %1650
        %v1653 = vsel %vm1634, %v1638, %v1647
        %v1654 = vsel %vm1634, %v1643, %v1651
        %1657 = vrot.lane.b32.xlu0 %v1632, 64
        %v1658 = vpop.permute.xlu0 %1657
        %1659 = vrot.lane.b32.xlu0 %v1633, 64
        %v1660 = vpop.permute.xlu0 %1659
        %v1663 = vmul.f32 %v1653, %v1658
        %v1664 = vmul.f32 %v1654, %v1660
        %v1665 = vsub.f32 1.0, %v1653
        %v1666 = vsub.f32 1.0, %v1654
        %v1667 = vmul.f32 %v1665, 0.0
        %v1668 = vmul.f32 %v1666, 0.0
        %v1669 = vadd.f32 %v1663, %v1667
        %v1670 = vadd.f32 %v1664, %v1668
        %1673 = vrot.lane.b32.xlu0 %v1628, 64
        %v1674 = vpop.permute.xlu0 %1673
        %1675 = vrot.lane.b32.xlu0 %v1629, 64
        %v1676 = vpop.permute.xlu0 %1675
        %v1679 = vmul.f32 %v1653, %v1674
        %v1680 = vmul.f32 %v1654, %v1676
        %v1681 = vadd.f32 %v1679, %v1667
        %v1682 = vadd.f32 %v1680, %v1668
        %v1683 = vpack.c.bf16 %v1670, %v1669
        %v1685 = vsel %vm1539, %v1683, 0
        %1687 = vmatprep.subr.bf16.mxu0 %v1524
        %1688 = vmatpush1.bf16.msra.mxu0 %v1523
        %1689 = vmatprep.subr.bf16.mxu0 %v1526
        %1690 = vmatpush1.bf16.msra.mxu0 %v1525
        %1691 = vmatprep.subr.bf16.mxu0 %v1528
        %1692 = vmatpush1.bf16.msra.mxu0 %v1527
        %1693 = vmatprep.subr.bf16.mxu0 %v1530
        %1694 = vmatpush1.bf16.msra.mxu0 %v1529
        %1695 = vmatprep.subr.bf16.mxu0 0
        %1696 = vmatpush1.bf16.msra.mxu0 0
        %1697 = vmatprep.subr.bf16.mxu0 0
        %1698 = vmatpush1.bf16.msra.mxu0 0
        %1699 = vmatprep.subr.bf16.mxu0 0
        %1700 = vmatpush1.bf16.msra.mxu0 0
        %1701 = vmatprep.subr.bf16.mxu0 0
        %1702 = vmatpush1.bf16.msra.mxu0 0
        %1703 = vmatprep.subr.bf16.mxu0 0
        %1704 = vmatpush1.bf16.msra.mxu0 0
        %1705 = vmatprep.subr.bf16.mxu0 0
        %1706 = vmatpush1.bf16.msra.mxu0 0
        %1707 = vmatprep.subr.bf16.mxu0 0
        %1708 = vmatpush1.bf16.msra.mxu0 0
        %1709 = vmatprep.subr.bf16.mxu0 0
        %1710 = vmatpush1.bf16.msra.mxu0 0
        %1711 = vmatprep.subr.bf16.mxu0 0
        %1712 = vmatpush1.bf16.msra.mxu0 0
        %1713 = vmatprep.subr.bf16.mxu0 0
        %1714 = vmatpush1.bf16.msra.mxu0 0
        %1715 = vmatprep.subr.bf16.mxu0 0
        %1716 = vmatpush1.bf16.msra.mxu0 0
        %1717 = vmatprep.subr.bf16.mxu0 0
        %1718 = vmatpush1.bf16.msra.mxu0 0
        %1719 = vmatprep.mubr.bf16.mxu0 0
        %1720 = vmatmul.mubr.bf16.gmra.mrb[0].mxu0 %v1685
        %v1721 = vpop.f32.mrb[0].mxu0
        %v1722 = vadd.f32 0.0, %v1721
        %v1723 = vpop.f32.mrb[0].mxu0
        %v1724 = vadd.f32 0.0, %v1723
        %v1725 = vpop.f32.mrb[0].mxu0
        %v1726 = vadd.f32 0.0, %v1725
        %v1727 = vpop.f32.mrb[0].mxu0
        %v1728 = vadd.f32 0.0, %v1727
        %1729 = vdwg.mxu0
        %v1730 = vadd.f32 %v1223, %v1722
        %v1731 = vadd.f32 %v1225, %v1724
        %v1732 = vadd.f32 %v1227, %v1726
        %v1733 = vadd.f32 %v1229, %v1728
        %v1734 = vxor.u32 %v1730, 2147483648
        %v1735 = vxor.u32 %v1732, 2147483648
        %v1736 = vmul.f32 %v1734, 1.442695
        %v1737 = vpow.pop %v1736
        %v1738 = vmul.f32 %v1735, 1.442695
        %v1739 = vpow.pop %v1738
        %v1740 = vadd.f32 %v1737, 1.0
        %v1741 = vadd.f32 %v1739, 1.0
        %v1742 = vrcp.pop %v1740
        %v1743 = vmul.f32 1.0, %v1742
        %v1744 = vrcp.pop %v1741
        %v1745 = vmul.f32 1.0, %v1744
        %v1746 = vtanh.pop %v1731
        %v1747 = vtanh.pop %v1733
        %v1748 = vxor.u32 %v1731, 2147483648
        %v1749 = vxor.u32 %v1733, 2147483648
        %v1750 = vmul.f32 %v1748, 1.442695
        %v1751 = vpow.pop %v1750
        %v1752 = vmul.f32 %v1749, 1.442695
        %v1753 = vpow.pop %v1752
        %v1754 = vadd.f32 %v1751, 1.0
        %v1755 = vadd.f32 %v1753, 1.0
        %v1756 = vrcp.pop %v1754
        %v1757 = vmul.f32 1.0, %v1756
        %v1758 = vrcp.pop %v1755
        %v1759 = vmul.f32 1.0, %v1758
        %1762 = vrot.lane.b32.xlu0 %v1681, 64
        %v1763 = vpop.permute.xlu0 %1762
        %1764 = vrot.lane.b32.xlu0 %v1682, 64
        %v1765 = vpop.permute.xlu0 %1764
        %v1768 = vmul.f32 %v1743, %v1763
        %v1769 = vmul.f32 %v1745, %v1765
        %v1770 = vmul.f32 %v1743, %v1746
        %v1771 = vmul.f32 %v1745, %v1747
        %1774 = vrot.lane.b32.xlu0 %v1770, 64
        %v1775 = vpop.permute.xlu0 %1774
        %1776 = vrot.lane.b32.xlu0 %v1771, 64
        %v1777 = vpop.permute.xlu0 %1776
        %v1780 = vadd.f32 %v1768, %v1775
        %v1781 = vadd.f32 %v1769, %v1777
        %v1782 = vtanh.pop %v1780
        %v1783 = vtanh.pop %v1781
        %v1784 = vmul.f32 %v1757, %v1782
        %v1785 = vmul.f32 %v1759, %v1783
        %1786 = vset.pattern.permute.xlu0 17
        %1787 = vperm.xlu0 %1786, %v284
        %v1788 = vpop.permute.xlu0 %1787
        %1790 = vset.pattern.permute.xlu0 17
        %1791 = vperm.xlu0 %1790, %v285
        %v1792 = vpop.permute.xlu0 %1791
        %1794 = vset.pattern.permute.xlu0 22
        %1795 = vperm.xlu0 %1794, %v284
        %v1796 = vpop.permute.xlu0 %1795
        %1798 = vset.pattern.permute.xlu0 22
        %1799 = vperm.xlu0 %1798, %v285
        %v1800 = vpop.permute.xlu0 %1799
        %v1802 = vsel %vm1634, %v1788, %v1796
        %v1803 = vsel %vm1634, %v1792, %v1800
        %1806 = vrot.lane.b32.xlu0 %v1784, 64
        %v1807 = vpop.permute.xlu0 %1806
        %1808 = vrot.lane.b32.xlu0 %v1785, 64
        %v1809 = vpop.permute.xlu0 %1808
        %v1812 = vmul.f32 %v1802, %v1807
        %v1813 = vmul.f32 %v1803, %v1809
        %v1814 = vsub.f32 1.0, %v1802
        %v1815 = vsub.f32 1.0, %v1803
        %v1816 = vmul.f32 %v1814, %v1669
        %v1817 = vmul.f32 %v1815, %v1670
        %v1818 = vadd.f32 %v1812, %v1816
        %v1819 = vadd.f32 %v1813, %v1817
        %1822 = vrot.lane.b32.xlu0 %v1780, 64
        %v1823 = vpop.permute.xlu0 %1822
        %1824 = vrot.lane.b32.xlu0 %v1781, 64
        %v1825 = vpop.permute.xlu0 %1824
        %v1828 = vmul.f32 %v1802, %v1823
        %v1829 = vmul.f32 %v1803, %v1825
        %v1830 = vmul.f32 %v1814, %v1681
        %v1831 = vmul.f32 %v1815, %v1682
        %v1832 = vadd.f32 %v1828, %v1830
        %v1833 = vadd.f32 %v1829, %v1831
        %v1834 = vpack.c.bf16 %v1819, %v1818
        %v1836 = vsel %vm1539, %v1834, 0
        %1838 = vmatprep.subr.bf16.mxu0 %v1524
        %1839 = vmatpush1.bf16.msra.mxu0 %v1523
        %1840 = vmatprep.subr.bf16.mxu0 %v1526
        %1841 = vmatpush1.bf16.msra.mxu0 %v1525
        %1842 = vmatprep.subr.bf16.mxu0 %v1528
        %1843 = vmatpush1.bf16.msra.mxu0 %v1527
        %1844 = vmatprep.subr.bf16.mxu0 %v1530
        %1845 = vmatpush1.bf16.msra.mxu0 %v1529
        %1846 = vmatprep.subr.bf16.mxu0 0
        %1847 = vmatpush1.bf16.msra.mxu0 0
        %1848 = vmatprep.subr.bf16.mxu0 0
        %1849 = vmatpush1.bf16.msra.mxu0 0
        %1850 = vmatprep.subr.bf16.mxu0 0
        %1851 = vmatpush1.bf16.msra.mxu0 0
        %1852 = vmatprep.subr.bf16.mxu0 0
        %1853 = vmatpush1.bf16.msra.mxu0 0
        %1854 = vmatprep.subr.bf16.mxu0 0
        %1855 = vmatpush1.bf16.msra.mxu0 0
        %1856 = vmatprep.subr.bf16.mxu0 0
        %1857 = vmatpush1.bf16.msra.mxu0 0
        %1858 = vmatprep.subr.bf16.mxu0 0
        %1859 = vmatpush1.bf16.msra.mxu0 0
        %1860 = vmatprep.subr.bf16.mxu0 0
        %1861 = vmatpush1.bf16.msra.mxu0 0
        %1862 = vmatprep.subr.bf16.mxu0 0
        %1863 = vmatpush1.bf16.msra.mxu0 0
        %1864 = vmatprep.subr.bf16.mxu0 0
        %1865 = vmatpush1.bf16.msra.mxu0 0
        %1866 = vmatprep.subr.bf16.mxu0 0
        %1867 = vmatpush1.bf16.msra.mxu0 0
        %1868 = vmatprep.subr.bf16.mxu0 0
        %1869 = vmatpush1.bf16.msra.mxu0 0
        %1870 = vmatprep.mubr.bf16.mxu0 0
        %1871 = vmatmul.mubr.bf16.gmra.mrb[0].mxu0 %v1836
        %v1872 = vpop.f32.mrb[0].mxu0
        %v1873 = vadd.f32 0.0, %v1872
        %v1874 = vpop.f32.mrb[0].mxu0
        %v1875 = vadd.f32 0.0, %v1874
        %v1876 = vpop.f32.mrb[0].mxu0
        %v1877 = vadd.f32 0.0, %v1876
        %v1878 = vpop.f32.mrb[0].mxu0
        %v1879 = vadd.f32 0.0, %v1878
        %1880 = vdwg.mxu0
        %v1881 = vadd.f32 %v1266, %v1873
        %v1882 = vadd.f32 %v1268, %v1875
        %v1883 = vadd.f32 %v1270, %v1877
        %v1884 = vadd.f32 %v1272, %v1879
        %v1885 = vxor.u32 %v1881, 2147483648
        %v1886 = vxor.u32 %v1883, 2147483648
        %v1887 = vmul.f32 %v1885, 1.442695
        %v1888 = vpow.pop %v1887
        %v1889 = vmul.f32 %v1886, 1.442695
        %v1890 = vpow.pop %v1889
        %v1891 = vadd.f32 %v1888, 1.0
        %v1892 = vadd.f32 %v1890, 1.0
        %v1893 = vrcp.pop %v1891
        %v1894 = vmul.f32 1.0, %v1893
        %v1895 = vrcp.pop %v1892
        %v1896 = vmul.f32 1.0, %v1895
        %v1897 = vtanh.pop %v1882
        %v1898 = vtanh.pop %v1884
        %v1899 = vxor.u32 %v1882, 2147483648
        %v1900 = vxor.u32 %v1884, 2147483648
        %v1901 = vmul.f32 %v1899, 1.442695
        %v1902 = vpow.pop %v1901
        %v1903 = vmul.f32 %v1900, 1.442695
        %v1904 = vpow.pop %v1903
        %v1905 = vadd.f32 %v1902, 1.0
        %v1906 = vadd.f32 %v1904, 1.0
        %v1907 = vrcp.pop %v1905
        %v1908 = vmul.f32 1.0, %v1907
        %v1909 = vrcp.pop %v1906
        %v1910 = vmul.f32 1.0, %v1909
        %1913 = vrot.lane.b32.xlu0 %v1832, 64
        %v1914 = vpop.permute.xlu0 %1913
        %1915 = vrot.lane.b32.xlu0 %v1833, 64
        %v1916 = vpop.permute.xlu0 %1915
        %v1919 = vmul.f32 %v1894, %v1914
        %v1920 = vmul.f32 %v1896, %v1916
        %v1921 = vmul.f32 %v1894, %v1897
        %v1922 = vmul.f32 %v1896, %v1898
        %1925 = vrot.lane.b32.xlu0 %v1921, 64
        %v1926 = vpop.permute.xlu0 %1925
        %1927 = vrot.lane.b32.xlu0 %v1922, 64
        %v1928 = vpop.permute.xlu0 %1927
        %v1931 = vadd.f32 %v1919, %v1926
        %v1932 = vadd.f32 %v1920, %v1928
        %v1933 = vtanh.pop %v1931
        %v1934 = vtanh.pop %v1932
        %v1935 = vmul.f32 %v1908, %v1933
        %v1936 = vmul.f32 %v1910, %v1934
        %1937 = vset.pattern.permute.xlu0 18
        %1938 = vperm.xlu0 %1937, %v284
        %v1939 = vpop.permute.xlu0 %1938
        %1941 = vset.pattern.permute.xlu0 18
        %1942 = vperm.xlu0 %1941, %v285
        %v1943 = vpop.permute.xlu0 %1942
        %1945 = vset.pattern.permute.xlu0 21
        %1946 = vperm.xlu0 %1945, %v284
        %v1947 = vpop.permute.xlu0 %1946
        %1949 = vset.pattern.permute.xlu0 21
        %1950 = vperm.xlu0 %1949, %v285
        %v1951 = vpop.permute.xlu0 %1950
        %v1953 = vsel %vm1634, %v1939, %v1947
        %v1954 = vsel %vm1634, %v1943, %v1951
        %1957 = vrot.lane.b32.xlu0 %v1935, 64
        %v1958 = vpop.permute.xlu0 %1957
        %1959 = vrot.lane.b32.xlu0 %v1936, 64
        %v1960 = vpop.permute.xlu0 %1959
        %v1963 = vmul.f32 %v1953, %v1958
        %v1964 = vmul.f32 %v1954, %v1960
        %v1965 = vsub.f32 1.0, %v1953
        %v1966 = vsub.f32 1.0, %v1954
        %v1967 = vmul.f32 %v1965, %v1818
        %v1968 = vmul.f32 %v1966, %v1819
        %v1969 = vadd.f32 %v1963, %v1967
        %v1970 = vadd.f32 %v1964, %v1968
        %1973 = vrot.lane.b32.xlu0 %v1931, 64
        %v1974 = vpop.permute.xlu0 %1973
        %1975 = vrot.lane.b32.xlu0 %v1932, 64
        %v1976 = vpop.permute.xlu0 %1975
        %v1979 = vmul.f32 %v1953, %v1974
        %v1980 = vmul.f32 %v1954, %v1976
        %v1981 = vmul.f32 %v1965, %v1832
        %v1982 = vmul.f32 %v1966, %v1833
        %v1983 = vadd.f32 %v1979, %v1981
        %v1984 = vadd.f32 %v1980, %v1982
        %v1985 = vpack.c.bf16 %v1970, %v1969
        %v1987 = vsel %vm1539, %v1985, 0
        %1989 = vmatprep.subr.bf16.mxu0 %v1524
        %1990 = vmatpush1.bf16.msra.mxu0 %v1523
        %1991 = vmatprep.subr.bf16.mxu0 %v1526
        %1992 = vmatpush1.bf16.msra.mxu0 %v1525
        %1993 = vmatprep.subr.bf16.mxu0 %v1528
        %1994 = vmatpush1.bf16.msra.mxu0 %v1527
        %1995 = vmatprep.subr.bf16.mxu0 %v1530
        %1996 = vmatpush1.bf16.msra.mxu0 %v1529
        %1997 = vmatprep.subr.bf16.mxu0 0
        %1998 = vmatpush1.bf16.msra.mxu0 0
        %1999 = vmatprep.subr.bf16.mxu0 0
        %2000 = vmatpush1.bf16.msra.mxu0 0
        %2001 = vmatprep.subr.bf16.mxu0 0
        %2002 = vmatpush1.bf16.msra.mxu0 0
        %2003 = vmatprep.subr.bf16.mxu0 0
        %2004 = vmatpush1.bf16.msra.mxu0 0
        %2005 = vmatprep.subr.bf16.mxu0 0
        %2006 = vmatpush1.bf16.msra.mxu0 0
        %2007 = vmatprep.subr.bf16.mxu0 0
        %2008 = vmatpush1.bf16.msra.mxu0 0
        %2009 = vmatprep.subr.bf16.mxu0 0
        %2010 = vmatpush1.bf16.msra.mxu0 0
        %2011 = vmatprep.subr.bf16.mxu0 0
        %2012 = vmatpush1.bf16.msra.mxu0 0
        %2013 = vmatprep.subr.bf16.mxu0 0
        %2014 = vmatpush1.bf16.msra.mxu0 0
        %2015 = vmatprep.subr.bf16.mxu0 0
        %2016 = vmatpush1.bf16.msra.mxu0 0
        %2017 = vmatprep.subr.bf16.mxu0 0
        %2018 = vmatpush1.bf16.msra.mxu0 0
        %2019 = vmatprep.subr.bf16.mxu0 0
        %2020 = vmatpush1.bf16.msra.mxu0 0
        %2021 = vmatprep.mubr.bf16.mxu0 0
        %2022 = vmatmul.mubr.bf16.gmra.mrb[0].mxu0 %v1987
        %v2023 = vpop.f32.mrb[0].mxu0
        %v2024 = vadd.f32 0.0, %v2023
        %v2025 = vpop.f32.mrb[0].mxu0
        %v2026 = vadd.f32 0.0, %v2025
        %v2027 = vpop.f32.mrb[0].mxu0
        %v2028 = vadd.f32 0.0, %v2027
        %v2029 = vpop.f32.mrb[0].mxu0
        %v2030 = vadd.f32 0.0, %v2029
        %2031 = vdwg.mxu0
        %v2032 = vadd.f32 %v1309, %v2024
        %v2033 = vadd.f32 %v1311, %v2026
        %v2034 = vadd.f32 %v1313, %v2028
        %v2035 = vadd.f32 %v1315, %v2030
        %v2036 = vxor.u32 %v2032, 2147483648
        %v2037 = vxor.u32 %v2034, 2147483648
        %v2038 = vmul.f32 %v2036, 1.442695
        %v2039 = vpow.pop %v2038
        %v2040 = vmul.f32 %v2037, 1.442695
        %v2041 = vpow.pop %v2040
        %v2042 = vadd.f32 %v2039, 1.0
        %v2043 = vadd.f32 %v2041, 1.0
        %v2044 = vrcp.pop %v2042
        %v2045 = vmul.f32 1.0, %v2044
        %v2046 = vrcp.pop %v2043
        %v2047 = vmul.f32 1.0, %v2046
        %v2048 = vtanh.pop %v2033
        %v2049 = vtanh.pop %v2035
        %v2050 = vxor.u32 %v2033, 2147483648
        %v2051 = vxor.u32 %v2035, 2147483648
        %v2052 = vmul.f32 %v2050, 1.442695
        %v2053 = vpow.pop %v2052
        %v2054 = vmul.f32 %v2051, 1.442695
        %v2055 = vpow.pop %v2054
        %v2056 = vadd.f32 %v2053, 1.0
        %v2057 = vadd.f32 %v2055, 1.0
        %v2058 = vrcp.pop %v2056
        %v2059 = vmul.f32 1.0, %v2058
        %v2060 = vrcp.pop %v2057
        %v2061 = vmul.f32 1.0, %v2060
        %2064 = vrot.lane.b32.xlu0 %v1983, 64
        %v2065 = vpop.permute.xlu0 %2064
        %2066 = vrot.lane.b32.xlu0 %v1984, 64
        %v2067 = vpop.permute.xlu0 %2066
        %v2070 = vmul.f32 %v2045, %v2065
        %v2071 = vmul.f32 %v2047, %v2067
        %v2072 = vmul.f32 %v2045, %v2048
        %v2073 = vmul.f32 %v2047, %v2049
        %2076 = vrot.lane.b32.xlu0 %v2072, 64
        %v2077 = vpop.permute.xlu0 %2076
        %2078 = vrot.lane.b32.xlu0 %v2073, 64
        %v2079 = vpop.permute.xlu0 %2078
        %v2082 = vadd.f32 %v2070, %v2077
        %v2083 = vadd.f32 %v2071, %v2079
        %v2084 = vtanh.pop %v2082
        %v2085 = vtanh.pop %v2083
        %v2086 = vmul.f32 %v2059, %v2084
        %v2087 = vmul.f32 %v2061, %v2085
        %2088 = vset.pattern.permute.xlu0 19
        %2089 = vperm.xlu0 %2088, %v284
        %v2090 = vpop.permute.xlu0 %2089
        %2092 = vset.pattern.permute.xlu0 19
        %2093 = vperm.xlu0 %2092, %v285
        %v2094 = vpop.permute.xlu0 %2093
        %2096 = vset.pattern.permute.xlu0 20
        %2097 = vperm.xlu0 %2096, %v284
        %v2098 = vpop.permute.xlu0 %2097
        %2100 = vset.pattern.permute.xlu0 20
        %2101 = vperm.xlu0 %2100, %v285
        %v2102 = vpop.permute.xlu0 %2101
        %v2104 = vsel %vm1634, %v2090, %v2098
        %v2105 = vsel %vm1634, %v2094, %v2102
        %2108 = vrot.lane.b32.xlu0 %v2086, 64
        %v2109 = vpop.permute.xlu0 %2108
        %2110 = vrot.lane.b32.xlu0 %v2087, 64
        %v2111 = vpop.permute.xlu0 %2110
        %v2114 = vmul.f32 %v2104, %v2109
        %v2115 = vmul.f32 %v2105, %v2111
        %v2116 = vsub.f32 1.0, %v2104
        %v2117 = vsub.f32 1.0, %v2105
        %v2118 = vmul.f32 %v2116, %v1969
        %v2119 = vmul.f32 %v2117, %v1970
        %v2120 = vadd.f32 %v2114, %v2118
        %v2121 = vadd.f32 %v2115, %v2119
        %2124 = vrot.lane.b32.xlu0 %v2082, 64
        %v2125 = vpop.permute.xlu0 %2124
        %2126 = vrot.lane.b32.xlu0 %v2083, 64
        %v2127 = vpop.permute.xlu0 %2126
        %v2130 = vmul.f32 %v2104, %v2125
        %v2131 = vmul.f32 %v2105, %v2127
        %v2132 = vmul.f32 %v2116, %v1983
        %v2133 = vmul.f32 %v2117, %v1984
        %v2134 = vadd.f32 %v2130, %v2132
        %v2135 = vadd.f32 %v2131, %v2133
        %v2136 = vpack.c.bf16 %v2121, %v2120
        %v2138 = vsel %vm1539, %v2136, 0
        %2140 = vmatprep.subr.bf16.mxu0 %v1524
        %2141 = vmatpush1.bf16.msra.mxu0 %v1523
        %2142 = vmatprep.subr.bf16.mxu0 %v1526
        %2143 = vmatpush1.bf16.msra.mxu0 %v1525
        %2144 = vmatprep.subr.bf16.mxu0 %v1528
        %2145 = vmatpush1.bf16.msra.mxu0 %v1527
        %2146 = vmatprep.subr.bf16.mxu0 %v1530
        %2147 = vmatpush1.bf16.msra.mxu0 %v1529
        %2148 = vmatprep.subr.bf16.mxu0 0
        %2149 = vmatpush1.bf16.msra.mxu0 0
        %2150 = vmatprep.subr.bf16.mxu0 0
        %2151 = vmatpush1.bf16.msra.mxu0 0
        %2152 = vmatprep.subr.bf16.mxu0 0
        %2153 = vmatpush1.bf16.msra.mxu0 0
        %2154 = vmatprep.subr.bf16.mxu0 0
        %2155 = vmatpush1.bf16.msra.mxu0 0
        %2156 = vmatprep.subr.bf16.mxu0 0
        %2157 = vmatpush1.bf16.msra.mxu0 0
        %2158 = vmatprep.subr.bf16.mxu0 0
        %2159 = vmatpush1.bf16.msra.mxu0 0
        %2160 = vmatprep.subr.bf16.mxu0 0
        %2161 = vmatpush1.bf16.msra.mxu0 0
        %2162 = vmatprep.subr.bf16.mxu0 0
        %2163 = vmatpush1.bf16.msra.mxu0 0
        %2164 = vmatprep.subr.bf16.mxu0 0
        %2165 = vmatpush1.bf16.msra.mxu0 0
        %2166 = vmatprep.subr.bf16.mxu0 0
        %2167 = vmatpush1.bf16.msra.mxu0 0
        %2168 = vmatprep.subr.bf16.mxu0 0
        %2169 = vmatpush1.bf16.msra.mxu0 0
        %2170 = vmatprep.subr.bf16.mxu0 0
        %2171 = vmatpush1.bf16.msra.mxu0 0
        %2172 = vmatprep.mubr.bf16.mxu0 0
        %2173 = vmatmul.mubr.bf16.gmra.mrb[0].mxu0 %v2138
        %v2174 = vpop.f32.mrb[0].mxu0
        %v2175 = vadd.f32 0.0, %v2174
        %v2176 = vpop.f32.mrb[0].mxu0
        %v2177 = vadd.f32 0.0, %v2176
        %v2178 = vpop.f32.mrb[0].mxu0
        %v2179 = vadd.f32 0.0, %v2178
        %v2180 = vpop.f32.mrb[0].mxu0
        %v2181 = vadd.f32 0.0, %v2180
        %2182 = vdwg.mxu0
        %v2183 = vadd.f32 %v1352, %v2175
        %v2184 = vadd.f32 %v1354, %v2177
        %v2185 = vadd.f32 %v1356, %v2179
        %v2186 = vadd.f32 %v1358, %v2181
        %v2187 = vxor.u32 %v2183, 2147483648
        %v2188 = vxor.u32 %v2185, 2147483648
        %v2189 = vmul.f32 %v2187, 1.442695
        %v2190 = vpow.pop %v2189
        %v2191 = vmul.f32 %v2188, 1.442695
        %v2192 = vpow.pop %v2191
        %v2193 = vadd.f32 %v2190, 1.0
        %v2194 = vadd.f32 %v2192, 1.0
        %v2195 = vrcp.pop %v2193
        %v2196 = vmul.f32 1.0, %v2195
        %v2197 = vrcp.pop %v2194
        %v2198 = vmul.f32 1.0, %v2197
        %v2199 = vtanh.pop %v2184
        %v2200 = vtanh.pop %v2186
        %v2201 = vxor.u32 %v2184, 2147483648
        %v2202 = vxor.u32 %v2186, 2147483648
        %v2203 = vmul.f32 %v2201, 1.442695
        %v2204 = vpow.pop %v2203
        %v2205 = vmul.f32 %v2202, 1.442695
        %v2206 = vpow.pop %v2205
        %v2207 = vadd.f32 %v2204, 1.0
        %v2208 = vadd.f32 %v2206, 1.0
        %v2209 = vrcp.pop %v2207
        %v2210 = vmul.f32 1.0, %v2209
        %v2211 = vrcp.pop %v2208
        %v2212 = vmul.f32 1.0, %v2211
        %2215 = vrot.lane.b32.xlu0 %v2134, 64
        %v2216 = vpop.permute.xlu0 %2215
        %2217 = vrot.lane.b32.xlu0 %v2135, 64
        %v2218 = vpop.permute.xlu0 %2217
        %v2221 = vmul.f32 %v2196, %v2216
        %v2222 = vmul.f32 %v2198, %v2218
        %v2223 = vmul.f32 %v2196, %v2199
        %v2224 = vmul.f32 %v2198, %v2200
        %2227 = vrot.lane.b32.xlu0 %v2223, 64
        %v2228 = vpop.permute.xlu0 %2227
        %2229 = vrot.lane.b32.xlu0 %v2224, 64
        %v2230 = vpop.permute.xlu0 %2229
        %v2233 = vadd.f32 %v2221, %v2228
        %v2234 = vadd.f32 %v2222, %v2230
        %v2235 = vtanh.pop %v2233
        %v2236 = vtanh.pop %v2234
        %v2237 = vmul.f32 %v2210, %v2235
        %v2238 = vmul.f32 %v2212, %v2236
        %v2239 = vsel %vm1634, %v2098, %v2090
        %v2240 = vsel %vm1634, %v2102, %v2094
        %2243 = vrot.lane.b32.xlu0 %v2237, 64
        %v2244 = vpop.permute.xlu0 %2243
        %2245 = vrot.lane.b32.xlu0 %v2238, 64
        %v2246 = vpop.permute.xlu0 %2245
        %v2249 = vmul.f32 %v2239, %v2244
        %v2250 = vmul.f32 %v2240, %v2246
        %v2251 = vsub.f32 1.0, %v2239
        %v2252 = vsub.f32 1.0, %v2240
        %v2253 = vmul.f32 %v2251, %v2120
        %v2254 = vmul.f32 %v2252, %v2121
        %v2255 = vadd.f32 %v2249, %v2253
        %v2256 = vadd.f32 %v2250, %v2254
        %2259 = vrot.lane.b32.xlu0 %v2233, 64
        %v2260 = vpop.permute.xlu0 %2259
        %2261 = vrot.lane.b32.xlu0 %v2234, 64
        %v2262 = vpop.permute.xlu0 %2261
        %v2265 = vmul.f32 %v2239, %v2260
        %v2266 = vmul.f32 %v2240, %v2262
        %v2267 = vmul.f32 %v2251, %v2134
        %v2268 = vmul.f32 %v2252, %v2135
        %v2269 = vadd.f32 %v2265, %v2267
        %v2270 = vadd.f32 %v2266, %v2268
        %v2271 = vpack.c.bf16 %v2256, %v2255
        %v2273 = vsel %vm1539, %v2271, 0
        %2275 = vmatprep.subr.bf16.mxu0 %v1524
        %2276 = vmatpush1.bf16.msra.mxu0 %v1523
        %2277 = vmatprep.subr.bf16.mxu0 %v1526
        %2278 = vmatpush1.bf16.msra.mxu0 %v1525
        %2279 = vmatprep.subr.bf16.mxu0 %v1528
        %2280 = vmatpush1.bf16.msra.mxu0 %v1527
        %2281 = vmatprep.subr.bf16.mxu0 %v1530
        %2282 = vmatpush1.bf16.msra.mxu0 %v1529
        %2283 = vmatprep.subr.bf16.mxu0 0
        %2284 = vmatpush1.bf16.msra.mxu0 0
        %2285 = vmatprep.subr.bf16.mxu0 0
        %2286 = vmatpush1.bf16.msra.mxu0 0
        %2287 = vmatprep.subr.bf16.mxu0 0
        %2288 = vmatpush1.bf16.msra.mxu0 0
        %2289 = vmatprep.subr.bf16.mxu0 0
        %2290 = vmatpush1.bf16.msra.mxu0 0
        %2291 = vmatprep.subr.bf16.mxu0 0
        %2292 = vmatpush1.bf16.msra.mxu0 0
        %2293 = vmatprep.subr.bf16.mxu0 0
        %2294 = vmatpush1.bf16.msra.mxu0 0
        %2295 = vmatprep.subr.bf16.mxu0 0
        %2296 = vmatpush1.bf16.msra.mxu0 0
        %2297 = vmatprep.subr.bf16.mxu0 0
        %2298 = vmatpush1.bf16.msra.mxu0 0
        %2299 = vmatprep.subr.bf16.mxu0 0
        %2300 = vmatpush1.bf16.msra.mxu0 0
        %2301 = vmatprep.subr.bf16.mxu0 0
        %2302 = vmatpush1.bf16.msra.mxu0 0
        %2303 = vmatprep.subr.bf16.mxu0 0
        %2304 = vmatpush1.bf16.msra.mxu0 0
        %2305 = vmatprep.subr.bf16.mxu0 0
        %2306 = vmatpush1.bf16.msra.mxu0 0
        %2307 = vmatprep.mubr.bf16.mxu0 0
        %2308 = vmatmul.mubr.bf16.gmra.mrb[0].mxu0 %v2273
        %v2309 = vpop.f32.mrb[0].mxu0
        %v2310 = vadd.f32 0.0, %v2309
        %v2311 = vpop.f32.mrb[0].mxu0
        %v2312 = vadd.f32 0.0, %v2311
        %v2313 = vpop.f32.mrb[0].mxu0
        %v2314 = vadd.f32 0.0, %v2313
        %v2315 = vpop.f32.mrb[0].mxu0
        %v2316 = vadd.f32 0.0, %v2315
        %2317 = vdwg.mxu0
        %v2318 = vadd.f32 %v1395, %v2310
        %v2319 = vadd.f32 %v1397, %v2312
        %v2320 = vadd.f32 %v1399, %v2314
        %v2321 = vadd.f32 %v1401, %v2316
        %v2322 = vxor.u32 %v2318, 2147483648
        %v2323 = vxor.u32 %v2320, 2147483648
        %v2324 = vmul.f32 %v2322, 1.442695
        %v2325 = vpow.pop %v2324
        %v2326 = vmul.f32 %v2323, 1.442695
        %v2327 = vpow.pop %v2326
        %v2328 = vadd.f32 %v2325, 1.0
        %v2329 = vadd.f32 %v2327, 1.0
        %v2330 = vrcp.pop %v2328
        %v2331 = vmul.f32 1.0, %v2330
        %v2332 = vrcp.pop %v2329
        %v2333 = vmul.f32 1.0, %v2332
        %v2334 = vtanh.pop %v2319
        %v2335 = vtanh.pop %v2321
        %v2336 = vxor.u32 %v2319, 2147483648
        %v2337 = vxor.u32 %v2321, 2147483648
        %v2338 = vmul.f32 %v2336, 1.442695
        %v2339 = vpow.pop %v2338
        %v2340 = vmul.f32 %v2337, 1.442695
        %v2341 = vpow.pop %v2340
        %v2342 = vadd.f32 %v2339, 1.0
        %v2343 = vadd.f32 %v2341, 1.0
        %v2344 = vrcp.pop %v2342
        %v2345 = vmul.f32 1.0, %v2344
        %v2346 = vrcp.pop %v2343
        %v2347 = vmul.f32 1.0, %v2346
        %2350 = vrot.lane.b32.xlu0 %v2269, 64
        %v2351 = vpop.permute.xlu0 %2350
        %2352 = vrot.lane.b32.xlu0 %v2270, 64
        %v2353 = vpop.permute.xlu0 %2352
        %v2356 = vmul.f32 %v2331, %v2351
        %v2357 = vmul.f32 %v2333, %v2353
        %v2358 = vmul.f32 %v2331, %v2334
        %v2359 = vmul.f32 %v2333, %v2335
        %2362 = vrot.lane.b32.xlu0 %v2358, 64
        %v2363 = vpop.permute.xlu0 %2362
        %2364 = vrot.lane.b32.xlu0 %v2359, 64
        %v2365 = vpop.permute.xlu0 %2364
        %v2368 = vadd.f32 %v2356, %v2363
        %v2369 = vadd.f32 %v2357, %v2365
        %v2370 = vtanh.pop %v2368
        %v2371 = vtanh.pop %v2369
        %v2372 = vmul.f32 %v2345, %v2370
        %v2373 = vmul.f32 %v2347, %v2371
        %v2374 = vsel %vm1634, %v1947, %v1939
        %v2375 = vsel %vm1634, %v1951, %v1943
        %2378 = vrot.lane.b32.xlu0 %v2372, 64
        %v2379 = vpop.permute.xlu0 %2378
        %2380 = vrot.lane.b32.xlu0 %v2373, 64
        %v2381 = vpop.permute.xlu0 %2380
        %v2384 = vmul.f32 %v2374, %v2379
        %v2385 = vmul.f32 %v2375, %v2381
        %v2386 = vsub.f32 1.0, %v2374
        %v2387 = vsub.f32 1.0, %v2375
        %v2388 = vmul.f32 %v2386, %v2255
        %v2389 = vmul.f32 %v2387, %v2256
        %v2390 = vadd.f32 %v2384, %v2388
        %v2391 = vadd.f32 %v2385, %v2389
        %2394 = vrot.lane.b32.xlu0 %v2368, 64
        %v2395 = vpop.permute.xlu0 %2394
        %2396 = vrot.lane.b32.xlu0 %v2369, 64
        %v2397 = vpop.permute.xlu0 %2396
        %v2400 = vmul.f32 %v2374, %v2395
        %v2401 = vmul.f32 %v2375, %v2397
        %v2402 = vmul.f32 %v2386, %v2269
        %v2403 = vmul.f32 %v2387, %v2270
        %v2404 = vadd.f32 %v2400, %v2402
        %v2405 = vadd.f32 %v2401, %v2403
        %v2406 = vpack.c.bf16 %v2391, %v2390
        %v2408 = vsel %vm1539, %v2406, 0
        %2410 = vmatprep.subr.bf16.mxu0 %v1524
        %2411 = vmatpush1.bf16.msra.mxu0 %v1523
        %2412 = vmatprep.subr.bf16.mxu0 %v1526
        %2413 = vmatpush1.bf16.msra.mxu0 %v1525
        %2414 = vmatprep.subr.bf16.mxu0 %v1528
        %2415 = vmatpush1.bf16.msra.mxu0 %v1527
        %2416 = vmatprep.subr.bf16.mxu0 %v1530
        %2417 = vmatpush1.bf16.msra.mxu0 %v1529
        %2418 = vmatprep.subr.bf16.mxu0 0
        %2419 = vmatpush1.bf16.msra.mxu0 0
        %2420 = vmatprep.subr.bf16.mxu0 0
        %2421 = vmatpush1.bf16.msra.mxu0 0
        %2422 = vmatprep.subr.bf16.mxu0 0
        %2423 = vmatpush1.bf16.msra.mxu0 0
        %2424 = vmatprep.subr.bf16.mxu0 0
        %2425 = vmatpush1.bf16.msra.mxu0 0
        %2426 = vmatprep.subr.bf16.mxu0 0
        %2427 = vmatpush1.bf16.msra.mxu0 0
        %2428 = vmatprep.subr.bf16.mxu0 0
        %2429 = vmatpush1.bf16.msra.mxu0 0
        %2430 = vmatprep.subr.bf16.mxu0 0
        %2431 = vmatpush1.bf16.msra.mxu0 0
        %2432 = vmatprep.subr.bf16.mxu0 0
        %2433 = vmatpush1.bf16.msra.mxu0 0
        %2434 = vmatprep.subr.bf16.mxu0 0
        %2435 = vmatpush1.bf16.msra.mxu0 0
        %2436 = vmatprep.subr.bf16.mxu0 0
        %2437 = vmatpush1.bf16.msra.mxu0 0
        %2438 = vmatprep.subr.bf16.mxu0 0
        %2439 = vmatpush1.bf16.msra.mxu0 0
        %2440 = vmatprep.subr.bf16.mxu0 0
        %2441 = vmatpush1.bf16.msra.mxu0 0
        %2442 = vmatprep.mubr.bf16.mxu0 0
        %2443 = vmatmul.mubr.bf16.gmra.mrb[0].mxu0 %v2408
        %v2444 = vpop.f32.mrb[0].mxu0
        %v2445 = vadd.f32 0.0, %v2444
        %v2446 = vpop.f32.mrb[0].mxu0
        %v2447 = vadd.f32 0.0, %v2446
        %v2448 = vpop.f32.mrb[0].mxu0
        %v2449 = vadd.f32 0.0, %v2448
        %v2450 = vpop.f32.mrb[0].mxu0
        %v2451 = vadd.f32 0.0, %v2450
        %2452 = vdwg.mxu0
        %v2453 = vadd.f32 %v1438, %v2445
        %v2454 = vadd.f32 %v1440, %v2447
        %v2455 = vadd.f32 %v1442, %v2449
        %v2456 = vadd.f32 %v1444, %v2451
        %v2457 = vxor.u32 %v2453, 2147483648
        %v2458 = vxor.u32 %v2455, 2147483648
        %v2459 = vmul.f32 %v2457, 1.442695
        %v2460 = vpow.pop %v2459
        %v2461 = vmul.f32 %v2458, 1.442695
        %v2462 = vpow.pop %v2461
        %v2463 = vadd.f32 %v2460, 1.0
        %v2464 = vadd.f32 %v2462, 1.0
        %v2465 = vrcp.pop %v2463
        %v2466 = vmul.f32 1.0, %v2465
        %v2467 = vrcp.pop %v2464
        %v2468 = vmul.f32 1.0, %v2467
        %v2469 = vtanh.pop %v2454
        %v2470 = vtanh.pop %v2456
        %v2471 = vxor.u32 %v2454, 2147483648
        %v2472 = vxor.u32 %v2456, 2147483648
        %v2473 = vmul.f32 %v2471, 1.442695
        %v2474 = vpow.pop %v2473
        %v2475 = vmul.f32 %v2472, 1.442695
        %v2476 = vpow.pop %v2475
        %v2477 = vadd.f32 %v2474, 1.0
        %v2478 = vadd.f32 %v2476, 1.0
        %v2479 = vrcp.pop %v2477
        %v2480 = vmul.f32 1.0, %v2479
        %v2481 = vrcp.pop %v2478
        %v2482 = vmul.f32 1.0, %v2481
        %2485 = vrot.lane.b32.xlu0 %v2404, 64
        %v2486 = vpop.permute.xlu0 %2485
        %2487 = vrot.lane.b32.xlu0 %v2405, 64
        %v2488 = vpop.permute.xlu0 %2487
        %v2491 = vmul.f32 %v2466, %v2486
        %v2492 = vmul.f32 %v2468, %v2488
        %v2493 = vmul.f32 %v2466, %v2469
        %v2494 = vmul.f32 %v2468, %v2470
        %2497 = vrot.lane.b32.xlu0 %v2493, 64
        %v2498 = vpop.permute.xlu0 %2497
        %2499 = vrot.lane.b32.xlu0 %v2494, 64
        %v2500 = vpop.permute.xlu0 %2499
        %v2503 = vadd.f32 %v2491, %v2498
        %v2504 = vadd.f32 %v2492, %v2500
        %v2505 = vtanh.pop %v2503
        %v2506 = vtanh.pop %v2504
        %v2507 = vmul.f32 %v2480, %v2505
        %v2508 = vmul.f32 %v2482, %v2506
        %v2509 = vsel %vm1634, %v1796, %v1788
        %v2510 = vsel %vm1634, %v1800, %v1792
        %2513 = vrot.lane.b32.xlu0 %v2507, 64
        %v2514 = vpop.permute.xlu0 %2513
        %2515 = vrot.lane.b32.xlu0 %v2508, 64
        %v2516 = vpop.permute.xlu0 %2515
        %v2519 = vmul.f32 %v2509, %v2514
        %v2520 = vmul.f32 %v2510, %v2516
        %v2521 = vsub.f32 1.0, %v2509
        %v2522 = vsub.f32 1.0, %v2510
        %v2523 = vmul.f32 %v2521, %v2390
        %v2524 = vmul.f32 %v2522, %v2391
        %v2525 = vadd.f32 %v2519, %v2523
        %v2526 = vadd.f32 %v2520, %v2524
        %2529 = vrot.lane.b32.xlu0 %v2503, 64
        %v2530 = vpop.permute.xlu0 %2529
        %2531 = vrot.lane.b32.xlu0 %v2504, 64
        %v2532 = vpop.permute.xlu0 %2531
        %v2535 = vmul.f32 %v2509, %v2530
        %v2536 = vmul.f32 %v2510, %v2532
        %v2537 = vmul.f32 %v2521, %v2404
        %v2538 = vmul.f32 %v2522, %v2405
        %v2539 = vadd.f32 %v2535, %v2537
        %v2540 = vadd.f32 %v2536, %v2538
        %v2541 = vpack.c.bf16 %v2526, %v2525
        %v2543 = vsel %vm1539, %v2541, 0
        %2545 = vmatprep.subr.bf16.mxu0 %v1524
        %2546 = vmatpush1.bf16.msra.mxu0 %v1523
        %2547 = vmatprep.subr.bf16.mxu0 %v1526
        %2548 = vmatpush1.bf16.msra.mxu0 %v1525
        %2549 = vmatprep.subr.bf16.mxu0 %v1528
        %2550 = vmatpush1.bf16.msra.mxu0 %v1527
        %2551 = vmatprep.subr.bf16.mxu0 %v1530
        %2552 = vmatpush1.bf16.msra.mxu0 %v1529
        %2553 = vmatprep.subr.bf16.mxu0 0
        %2554 = vmatpush1.bf16.msra.mxu0 0
        %2555 = vmatprep.subr.bf16.mxu0 0
        %2556 = vmatpush1.bf16.msra.mxu0 0
        %2557 = vmatprep.subr.bf16.mxu0 0
        %2558 = vmatpush1.bf16.msra.mxu0 0
        %2559 = vmatprep.subr.bf16.mxu0 0
        %2560 = vmatpush1.bf16.msra.mxu0 0
        %2561 = vmatprep.subr.bf16.mxu0 0
        %2562 = vmatpush1.bf16.msra.mxu0 0
        %2563 = vmatprep.subr.bf16.mxu0 0
        %2564 = vmatpush1.bf16.msra.mxu0 0
        %2565 = vmatprep.subr.bf16.mxu0 0
        %2566 = vmatpush1.bf16.msra.mxu0 0
        %2567 = vmatprep.subr.bf16.mxu0 0
        %2568 = vmatpush1.bf16.msra.mxu0 0
        %2569 = vmatprep.subr.bf16.mxu0 0
        %2570 = vmatpush1.bf16.msra.mxu0 0
        %2571 = vmatprep.subr.bf16.mxu0 0
        %2572 = vmatpush1.bf16.msra.mxu0 0
        %2573 = vmatprep.subr.bf16.mxu0 0
        %2574 = vmatpush1.bf16.msra.mxu0 0
        %2575 = vmatprep.subr.bf16.mxu0 0
        %2576 = vmatpush1.bf16.msra.mxu0 0
        %2577 = vmatprep.mubr.bf16.mxu0 0
        %2578 = vmatmul.mubr.bf16.gmra.mrb[0].mxu0 %v2543
        %v2579 = vpop.f32.mrb[0].mxu0
        %v2580 = vadd.f32 0.0, %v2579
        %v2581 = vpop.f32.mrb[0].mxu0
        %v2582 = vadd.f32 0.0, %v2581
        %v2583 = vpop.f32.mrb[0].mxu0
        %v2584 = vadd.f32 0.0, %v2583
        %v2585 = vpop.f32.mrb[0].mxu0
        %v2586 = vadd.f32 0.0, %v2585
        %2587 = vdwg.mxu0
        %v2588 = vadd.f32 %v1481, %v2580
        %v2589 = vadd.f32 %v1483, %v2582
        %v2590 = vadd.f32 %v1485, %v2584
        %v2591 = vadd.f32 %v1487, %v2586
        %v2592 = vxor.u32 %v2588, 2147483648
        %v2593 = vxor.u32 %v2590, 2147483648
        %v2594 = vmul.f32 %v2592, 1.442695
        %v2595 = vpow.pop %v2594
        %v2596 = vmul.f32 %v2593, 1.442695
        %v2597 = vpow.pop %v2596
        %v2598 = vadd.f32 %v2595, 1.0
        %v2599 = vadd.f32 %v2597, 1.0
        %v2600 = vrcp.pop %v2598
        %v2601 = vmul.f32 1.0, %v2600
        %v2602 = vrcp.pop %v2599
        %v2603 = vmul.f32 1.0, %v2602
        %v2604 = vtanh.pop %v2589
        %v2605 = vtanh.pop %v2591
        %v2606 = vxor.u32 %v2589, 2147483648
        %v2607 = vxor.u32 %v2591, 2147483648
        %v2608 = vmul.f32 %v2606, 1.442695
        %v2609 = vpow.pop %v2608
        %v2610 = vmul.f32 %v2607, 1.442695
        %v2611 = vpow.pop %v2610
        %v2612 = vadd.f32 %v2609, 1.0
        %v2613 = vadd.f32 %v2611, 1.0
        %v2614 = vrcp.pop %v2612
        %v2615 = vmul.f32 1.0, %v2614
        %v2616 = vrcp.pop %v2613
        %v2617 = vmul.f32 1.0, %v2616
        %2620 = vrot.lane.b32.xlu0 %v2539, 64
        %v2621 = vpop.permute.xlu0 %2620
        %2622 = vrot.lane.b32.xlu0 %v2540, 64
        %v2623 = vpop.permute.xlu0 %2622
        %v2626 = vmul.f32 %v2601, %v2621
        %v2627 = vmul.f32 %v2603, %v2623
        %v2628 = vmul.f32 %v2601, %v2604
        %v2629 = vmul.f32 %v2603, %v2605
        %2632 = vrot.lane.b32.xlu0 %v2628, 64
        %v2633 = vpop.permute.xlu0 %2632
        %2634 = vrot.lane.b32.xlu0 %v2629, 64
        %v2635 = vpop.permute.xlu0 %2634
        %v2638 = vadd.f32 %v2626, %v2633
        %v2639 = vadd.f32 %v2627, %v2635
        %v2640 = vtanh.pop %v2638
        %v2641 = vtanh.pop %v2639
        %v2642 = vmul.f32 %v2615, %v2640
        %v2643 = vmul.f32 %v2617, %v2641
        %v2644 = vsel %vm1634, %v1647, %v1638
        %v2645 = vsel %vm1634, %v1651, %v1643
        %2648 = vrot.lane.b32.xlu0 %v2642, 64
        %v2649 = vpop.permute.xlu0 %2648
        %2650 = vrot.lane.b32.xlu0 %v2643, 64
        %v2651 = vpop.permute.xlu0 %2650
        %v2654 = vmul.f32 %v2644, %v2649
        %v2655 = vmul.f32 %v2645, %v2651
        %v2656 = vsub.f32 1.0, %v2644
        %v2657 = vsub.f32 1.0, %v2645
        %v2658 = vmul.f32 %v2656, %v2525
        %v2659 = vmul.f32 %v2657, %v2526
        %v2660 = vadd.f32 %v2654, %v2658
        %v2661 = vadd.f32 %v2655, %v2659
        %v2662 = vld [vmem:[#allocation5 + $0x40] sm:$0xff]
        %v2663 = vld [vmem:[#allocation5 + $0x48] sm:$0xff]
        %v2664 = vld [vmem:[#allocation5 + $0x50] sm:$0xff]
        %v2665 = vld [vmem:[#allocation5 + $0x58] sm:$0xff]
        %v2666 = vld [vmem:[#allocation5 + $0x60] sm:$0xff]
        %v2667 = vld [vmem:[#allocation5 + $0x68] sm:$0xff]
        %v2668 = vld [vmem:[#allocation5 + $0x70] sm:$0xff]
        %v2669 = vld [vmem:[#allocation5 + $0x78] sm:$0xff]
        %v2670 = vld [vmem:[#allocation5 + $0x80] sm:$0xff]
        %v2671 = vld [vmem:[#allocation5 + $0x88] sm:$0xff]
        %v2672 = vld [vmem:[#allocation5 + $0x90] sm:$0xff]
        %v2673 = vld [vmem:[#allocation5 + $0x98] sm:$0xff]
        %v2674 = vld [vmem:[#allocation5 + $0xa0] sm:$0xff]
        %v2675 = vld [vmem:[#allocation5 + $0xa8] sm:$0xff]
        %v2676 = vld [vmem:[#allocation5 + $0xb0] sm:$0xff]
        %v2677 = vld [vmem:[#allocation5 + $0xb8] sm:$0xff]
        %v2678 = vunpack.c.h.b16 %v282
        %v2679 = vunpack.c.h.b16 %v283
        %v2680 = vpack.c.b16 %v2679, %v2678
        %v2698 = vunpack.c.l.b16 %v2662
        %v2699 = vunpack.c.h.b16 %v2662
        %v2700 = vunpack.c.l.b16 %v2663
        %v2701 = vunpack.c.h.b16 %v2663
        %v2702 = vunpack.c.l.b16 %v2664
        %v2703 = vunpack.c.h.b16 %v2664
        %v2704 = vunpack.c.l.b16 %v2665
        %v2705 = vunpack.c.h.b16 %v2665
        %v2706 = vunpack.c.l.b16 %v2666
        %v2707 = vunpack.c.h.b16 %v2666
        %v2708 = vunpack.c.l.b16 %v2667
        %v2709 = vunpack.c.h.b16 %v2667
        %v2710 = vunpack.c.l.b16 %v2668
        %v2711 = vunpack.c.h.b16 %v2668
        %v2712 = vunpack.c.l.b16 %v2669
        %v2713 = vunpack.c.h.b16 %v2669
        %v2714 = vunpack.c.l.b16 %v2670
        %v2715 = vunpack.c.h.b16 %v2670
        %v2716 = vunpack.c.l.b16 %v2671
        %v2717 = vunpack.c.h.b16 %v2671
        %v2718 = vunpack.c.l.b16 %v2672
        %v2719 = vunpack.c.h.b16 %v2672
        %v2720 = vunpack.c.l.b16 %v2673
        %v2721 = vunpack.c.h.b16 %v2673
        %v2722 = vunpack.c.l.b16 %v2674
        %v2723 = vunpack.c.h.b16 %v2674
        %v2724 = vunpack.c.l.b16 %v2675
        %v2725 = vunpack.c.h.b16 %v2675
        %v2726 = vunpack.c.l.b16 %v2676
        %v2727 = vunpack.c.h.b16 %v2676
        %v2728 = vunpack.c.l.b16 %v2677
        %v2729 = vunpack.c.h.b16 %v2677
        %v2730 = vpack.c.b16 %v2700, %v2698
        %v2731 = vpack.c.b16 %v2701, %v2699
        %v2732 = vpack.c.b16 %v2704, %v2702
        %v2733 = vpack.c.b16 %v2705, %v2703
        %v2734 = vpack.c.b16 %v2708, %v2706
        %v2735 = vpack.c.b16 %v2709, %v2707
        %v2736 = vpack.c.b16 %v2712, %v2710
        %v2737 = vpack.c.b16 %v2713, %v2711
        %v2738 = vpack.c.b16 %v2716, %v2714
        %v2739 = vpack.c.b16 %v2717, %v2715
        %v2740 = vpack.c.b16 %v2720, %v2718
        %v2741 = vpack.c.b16 %v2721, %v2719
        %v2742 = vpack.c.b16 %v2724, %v2722
        %v2743 = vpack.c.b16 %v2725, %v2723
        %v2744 = vpack.c.b16 %v2728, %v2726
        %v2745 = vpack.c.b16 %v2729, %v2727
        %2762 = vmatprep.subr.bf16.mxu0 %v2731
        %2763 = vmatpush1.bf16.msra.mxu0 %v2730
        %2764 = vmatprep.subr.bf16.mxu0 %v2733
        %2765 = vmatpush1.bf16.msra.mxu0 %v2732
        %2766 = vmatprep.subr.bf16.mxu0 %v2735
        %2767 = vmatpush1.bf16.msra.mxu0 %v2734
        %2768 = vmatprep.subr.bf16.mxu0 %v2737
        %2769 = vmatpush1.bf16.msra.mxu0 %v2736
        %2770 = vmatprep.subr.bf16.mxu0 %v2739
        %2771 = vmatpush1.bf16.msra.mxu0 %v2738
        %2772 = vmatprep.subr.bf16.mxu0 %v2741
        %2773 = vmatpush1.bf16.msra.mxu0 %v2740
        %2774 = vmatprep.subr.bf16.mxu0 %v2743
        %2775 = vmatpush1.bf16.msra.mxu0 %v2742
        %2776 = vmatprep.subr.bf16.mxu0 %v2745
        %2777 = vmatpush1.bf16.msra.mxu0 %v2744
        %2778 = vmatprep.subr.bf16.mxu0 0
        %2779 = vmatpush1.bf16.msra.mxu0 0
        %2780 = vmatprep.subr.bf16.mxu0 0
        %2781 = vmatpush1.bf16.msra.mxu0 0
        %2782 = vmatprep.subr.bf16.mxu0 0
        %2783 = vmatpush1.bf16.msra.mxu0 0
        %2784 = vmatprep.subr.bf16.mxu0 0
        %2785 = vmatpush1.bf16.msra.mxu0 0
        %2786 = vmatprep.subr.bf16.mxu0 0
        %2787 = vmatpush1.bf16.msra.mxu0 0
        %2788 = vmatprep.subr.bf16.mxu0 0
        %2789 = vmatpush1.bf16.msra.mxu0 0
        %2790 = vmatprep.subr.bf16.mxu0 0
        %2791 = vmatpush1.bf16.msra.mxu0 0
        %2792 = vmatprep.subr.bf16.mxu0 0
        %2793 = vmatpush1.bf16.msra.mxu0 0
        %2794 = vmatprep.mubr.bf16.mxu0 0
        %2795 = vmatmul.mubr.bf16.gmra.mrb[0].mxu0 %v2680
        %v2796 = vpop.f32.mrb[0].mxu0
        %v2797 = vadd.f32 0.0, %v2796
        %v2798 = vpop.f32.mrb[0].mxu0
        %v2799 = vadd.f32 0.0, %v2798
        %v2800 = vpop.f32.mrb[0].mxu0
        %v2801 = vadd.f32 0.0, %v2800
        %v2802 = vpop.f32.mrb[0].mxu0
        %v2803 = vadd.f32 0.0, %v2802
        %2804 = vdwg.mxu0
        %v2805 = vmax.f32 %v2797, %v2799
        %v2806 = vmax.f32 %v2801, %v2803
        %2807 = vrot.lane.b32.xlu0 %v2805, 64
        %v2808 = vpop.permute.xlu0 %2807
        %2809 = vrot.lane.b32.xlu0 %v2806, 64
        %v2810 = vpop.permute.xlu0 %2809
        %v2811 = vmax.f32 %v2805, %v2808
        %v2812 = vmax.f32 %v2806, %v2810
        %2813 = vrot.lane.b32.xlu0 %v2811, 32
        %v2814 = vpop.permute.xlu0 %2813
        %2815 = vrot.lane.b32.xlu0 %v2812, 32
        %v2816 = vpop.permute.xlu0 %2815
        %v2817 = vmax.f32 %v2811, %v2814
        %v2818 = vmax.f32 %v2812, %v2816
        %v2820 = vlaneseq
        %v2821 = vshrl.u32 %v2820, 7
        %v2822 = vsub.s32 0, %v2821
        %v2823 = vrot.slane %v288, %v2822
        %v2825 = vadd.f32 %v2817, %v2823
        %v2826 = vadd.f32 %v2818, %v2823
        %v2827 = vmax.f32 %v2825, 0.0
        %v2828 = vmax.f32 %v2826, 0.0
        %v2829 = vld [vmem:[#allocation5 + $0xc0] sm:$0xff]
        %v2830 = vld [vmem:[#allocation5 + $0xc8] sm:$0xff]
        %v2831 = vld [vmem:[#allocation5 + $0xd0] sm:$0xff]
        %v2832 = vld [vmem:[#allocation5 + $0xd8] sm:$0xff]
        %v2833 = vpack.c.bf16 %v2828, %v2827
        %v2838 = vunpack.c.l.b16 %v2829
        %v2839 = vunpack.c.l.b16 %v2830
        %v2840 = vunpack.c.l.b16 %v2831
        %v2841 = vunpack.c.l.b16 %v2832
        %v2842 = vpack.c.b16 %v2839, %v2838
        %v2843 = vpack.c.b16 %v2841, %v2840
        %2846 = vrot.lane.b32.xlu0 %v2823, 96
        %v2847 = vpop.permute.xlu0 %2846
        %vm2849 = vcmask 261120
        %v2851 = vsel %vm2849, %v2833, 0
        %2853 = vmatprep.subr.bf16.mxu0 0
        %2854 = vmatpush1.bf16.msra.mxu0 %v2842
        %2855 = vmatprep.subr.bf16.mxu0 0
        %2856 = vmatpush1.bf16.msra.mxu0 %v2843
        %2857 = vmatprep.subr.bf16.mxu0 0
        %2858 = vmatpush1.bf16.msra.mxu0 0
        %2859 = vmatprep.subr.bf16.mxu0 0
        %2860 = vmatpush1.bf16.msra.mxu0 0
        %2861 = vmatprep.subr.bf16.mxu0 0
        %2862 = vmatpush1.bf16.msra.mxu0 0
        %2863 = vmatprep.subr.bf16.mxu0 0
        %2864 = vmatpush1.bf16.msra.mxu0 0
        %2865 = vmatprep.subr.bf16.mxu0 0
        %2866 = vmatpush1.bf16.msra.mxu0 0
        %2867 = vmatprep.subr.bf16.mxu0 0
        %2868 = vmatpush1.bf16.msra.mxu0 0
        %2869 = vmatprep.subr.bf16.mxu0 0
        %2870 = vmatpush1.bf16.msra.mxu0 0
        %2871 = vmatprep.subr.bf16.mxu0 0
        %2872 = vmatpush1.bf16.msra.mxu0 0
        %2873 = vmatprep.subr.bf16.mxu0 0
        %2874 = vmatpush1.bf16.msra.mxu0 0
        %2875 = vmatprep.subr.bf16.mxu0 0
        %2876 = vmatpush1.bf16.msra.mxu0 0
        %2877 = vmatprep.subr.bf16.mxu0 0
        %2878 = vmatpush1.bf16.msra.mxu0 0
        %2879 = vmatprep.subr.bf16.mxu0 0
        %2880 = vmatpush1.bf16.msra.mxu0 0
        %2881 = vmatprep.subr.bf16.mxu0 0
        %2882 = vmatpush1.bf16.msra.mxu0 0
        %2883 = vmatprep.subr.bf16.mxu0 0
        %2884 = vmatpush1.bf16.msra.mxu0 0
        %2885 = vmatprep.mubr.bf16.mxu0 0
        %2886 = vmatmul.mubr.bf16.gmra.mrb[0].mxu0 %v2851
        %v2887 = vpop.f32.mrb[0].mxu0
        %v2888 = vadd.f32 %v2847, %v2887
        %v2889 = vpop.f32.mrb[0].mxu0
        %v2890 = vpop.f32.mrb[0].mxu0
        %v2891 = vadd.f32 %v2847, %v2890
        %v2892 = vpop.f32.mrb[0].mxu0
        %2893 = vdwg.mxu0
        %v2894 = vmax.f32 %v2888, 0.0
        %v2895 = vmax.f32 %v2891, 0.0
        %v2896 = vxor.u32 %v2888, 2147483648
        %v2897 = vxor.u32 %v2891, 2147483648
        %v2898 = vmul.f32 %v2896, 1.442695
        %v2899 = vpow.pop %v2898
        %v2900 = vmul.f32 %v2897, 1.442695
        %v2901 = vpow.pop %v2900
        %v2902 = vadd.f32 %v2899, 1.0
        %v2903 = vadd.f32 %v2901, 1.0
        %v2904 = vrcp.pop %v2902
        %v2905 = vmul.f32 1.0, %v2904
        %v2906 = vrcp.pop %v2903
        %v2907 = vmul.f32 1.0, %v2906
        %2910 = vrot.lane.b32.xlu0 %v2827, 32
        %v2911 = vpop.permute.xlu0 %2910
        %2912 = vrot.lane.b32.xlu0 %v2828, 32
        %v2913 = vpop.permute.xlu0 %2912
        %v2916 = vmul.f32 %v2905, %v2911
        %v2917 = vmul.f32 %v2907, %v2913
        %v2918 = vsub.f32 1.0, %v2905
        %v2919 = vsub.f32 1.0, %v2907
        %2922 = vrot.lane.b32.xlu0 %v2894, 32
        %v2923 = vpop.permute.xlu0 %2922
        %2924 = vrot.lane.b32.xlu0 %v2895, 32
        %v2925 = vpop.permute.xlu0 %2924
        %v2928 = vmul.f32 %v2918, %v2923
        %v2929 = vmul.f32 %v2919, %v2925
        %v2930 = vadd.f32 %v2916, %v2928
        %v2931 = vadd.f32 %v2917, %v2929
        %v2932 = vpack.c.bf16 %v2931, %v2930
        %2934 = vrot.lane.b32.xlu0 %v2932, 96
        %v2935 = vpop.permute.xlu0 %2934
        %2936 = vrot.lane.b32.xlu0 %v2842, 64
        %v2937 = vpop.permute.xlu0 %2936
        %2938 = vrot.lane.b32.xlu0 %v2843, 64
        %v2939 = vpop.permute.xlu0 %2938
        %2942 = vrot.lane.b32.xlu0 %v2823, 32
        %v2943 = vpop.permute.xlu0 %2942
        %v2946 = vsel %vm2849, %v2935, 0
        %2948 = vmatprep.subr.bf16.mxu0 0
        %2949 = vmatpush1.bf16.msra.mxu0 %v2937
        %2950 = vmatprep.subr.bf16.mxu0 0
        %2951 = vmatpush1.bf16.msra.mxu0 %v2939
        %2952 = vmatprep.subr.bf16.mxu0 0
        %2953 = vmatpush1.bf16.msra.mxu0 0
        %2954 = vmatprep.subr.bf16.mxu0 0
        %2955 = vmatpush1.bf16.msra.mxu0 0
        %2956 = vmatprep.subr.bf16.mxu0 0
        %2957 = vmatpush1.bf16.msra.mxu0 0
        %2958 = vmatprep.subr.bf16.mxu0 0
        %2959 = vmatpush1.bf16.msra.mxu0 0
        %2960 = vmatprep.subr.bf16.mxu0 0
        %2961 = vmatpush1.bf16.msra.mxu0 0
        %2962 = vmatprep.subr.bf16.mxu0 0
        %2963 = vmatpush1.bf16.msra.mxu0 0
        %2964 = vmatprep.subr.bf16.mxu0 0
        %2965 = vmatpush1.bf16.msra.mxu0 0
        %2966 = vmatprep.subr.bf16.mxu0 0
        %2967 = vmatpush1.bf16.msra.mxu0 0
        %2968 = vmatprep.subr.bf16.mxu0 0
        %2969 = vmatpush1.bf16.msra.mxu0 0
        %2970 = vmatprep.subr.bf16.mxu0 0
        %2971 = vmatpush1.bf16.msra.mxu0 0
        %2972 = vmatprep.subr.bf16.mxu0 0
        %2973 = vmatpush1.bf16.msra.mxu0 0
        %2974 = vmatprep.subr.bf16.mxu0 0
        %2975 = vmatpush1.bf16.msra.mxu0 0
        %2976 = vmatprep.subr.bf16.mxu0 0
        %2977 = vmatpush1.bf16.msra.mxu0 0
        %2978 = vmatprep.subr.bf16.mxu0 0
        %2979 = vmatpush1.bf16.msra.mxu0 0
        %2980 = vmatprep.mubr.bf16.mxu0 0
        %2981 = vmatmul.mubr.bf16.gmra.mrb[0].mxu0 %v2946
        %v2982 = vpop.f32.mrb[0].mxu0
        %v2983 = vadd.f32 %v2943, %v2982
        %v2984 = vpop.f32.mrb[0].mxu0
        %v2985 = vpop.f32.mrb[0].mxu0
        %v2986 = vadd.f32 %v2943, %v2985
        %v2987 = vpop.f32.mrb[0].mxu0
        %2988 = vdwg.mxu0
        %2989 = vrot.lane.b32.xlu0 %v284, 64
        %v2990 = vpop.permute.xlu0 %2989
        %2991 = vrot.lane.b32.xlu0 %v285, 64
        %v2992 = vpop.permute.xlu0 %2991
        %2997 = vrot.lane.b32.xlu0 %v2983, 80
        %v2998 = vpop.permute.xlu0 %2997
        %2999 = vrot.lane.b32.xlu0 %v2986, 80
        %v3000 = vpop.permute.xlu0 %2999
        %v3003 = vsel %vm1539, %v2660, %v2990
        %v3004 = vsel %vm1539, %v2661, %v2992
        %vm3005 = vcmask 654336
        %v3006 = vsel %vm3005, %v3003, %v2998
        %v3007 = vsel %vm3005, %v3004, %v3000
        %vm3008 = vcmask 916480
        %v3009 = vsel %vm3008, %v3006, 0.0
        %v3010 = vsel %vm3008, %v3007, 0.0
        %3011 = vst [vmem:[%s266] sm:$0xff] %v3009
        %3012 = vst [vmem:[%s266 + $0x8] sm:$0xff] %v3010
        %s3013 = sand.u32 %s144, 1
        %s3014 = scalar_lea.sflag [#allocation4], %s3013
        %s3015 = sand.u32 %s144, 1
        %s3016 = smul.addr %s3015, 16
        %s3017 = scalar_lea.vmem [#allocation7], %s3016
        // Predicated region
        $region49: #{tpu_custom_call.1} parent=39 // pred_check
          %p3018 = pneg %p154
        $region50: #{tpu_custom_call.1} parent=39 // pred_check_branch
          %3020 = sbr.rel (%p3018) target = $region52
        $region51: #{tpu_custom_call.1} parent=39 // pred_region
          %s3021 = smul.u32 2, %s21
          %s3023 = ssub.s32 256, 256
          %3024 = vsyncadd %s3014, %s3023
          %s3025 = smul.addr %s3021, 128
          %s3026 = scalar_lea.hbm %s5, %s3025
          %s3027 = sshll.u32 %s3017, 4
          %s3028 = int_to_ptr.vmem [resolvable:$true] %s3027
          %3033 = dma.vmem_to_hbm [thread:$0]  %s3028, 256, %s3026, %s3014, 128, 128, 8
        $region52: #{tpu_custom_call.1} parent=39 // pred_fallthru
          _
      $region40: #{tpu_custom_call.1} parent=5 // pred_fallthru
        _
      %p3034 = scmp.le.s32.totalorder 2, %s16
      // Predicated region
      $region53: #{tpu_custom_call.1} parent=5 // pred_check
        %p3035 = pneg %p3034
      $region54: #{tpu_custom_call.1} parent=5 // pred_check_branch
        %3037 = sbr.rel (%p3035) target = $region56
      $region55: #{tpu_custom_call.1} parent=5 // pred_region
        %s3038 = ssub.s32 %s16, 2
        // Predicated region
        $region57: #{tpu_custom_call.1} parent=55 // pred_check
          %p3039 = pneg %p160
        $region58: #{tpu_custom_call.1} parent=55 // pred_check_branch
          %3041 = sbr.rel (%p3039) target = $region60
        $region59: #{tpu_custom_call.1} parent=55 // pred_region
          %s3042 = sand.u32 %s145, 1
          %s3043 = scalar_lea.sflag [#allocation4], %s3042
          %s3044 = sand.u32 %s145, 1
          %s3045 = smul.addr %s3044, 16
          %s3046 = scalar_lea.vmem [#allocation7], %s3045
          %3047 = dma.done %s3043, 256
        $region60: #{tpu_custom_call.1} parent=55 // pred_fallthru
          _
      $region56: #{tpu_custom_call.1} parent=5 // pred_fallthru
        _
    $region6: #{tpu_custom_call.1} parent=1 // loop_footer
      %s20 = sadd.s32 1, %s16
    $region7: #{tpu_custom_call.1} parent=1 // loop_footer_branch
      %15 = sbr.rel target = $region3
    $region8: #{tpu_custom_call.1} parent=1 // loop_exit
      _
    %3048 = vsyncpa [#allocation3], 1
    %s3049 = scalar_lea.sflag [#allocation3], 1
    %3050 = vsyncpa %s3049, 1
    %3051 = vsyncpa [#allocation6], 1
    %3052 = vsyncpa [#allocation4], 1
    %s3053 = scalar_lea.sflag [#allocation4], 1
    %3054 = vsyncpa %s3053, 1

</llo_original>
